<compile_context>
chip_gen: v5e
topology: v5e:2x2
jax: 0.10.0
libtpu: 0.0.40
codegen_flags: <defaults>
</compile_context>

<pallas_src>
import numpy as np

import jax
import jax.numpy as jnp
from jax import lax
from jax.experimental import pallas as pl
from jax.experimental.pallas import tpu as pltpu


_NEG_SLOPE = 0.01    # nn.LeakyReLU default negative slope
_HINT_DIM = 64       # nn.Linear(42, 64)
_SLAB = 128          # lane-dense output slab: feat in lanes [0,42), hint in [42,106)


# ----------------------------------------------------------------------------
# Single fused Pallas kernel.  One grid step = TB batch elements.
#   layer1 (3 branches, Cout fused to 3C) -> layer2 (x3 branches) -> MaxPool
#   -> cat+Flatten+adapter fused into one (TB, 128) slab store.
# ----------------------------------------------------------------------------
def _generator_kernel(x_ref,                        # (TB*L, C)   channel-last, batch on sublanes
                      s1_ref, w1_ref, b1_ref,       # layer-1 gather (all taps stacked) + fused weights
                      s2a_ref, w2a_ref, b2a_ref,    # layer-2 branch 1 (k=3, d=4)
                      s2b_ref, w2b_ref, b2b_ref,    # layer-2 branch 2 (k=5, d=2)
                      s2c_ref, w2c_ref, b2c_ref,    # layer-2 branch 3 (k=7, d=1)
                      q_ref, bout_ref,              # fused interleave+adapter constants
                      out_ref):                     # (TB, 128)  lane-dense slab
    f32, bf16 = jnp.float32, jnp.bfloat16
    tb = out_ref.shape[0]

    def leaky(v):
        return jnp.maximum(v, _NEG_SLOPE * v)       # 2 VALU ops, no select

    x = x_ref[...].astype(bf16)                     # (TB*L, C)

    # ---- layer 1: one wide gather matmul (all 3 taps), 3 tap-weight matmuls ----------
    rows1 = s1_ref.shape[0] // w1_ref.shape[0]      # TB * L1
    g1 = jnp.dot(s1_ref[...], x, preferred_element_type=f32).astype(bf16)   # (3*TB*L1, C)
    acc1 = jnp.dot(g1[0:rows1], w1_ref[0], preferred_element_type=f32)       # (TB*L1, 3C)
    for t in range(1, w1_ref.shape[0]):             # statically unrolled, 8-aligned row slices
        acc1 = acc1 + jnp.dot(g1[t * rows1:(t + 1) * rows1], w1_ref[t],
                              preferred_element_type=f32)
    h1 = leaky(acc1 + b1_ref[...]).astype(bf16)     # (TB*L1, 3C)

    # ---- layer 2 + MaxPool per branch -------------------------------------------------
    # Gather rows are position-major (pos j outer, batch b inner), so MaxPool1d(Lout)
    # is an elementwise max of Lout contiguous, 8-aligned (TB, C) row blocks.
    def branch(s_ref, w_ref, b_ref):
        k = w_ref.shape[0]
        rows = s_ref.shape[0] // k                  # L2 * TB
        g = jnp.dot(s_ref[...], h1, preferred_element_type=f32).astype(bf16)  # (k*rows, 3C)
        acc = jnp.dot(g[0:rows], w_ref[0], preferred_element_type=f32)         # (rows, C)
        for t in range(1, k):
            acc = acc + jnp.dot(g[t * rows:(t + 1) * rows], w_ref[t],
                                preferred_element_type=f32)
        y = leaky(acc + b_ref[...])                 # (L2*TB, C)
        l2 = rows // tb
        m = y[0:tb]
        for j in range(1, l2):                      # MaxPool1d(L2) == full-axis max
            m = jnp.maximum(m, y[j * tb:(j + 1) * tb])
        return m.astype(bf16)                       # (TB, C)

    fa = branch(s2a_ref, w2a_ref, b2a_ref)
    fb = branch(s2b_ref, w2b_ref, b2b_ref)
    fc = branch(s2c_ref, w2c_ref, b2c_ref)

    # ---- cat(dim=2) + Flatten + nn.Linear(42, 64), fused into one lane-dense slab -----
    # q[i] places branch i's channels into lanes 3c+i (identity part) AND applies the
    # adapter columns into lanes [42, 106).  One full 128-lane store per grid step.
    slab = (jnp.dot(fa, q_ref[0], preferred_element_type=f32)
            + jnp.dot(fb, q_ref[1], preferred_element_type=f32)
            + jnp.dot(fc, q_ref[2], preferred_element_type=f32)
            + bout_ref[...])                        # (TB, 128)
    out_ref[...] = slab.astype(out_ref.dtype)


def _const_spec(arr):
    """Whole-array block, same block every grid step (weights / gather constants)."""
    nd = arr.ndim

    def index_map(i):
        return (0,) * nd

    return pl.BlockSpec(tuple(arr.shape), index_map)


_CONST_NAMES = ("s1", "w1", "b1", "s2a", "w2a", "b2a",
                "s2b", "w2b", "b2b", "s2c", "w2c", "b2c",
                "q", "bout")


def generator_forward(packed, src):
    """src: (B, C, L) as in the PyTorch module.  Returns (features (B, 42), hint (B, 64))."""
    B, C, L = src.shape
    cf = packed["w1"].shape[2]                      # 3C = 42
    tb = packed["s1"].shape[1] // L                 # batch elements per grid step (static)
    nblk = -(-B // tb)                              # cdiv(B, tb)
    bp = nblk * tb

    x = jnp.transpose(src, (0, 2, 1))               # (B, L, C): channels on the lane axis
    if bp != B:                                     # pad batch tail to a multiple of TB
        x = jnp.pad(x, ((0, bp - B), (0, 0), (0, 0)))
    x2d = x.reshape(bp * L, C)                      # batch stacked along sublanes

    consts = [packed[n] for n in _CONST_NAMES]
    out = pl.pallas_call(
        _generator_kernel,
        grid=(nblk,),
        in_specs=[pl.BlockSpec((tb * L, C), lambda i: (i, 0))]
                 + [_const_spec(c) for c in consts],
        out_specs=pl.BlockSpec((tb, _SLAB), lambda i: (i, 0)),
        out_shape=jax.ShapeDtypeStruct((bp, _SLAB), jnp.float32),
        compiler_params=pltpu.CompilerParams(
            dimension_semantics=("parallel",)),     # v7x: grid steps split across both TCs
    )(x2d, *consts)

    feats = out[:B, :cf]
    hint = out[:B, cf:cf + _HINT_DIM]
    return feats, hint


# ----------------------------------------------------------------------------
# One-time parameter packing (outside jit): PyTorch layout -> kernel constants.
# ----------------------------------------------------------------------------
def _conv_out_len(l_in, k, stride, pad, dilation):
    return (l_in + 2 * pad - dilation * (k - 1) - 1) // stride + 1


def _gather_layer1(L, L1, tb):
    """Row (t*tb*L1 + b*L1 + j) picks x row (b*L + 2j - 1 + t); out-of-range -> zero row
    (reproduces Conv1d zero padding).  Batch-major rows so layer-2 indexing is b*L1 + l."""
    s = np.zeros((3 * tb * L1, tb * L), np.float32)
    for t in range(3):
        for b in range(tb):
            for j in range(L1):
                l = 2 * j - 1 + t
                if 0 <= l < L:
                    s[t * tb * L1 + b * L1 + j, b * L + l] = 1.0
    return s


def _gather_layer2(L1, l2, k, dil, tb):
    """Position-major rows: (t*l2*tb + j*tb + b) picks h1 row (b*L1 + 2j - 1 + t*dil),
    so MaxPool becomes a max over l2 contiguous (tb, C) row blocks."""
    s = np.zeros((k * l2 * tb, tb * L1), np.float32)
    for t in range(k):
        for j in range(l2):
            l = 2 * j - 1 + t * dil
            if 0 <= l < L1:
                for b in range(tb):
                    s[t * l2 * tb + j * tb + b, b * L1 + l] = 1.0
    return s


def pack_params(params, seq_len, tb=8):
    assert tb % 8 == 0, "tb must be a multiple of 8 (8 for v5e, 16 for v6e/v7x)"
    e1, e2, e3 = params["enc1"], params["enc2"], params["enc3"]
    C = int(np.asarray(e1["w1"]).shape[0])
    L = int(seq_len)
    L1 = _conv_out_len(L, 3, 2, 1, 1)
    l2a = _conv_out_len(L1, 3, 2, 1, 4)
    l2b = _conv_out_len(L1, 5, 2, 1, 2)
    l2c = _conv_out_len(L1, 7, 2, 1, 1)
    # The PyTorch module hard-codes MaxPool kernels (5, 5, 6) and nn.Linear(42, 64):
    assert (l2a, l2b, l2c) == (5, 5, 6), "seq_len must be 32 so each branch pools to length 1"
    assert 3 * C == 42, "adapter nn.Linear(42, 64) requires input_dim == 14"

    def tap(w, t):                                   # (Cout, Cin, K) -> (Cin, Cout) at tap t
        return np.asarray(w, np.float32)[:, :, t].T

    # layer 1 (k=3, s=2, p=1, d=1 on all branches): fuse Cout across branches (C -> 3C).
    w1 = np.stack([np.concatenate([tap(e1["w1"], t), tap(e2["w1"], t), tap(e3["w1"], t)],
                                  axis=1) for t in range(3)])                   # (3, C, 3C)
    b1 = np.concatenate([np.asarray(e1["b1"]), np.asarray(e2["b1"]),
                         np.asarray(e3["b1"])]).astype(np.float32)[None, :]     # (1, 3C)

    # layer 2: per-branch weights, zero-padded to the fused 3C contraction.
    def w2_ext(w, branch):
        k = int(np.asarray(w).shape[2])
        out = np.zeros((k, 3 * C, C), np.float32)
        for t in range(k):
            out[t, branch * C:(branch + 1) * C, :] = tap(w, t)
        return out

    w2a, w2b, w2c = w2_ext(e1["w2"], 0), w2_ext(e2["w2"], 1), w2_ext(e3["w2"], 2)
    b2a = np.asarray(e1["b2"], np.float32)[None, :]
    b2b = np.asarray(e2["b2"], np.float32)[None, :]
    b2c = np.asarray(e3["b2"], np.float32)[None, :]

    # block-diagonal im2col gathers (pure geometry), all taps stacked on rows.
    s1 = _gather_layer1(L, L1, tb)
    s2a = _gather_layer2(L1, l2a, 3, 4, tb)
    s2b = _gather_layer2(L1, l2b, 5, 2, tb)
    s2c = _gather_layer2(L1, l2c, 7, 1, tb)

    # Fused epilogue constant: torch.cat(dim=2)+Flatten interleave (identity into lanes
    # 3c+i) AND the nn.Linear(42, 64) adapter (into lanes [42, 106)) in one matrix/branch.
    wad = np.asarray(params["adapter"]["w"], np.float32)       # (64, 42) torch layout
    bad = np.asarray(params["adapter"]["b"], np.float32)       # (64,)
    q = np.zeros((3, C, _SLAB), np.float32)
    for i in range(3):
        for c in range(C):
            q[i, c, 3 * c + i] = 1.0
            q[i, c, 3 * C:3 * C + _HINT_DIM] = wad[:, 3 * c + i]
    bout = np.zeros((1, _SLAB), np.float32)
    bout[0, 3 * C:3 * C + _HINT_DIM] = bad

    bf16_consts = {"s1": s1, "w1": w1, "s2a": s2a, "w2a": w2a, "s2b": s2b, "w2b": w2b,
                   "s2c": s2c, "w2c": w2c, "q": q}
    f32_consts = {"b1": b1, "b2a": b2a, "b2b": b2b, "b2c": b2c, "bout": bout}
    packed = {k: jnp.asarray(v, jnp.bfloat16) for k, v in bf16_consts.items()}
    packed.update({k: jnp.asarray(v, jnp.float32) for k, v in f32_consts.items()})
    return packed


# ----------------------------------------------------------------------------
# Deterministic parameter init (PyTorch-default-style uniform bounds, torch layout)
# ----------------------------------------------------------------------------
def init_params(key, input_dim):
    def conv_p(k, cout, cin, ksz):
        k1, k2 = jax.random.split(k)
        bound = 1.0 / (cin * ksz) ** 0.5
        w = jax.random.uniform(k1, (cout, cin, ksz), jnp.float32, -bound, bound)
        b = jax.random.uniform(k2, (cout,), jnp.float32, -bound, bound)
        return w, b

    keys = jax.random.split(key, 7)
    C = input_dim
    p = {}
    w11, b11 = conv_p(keys[0], C, C, 3)
    w12, b12 = conv_p(keys[1], C, C, 3)
    p["enc1"] = {"w1": w11, "b1": b11, "w2": w12, "b2": b12}
    w21, b21 = conv_p(keys[2], C, C, 3)
    w22, b22 = conv_p(keys[3], C, C, 5)
    p["enc2"] = {"w1": w21, "b1": b21, "w2": w22, "b2": b22}
    w31, b31 = conv_p(keys[4], C, C, 3)
    w32, b32 = conv_p(keys[5], C, C, 7)
    p["enc3"] = {"w1": w31, "b1": b31, "w2": w32, "b2": b32}
    ka, kb = jax.random.split(keys[6])
    bound = 1.0 / 42.0 ** 0.5
    p["adapter"] = {
        "w": jax.random.uniform(ka, (64, 42), jnp.float32, -bound, bound),  # nn.Linear(42, 64)
        "b": jax.random.uniform(kb, (64,), jnp.float32, -bound, bound),
    }
    return p


# ----------------------------------------------------------------------------
# Pure-XLA reference of the PyTorch module (correctness oracle only)
# ----------------------------------------------------------------------------
def _reference_forward(params, src):
    def conv1d(x, w, b, stride, pad, dil):
        y = lax.conv_general_dilated(x, w, window_strides=(stride,),
                                     padding=[(pad, pad)], rhs_dilation=(dil,),
                                     dimension_numbers=("NCH", "OIH", "NCH"))
        return y + b[None, :, None]

    def leaky(v):
        return jnp.where(v >= 0, v, _NEG_SLOPE * v)

    def encoder(x, p, dil2, pool):
        h = leaky(conv1d(x, p["w1"], p["b1"], 2, 1, 1))
        h = leaky(conv1d(h, p["w2"], p["b2"], 2, 1, dil2))
        B, C, Lh = h.shape
        lp = Lh // pool
        return jnp.max(h[:, :, :lp * pool].reshape(B, C, lp, pool), axis=3)

    f1 = encoder(src, params["enc1"], 4, 5)
    f2 = encoder(src, params["enc2"], 2, 5)
    f3 = encoder(src, params["enc3"], 1, 6)
    feats = jnp.concatenate([f1, f2, f3], axis=2).reshape(src.shape[0], -1)
    hint = feats @ params["adapter"]["w"].T + params["adapter"]["b"]
    return feats, hint


if __name__ == "__main__":
    # input_dim=14, L=32 are forced by the module (pools 5/5/6 and nn.Linear(42, 64)).
    # B=10 with TB=8 -> batch padded to 16, grid of 2 (both v7x TCs busy, tail exercised).
    input_dim, L = 14, 32
    B, TB = 10, 8
    key = jax.random.PRNGKey(0)
    pkey, xkey = jax.random.split(key)
    params = init_params(pkey, input_dim)
    packed = pack_params(params, seq_len=L, tb=TB)   # one-time weight packing (outside jit)
    src = jax.random.normal(xkey, (B, input_dim, L), jnp.float32)

    fwd = jax.jit(generator_forward)
    features, hint = fwd(packed, src)
    jax.block_until_ready((features, hint))

    assert features.shape == (B, 42), features.shape
    assert hint.shape == (B, 64), hint.shape

    # Correctness vs. a pure-XLA f32 reference of the PyTorch module (tolerance covers
    # the bf16 MXU passes; structural bugs would be O(1) off).
    ref_f, ref_h = jax.jit(_reference_forward)(params, src)
    err_f = float(jnp.max(jnp.abs(features - ref_f)))
    err_h = float(jnp.max(jnp.abs(hint - ref_h)))
    assert err_f < 5e-2, f"features max err {err_f}"
    assert err_h < 5e-2, f"hint max err {err_h}"
    assert bool(jnp.all(jnp.isfinite(features))) and bool(jnp.all(jnp.isfinite(hint)))
    print("KERNEL_OK")
</pallas_src>

<mosaic_0001>
module attributes {stable_mosaic.version = 11 : i64} {
  func.func @_generator_kernel(%arg0: i32, %arg1: memref<256x14xf32, #tpu.memory_space<vmem>>, %arg2: memref<384x256xbf16, #tpu.memory_space<vmem>>, %arg3: memref<3x14x42xbf16, #tpu.memory_space<vmem>>, %arg4: memref<1x42xf32, #tpu.memory_space<vmem>>, %arg5: memref<120x128xbf16, #tpu.memory_space<vmem>>, %arg6: memref<3x42x14xbf16, #tpu.memory_space<vmem>>, %arg7: memref<1x14xf32, #tpu.memory_space<vmem>>, %arg8: memref<200x128xbf16, #tpu.memory_space<vmem>>, %arg9: memref<5x42x14xbf16, #tpu.memory_space<vmem>>, %arg10: memref<1x14xf32, #tpu.memory_space<vmem>>, %arg11: memref<336x128xbf16, #tpu.memory_space<vmem>>, %arg12: memref<7x42x14xbf16, #tpu.memory_space<vmem>>, %arg13: memref<1x14xf32, #tpu.memory_space<vmem>>, %arg14: memref<3x14x128xbf16, #tpu.memory_space<vmem>>, %arg15: memref<1x128xf32, #tpu.memory_space<vmem>>, %arg16: memref<8x128xf32, #tpu.memory_space<vmem>>) attributes {dimension_semantics = [#tpu.dimension_semantics<parallel>], iteration_bounds = array<i64: 2>, scalar_prefetch = 0 : i64, scratch_operands = 0 : i64, tpu.core_type = #tpu.core_type<tc>, window_params = [{transform_indices = @transform_0, window_bounds = array<i64: 256, 14>}, {pipeline_mode = #tpu.pipeline_mode<synchronous>, transform_indices = @transform_1, window_bounds = array<i64: 384, 256>}, {pipeline_mode = #tpu.pipeline_mode<synchronous>, transform_indices = @transform_2, window_bounds = array<i64: 3, 14, 42>}, {pipeline_mode = #tpu.pipeline_mode<synchronous>, transform_indices = @transform_3, window_bounds = array<i64: 1, 42>}, {pipeline_mode = #tpu.pipeline_mode<synchronous>, transform_indices = @transform_4, window_bounds = array<i64: 120, 128>}, {pipeline_mode = #tpu.pipeline_mode<synchronous>, transform_indices = @transform_5, window_bounds = array<i64: 3, 42, 14>}, {pipeline_mode = #tpu.pipeline_mode<synchronous>, transform_indices = @transform_6, window_bounds = array<i64: 1, 14>}, {pipeline_mode = #tpu.pipeline_mode<synchronous>, transform_indices = @transform_7, window_bounds = array<i64: 200, 128>}, {pipeline_mode = #tpu.pipeline_mode<synchronous>, transform_indices = @transform_8, window_bounds = array<i64: 5, 42, 14>}, {pipeline_mode = #tpu.pipeline_mode<synchronous>, transform_indices = @transform_9, window_bounds = array<i64: 1, 14>}, {pipeline_mode = #tpu.pipeline_mode<synchronous>, transform_indices = @transform_10, window_bounds = array<i64: 336, 128>}, {pipeline_mode = #tpu.pipeline_mode<synchronous>, transform_indices = @transform_11, window_bounds = array<i64: 7, 42, 14>}, {pipeline_mode = #tpu.pipeline_mode<synchronous>, transform_indices = @transform_12, window_bounds = array<i64: 1, 14>}, {pipeline_mode = #tpu.pipeline_mode<synchronous>, transform_indices = @transform_13, window_bounds = array<i64: 3, 14, 128>}, {pipeline_mode = #tpu.pipeline_mode<synchronous>, transform_indices = @transform_14, window_bounds = array<i64: 1, 128>}, {transform_indices = @transform_15, window_bounds = array<i64: 8, 128>}]} {
    %c0 = arith.constant 0 : index
    %c0_0 = arith.constant 0 : index
    %0 = vector.load %arg1[%c0, %c0_0] : memref<256x14xf32, #tpu.memory_space<vmem>>, vector<256x14xf32>
    %1 = arith.truncf %0 : vector<256x14xf32> to vector<256x14xbf16>
    %c0_1 = arith.constant 0 : index
    %c0_2 = arith.constant 0 : index
    %2 = vector.load %arg2[%c0_1, %c0_2] : memref<384x256xbf16, #tpu.memory_space<vmem>>, vector<384x256xbf16>
    %cst = arith.constant dense<0.000000e+00> : vector<384x14xf32>
    %3 = tpu.matmul %2, %1, %cst {dimension_numbers = #tpu.dot_dimension_numbers<[1], [0], [0], [1], [0, 0, 1, 1], [], []>} : vector<384x256xbf16>, vector<256x14xbf16>, vector<384x14xf32> -> vector<384x14xf32>
    %4 = arith.truncf %3 : vector<384x14xf32> to vector<384x14xbf16>
    %5 = vector.extract_strided_slice %4 {offsets = [0, 0], sizes = [128, 14], strides = [1, 1]} : vector<384x14xbf16> to vector<128x14xbf16>
    %c0_3 = arith.constant 0 : index
    %c0_4 = arith.constant 0 : index
    %c0_5 = arith.constant 0 : index
    %6 = vector.load %arg3[%c0_3, %c0_4, %c0_5] : memref<3x14x42xbf16, #tpu.memory_space<vmem>>, vector<1x14x42xbf16>
    %7 = vector.shape_cast %6 : vector<1x14x42xbf16> to vector<14x42xbf16>
    %cst_6 = arith.constant dense<0.000000e+00> : vector<128x42xf32>
    %8 = tpu.matmul %5, %7, %cst_6 {dimension_numbers = #tpu.dot_dimension_numbers<[1], [0], [0], [1], [0, 0, 1, 1], [], []>} : vector<128x14xbf16>, vector<14x42xbf16>, vector<128x42xf32> -> vector<128x42xf32>
    %9 = vector.extract_strided_slice %4 {offsets = [128, 0], sizes = [128, 14], strides = [1, 1]} : vector<384x14xbf16> to vector<128x14xbf16>
    %c1 = arith.constant 1 : index
    %c0_7 = arith.constant 0 : index
    %c0_8 = arith.constant 0 : index
    %10 = vector.load %arg3[%c1, %c0_7, %c0_8] : memref<3x14x42xbf16, #tpu.memory_space<vmem>>, vector<1x14x42xbf16>
    %11 = vector.shape_cast %10 : vector<1x14x42xbf16> to vector<14x42xbf16>
    %cst_9 = arith.constant dense<0.000000e+00> : vector<128x42xf32>
    %12 = tpu.matmul %9, %11, %cst_9 {dimension_numbers = #tpu.dot_dimension_numbers<[1], [0], [0], [1], [0, 0, 1, 1], [], []>} : vector<128x14xbf16>, vector<14x42xbf16>, vector<128x42xf32> -> vector<128x42xf32>
    %13 = arith.addf %8, %12 : vector<128x42xf32>
    %14 = vector.extract_strided_slice %4 {offsets = [256, 0], sizes = [128, 14], strides = [1, 1]} : vector<384x14xbf16> to vector<128x14xbf16>
    %c2 = arith.constant 2 : index
    %c0_10 = arith.constant 0 : index
    %c0_11 = arith.constant 0 : index
    %15 = vector.load %arg3[%c2, %c0_10, %c0_11] : memref<3x14x42xbf16, #tpu.memory_space<vmem>>, vector<1x14x42xbf16>
    %16 = vector.shape_cast %15 : vector<1x14x42xbf16> to vector<14x42xbf16>
    %cst_12 = arith.constant dense<0.000000e+00> : vector<128x42xf32>
    %17 = tpu.matmul %14, %16, %cst_12 {dimension_numbers = #tpu.dot_dimension_numbers<[1], [0], [0], [1], [0, 0, 1, 1], [], []>} : vector<128x14xbf16>, vector<14x42xbf16>, vector<128x42xf32> -> vector<128x42xf32>
    %18 = arith.addf %13, %17 : vector<128x42xf32>
    %c0_13 = arith.constant 0 : index
    %c0_14 = arith.constant 0 : index
    %19 = vector.load %arg4[%c0_13, %c0_14] : memref<1x42xf32, #tpu.memory_space<vmem>>, vector<1x42xf32>
    %20 = vector.broadcast %19 : vector<1x42xf32> to vector<128x42xf32>
    %21 = arith.addf %18, %20 : vector<128x42xf32>
    %cst_15 = arith.constant 0.00999999977 : f32
    %22 = vector.broadcast %cst_15 : f32 to vector<128x42xf32>
    %23 = arith.mulf %22, %21 : vector<128x42xf32>
    %24 = arith.maximumf %21, %23 : vector<128x42xf32>
    %25 = arith.truncf %24 : vector<128x42xf32> to vector<128x42xbf16>
    %c0_16 = arith.constant 0 : index
    %c0_17 = arith.constant 0 : index
    %26 = vector.load %arg5[%c0_16, %c0_17] : memref<120x128xbf16, #tpu.memory_space<vmem>>, vector<120x128xbf16>
    %cst_18 = arith.constant dense<0.000000e+00> : vector<120x42xf32>
    %27 = tpu.matmul %26, %25, %cst_18 {dimension_numbers = #tpu.dot_dimension_numbers<[1], [0], [0], [1], [0, 0, 1, 1], [], []>} : vector<120x128xbf16>, vector<128x42xbf16>, vector<120x42xf32> -> vector<120x42xf32>
    %28 = arith.truncf %27 : vector<120x42xf32> to vector<120x42xbf16>
    %29 = vector.extract_strided_slice %28 {offsets = [0, 0], sizes = [40, 42], strides = [1, 1]} : vector<120x42xbf16> to vector<40x42xbf16>
    %c0_19 = arith.constant 0 : index
    %c0_20 = arith.constant 0 : index
    %c0_21 = arith.constant 0 : index
    %30 = vector.load %arg6[%c0_19, %c0_20, %c0_21] : memref<3x42x14xbf16, #tpu.memory_space<vmem>>, vector<1x42x14xbf16>
    %31 = vector.shape_cast %30 : vector<1x42x14xbf16> to vector<42x14xbf16>
    %cst_22 = arith.constant dense<0.000000e+00> : vector<40x14xf32>
    %32 = tpu.matmul %29, %31, %cst_22 {dimension_numbers = #tpu.dot_dimension_numbers<[1], [0], [0], [1], [0, 0, 1, 1], [], []>} : vector<40x42xbf16>, vector<42x14xbf16>, vector<40x14xf32> -> vector<40x14xf32>
    %33 = vector.extract_strided_slice %28 {offsets = [40, 0], sizes = [40, 42], strides = [1, 1]} : vector<120x42xbf16> to vector<40x42xbf16>
    %c1_23 = arith.constant 1 : index
    %c0_24 = arith.constant 0 : index
    %c0_25 = arith.constant 0 : index
    %34 = vector.load %arg6[%c1_23, %c0_24, %c0_25] : memref<3x42x14xbf16, #tpu.memory_space<vmem>>, vector<1x42x14xbf16>
    %35 = vector.shape_cast %34 : vector<1x42x14xbf16> to vector<42x14xbf16>
    %cst_26 = arith.constant dense<0.000000e+00> : vector<40x14xf32>
    %36 = tpu.matmul %33, %35, %cst_26 {dimension_numbers = #tpu.dot_dimension_numbers<[1], [0], [0], [1], [0, 0, 1, 1], [], []>} : vector<40x42xbf16>, vector<42x14xbf16>, vector<40x14xf32> -> vector<40x14xf32>
    %37 = arith.addf %32, %36 : vector<40x14xf32>
    %38 = vector.extract_strided_slice %28 {offsets = [80, 0], sizes = [40, 42], strides = [1, 1]} : vector<120x42xbf16> to vector<40x42xbf16>
    %c2_27 = arith.constant 2 : index
    %c0_28 = arith.constant 0 : index
    %c0_29 = arith.constant 0 : index
    %39 = vector.load %arg6[%c2_27, %c0_28, %c0_29] : memref<3x42x14xbf16, #tpu.memory_space<vmem>>, vector<1x42x14xbf16>
    %40 = vector.shape_cast %39 : vector<1x42x14xbf16> to vector<42x14xbf16>
    %cst_30 = arith.constant dense<0.000000e+00> : vector<40x14xf32>
    %41 = tpu.matmul %38, %40, %cst_30 {dimension_numbers = #tpu.dot_dimension_numbers<[1], [0], [0], [1], [0, 0, 1, 1], [], []>} : vector<40x42xbf16>, vector<42x14xbf16>, vector<40x14xf32> -> vector<40x14xf32>
    %42 = arith.addf %37, %41 : vector<40x14xf32>
    %c0_31 = arith.constant 0 : index
    %c0_32 = arith.constant 0 : index
    %43 = vector.load %arg7[%c0_31, %c0_32] : memref<1x14xf32, #tpu.memory_space<vmem>>, vector<1x14xf32>
    %44 = vector.broadcast %43 : vector<1x14xf32> to vector<40x14xf32>
    %45 = arith.addf %42, %44 : vector<40x14xf32>
    %cst_33 = arith.constant 0.00999999977 : f32
    %46 = vector.broadcast %cst_33 : f32 to vector<40x14xf32>
    %47 = arith.mulf %46, %45 : vector<40x14xf32>
    %48 = arith.maximumf %45, %47 : vector<40x14xf32>
    %49 = vector.extract_strided_slice %48 {offsets = [0, 0], sizes = [8, 14], strides = [1, 1]} : vector<40x14xf32> to vector<8x14xf32>
    %50 = vector.extract_strided_slice %48 {offsets = [8, 0], sizes = [8, 14], strides = [1, 1]} : vector<40x14xf32> to vector<8x14xf32>
    %51 = arith.maximumf %49, %50 : vector<8x14xf32>
    %52 = vector.extract_strided_slice %48 {offsets = [16, 0], sizes = [8, 14], strides = [1, 1]} : vector<40x14xf32> to vector<8x14xf32>
    %53 = arith.maximumf %51, %52 : vector<8x14xf32>
    %54 = vector.extract_strided_slice %48 {offsets = [24, 0], sizes = [8, 14], strides = [1, 1]} : vector<40x14xf32> to vector<8x14xf32>
    %55 = arith.maximumf %53, %54 : vector<8x14xf32>
    %56 = vector.extract_strided_slice %48 {offsets = [32, 0], sizes = [8, 14], strides = [1, 1]} : vector<40x14xf32> to vector<8x14xf32>
    %57 = arith.maximumf %55, %56 : vector<8x14xf32>
    %58 = arith.truncf %57 : vector<8x14xf32> to vector<8x14xbf16>
    %c0_34 = arith.constant 0 : index
    %c0_35 = arith.constant 0 : index
    %59 = vector.load %arg8[%c0_34, %c0_35] : memref<200x128xbf16, #tpu.memory_space<vmem>>, vector<200x128xbf16>
    %cst_36 = arith.constant dense<0.000000e+00> : vector<200x42xf32>
    %60 = tpu.matmul %59, %25, %cst_36 {dimension_numbers = #tpu.dot_dimension_numbers<[1], [0], [0], [1], [0, 0, 1, 1], [], []>} : vector<200x128xbf16>, vector<128x42xbf16>, vector<200x42xf32> -> vector<200x42xf32>
    %61 = arith.truncf %60 : vector<200x42xf32> to vector<200x42xbf16>
    %62 = vector.extract_strided_slice %61 {offsets = [0, 0], sizes = [40, 42], strides = [1, 1]} : vector<200x42xbf16> to vector<40x42xbf16>
    %c0_37 = arith.constant 0 : index
    %c0_38 = arith.constant 0 : index
    %c0_39 = arith.constant 0 : index
    %63 = vector.load %arg9[%c0_37, %c0_38, %c0_39] : memref<5x42x14xbf16, #tpu.memory_space<vmem>>, vector<1x42x14xbf16>
    %64 = vector.shape_cast %63 : vector<1x42x14xbf16> to vector<42x14xbf16>
    %cst_40 = arith.constant dense<0.000000e+00> : vector<40x14xf32>
    %65 = tpu.matmul %62, %64, %cst_40 {dimension_numbers = #tpu.dot_dimension_numbers<[1], [0], [0], [1], [0, 0, 1, 1], [], []>} : vector<40x42xbf16>, vector<42x14xbf16>, vector<40x14xf32> -> vector<40x14xf32>
    %66 = vector.extract_strided_slice %61 {offsets = [40, 0], sizes = [40, 42], strides = [1, 1]} : vector<200x42xbf16> to vector<40x42xbf16>
    %c1_41 = arith.constant 1 : index
    %c0_42 = arith.constant 0 : index
    %c0_43 = arith.constant 0 : index
    %67 = vector.load %arg9[%c1_41, %c0_42, %c0_43] : memref<5x42x14xbf16, #tpu.memory_space<vmem>>, vector<1x42x14xbf16>
    %68 = vector.shape_cast %67 : vector<1x42x14xbf16> to vector<42x14xbf16>
    %cst_44 = arith.constant dense<0.000000e+00> : vector<40x14xf32>
    %69 = tpu.matmul %66, %68, %cst_44 {dimension_numbers = #tpu.dot_dimension_numbers<[1], [0], [0], [1], [0, 0, 1, 1], [], []>} : vector<40x42xbf16>, vector<42x14xbf16>, vector<40x14xf32> -> vector<40x14xf32>
    %70 = arith.addf %65, %69 : vector<40x14xf32>
    %71 = vector.extract_strided_slice %61 {offsets = [80, 0], sizes = [40, 42], strides = [1, 1]} : vector<200x42xbf16> to vector<40x42xbf16>
    %c2_45 = arith.constant 2 : index
    %c0_46 = arith.constant 0 : index
    %c0_47 = arith.constant 0 : index
    %72 = vector.load %arg9[%c2_45, %c0_46, %c0_47] : memref<5x42x14xbf16, #tpu.memory_space<vmem>>, vector<1x42x14xbf16>
    %73 = vector.shape_cast %72 : vector<1x42x14xbf16> to vector<42x14xbf16>
    %cst_48 = arith.constant dense<0.000000e+00> : vector<40x14xf32>
    %74 = tpu.matmul %71, %73, %cst_48 {dimension_numbers = #tpu.dot_dimension_numbers<[1], [0], [0], [1], [0, 0, 1, 1], [], []>} : vector<40x42xbf16>, vector<42x14xbf16>, vector<40x14xf32> -> vector<40x14xf32>
    %75 = arith.addf %70, %74 : vector<40x14xf32>
    %76 = vector.extract_strided_slice %61 {offsets = [120, 0], sizes = [40, 42], strides = [1, 1]} : vector<200x42xbf16> to vector<40x42xbf16>
    %c3 = arith.constant 3 : index
    %c0_49 = arith.constant 0 : index
    %c0_50 = arith.constant 0 : index
    %77 = vector.load %arg9[%c3, %c0_49, %c0_50] : memref<5x42x14xbf16, #tpu.memory_space<vmem>>, vector<1x42x14xbf16>
    %78 = vector.shape_cast %77 : vector<1x42x14xbf16> to vector<42x14xbf16>
    %cst_51 = arith.constant dense<0.000000e+00> : vector<40x14xf32>
    %79 = tpu.matmul %76, %78, %cst_51 {dimension_numbers = #tpu.dot_dimension_numbers<[1], [0], [0], [1], [0, 0, 1, 1], [], []>} : vector<40x42xbf16>, vector<42x14xbf16>, vector<40x14xf32> -> vector<40x14xf32>
    %80 = arith.addf %75, %79 : vector<40x14xf32>
    %81 = vector.extract_strided_slice %61 {offsets = [160, 0], sizes = [40, 42], strides = [1, 1]} : vector<200x42xbf16> to vector<40x42xbf16>
    %c4 = arith.constant 4 : index
    %c0_52 = arith.constant 0 : index
    %c0_53 = arith.constant 0 : index
    %82 = vector.load %arg9[%c4, %c0_52, %c0_53] : memref<5x42x14xbf16, #tpu.memory_space<vmem>>, vector<1x42x14xbf16>
    %83 = vector.shape_cast %82 : vector<1x42x14xbf16> to vector<42x14xbf16>
    %cst_54 = arith.constant dense<0.000000e+00> : vector<40x14xf32>
    %84 = tpu.matmul %81, %83, %cst_54 {dimension_numbers = #tpu.dot_dimension_numbers<[1], [0], [0], [1], [0, 0, 1, 1], [], []>} : vector<40x42xbf16>, vector<42x14xbf16>, vector<40x14xf32> -> vector<40x14xf32>
    %85 = arith.addf %80, %84 : vector<40x14xf32>
    %c0_55 = arith.constant 0 : index
    %c0_56 = arith.constant 0 : index
    %86 = vector.load %arg10[%c0_55, %c0_56] : memref<1x14xf32, #tpu.memory_space<vmem>>, vector<1x14xf32>
    %87 = vector.broadcast %86 : vector<1x14xf32> to vector<40x14xf32>
    %88 = arith.addf %85, %87 : vector<40x14xf32>
    %cst_57 = arith.constant 0.00999999977 : f32
    %89 = vector.broadcast %cst_57 : f32 to vector<40x14xf32>
    %90 = arith.mulf %89, %88 : vector<40x14xf32>
    %91 = arith.maximumf %88, %90 : vector<40x14xf32>
    %92 = vector.extract_strided_slice %91 {offsets = [0, 0], sizes = [8, 14], strides = [1, 1]} : vector<40x14xf32> to vector<8x14xf32>
    %93 = vector.extract_strided_slice %91 {offsets = [8, 0], sizes = [8, 14], strides = [1, 1]} : vector<40x14xf32> to vector<8x14xf32>
    %94 = arith.maximumf %92, %93 : vector<8x14xf32>
    %95 = vector.extract_strided_slice %91 {offsets = [16, 0], sizes = [8, 14], strides = [1, 1]} : vector<40x14xf32> to vector<8x14xf32>
    %96 = arith.maximumf %94, %95 : vector<8x14xf32>
    %97 = vector.extract_strided_slice %91 {offsets = [24, 0], sizes = [8, 14], strides = [1, 1]} : vector<40x14xf32> to vector<8x14xf32>
    %98 = arith.maximumf %96, %97 : vector<8x14xf32>
    %99 = vector.extract_strided_slice %91 {offsets = [32, 0], sizes = [8, 14], strides = [1, 1]} : vector<40x14xf32> to vector<8x14xf32>
    %100 = arith.maximumf %98, %99 : vector<8x14xf32>
    %101 = arith.truncf %100 : vector<8x14xf32> to vector<8x14xbf16>
    %c0_58 = arith.constant 0 : index
    %c0_59 = arith.constant 0 : index
    %102 = vector.load %arg11[%c0_58, %c0_59] : memref<336x128xbf16, #tpu.memory_space<vmem>>, vector<336x128xbf16>
    %cst_60 = arith.constant dense<0.000000e+00> : vector<336x42xf32>
    %103 = tpu.matmul %102, %25, %cst_60 {dimension_numbers = #tpu.dot_dimension_numbers<[1], [0], [0], [1], [0, 0, 1, 1], [], []>} : vector<336x128xbf16>, vector<128x42xbf16>, vector<336x42xf32> -> vector<336x42xf32>
    %104 = arith.truncf %103 : vector<336x42xf32> to vector<336x42xbf16>
    %105 = vector.extract_strided_slice %104 {offsets = [0, 0], sizes = [48, 42], strides = [1, 1]} : vector<336x42xbf16> to vector<48x42xbf16>
    %c0_61 = arith.constant 0 : index
    %c0_62 = arith.constant 0 : index
    %c0_63 = arith.constant 0 : index
    %106 = vector.load %arg12[%c0_61, %c0_62, %c0_63] : memref<7x42x14xbf16, #tpu.memory_space<vmem>>, vector<1x42x14xbf16>
    %107 = vector.shape_cast %106 : vector<1x42x14xbf16> to vector<42x14xbf16>
    %cst_64 = arith.constant dense<0.000000e+00> : vector<48x14xf32>
    %108 = tpu.matmul %105, %107, %cst_64 {dimension_numbers = #tpu.dot_dimension_numbers<[1], [0], [0], [1], [0, 0, 1, 1], [], []>} : vector<48x42xbf16>, vector<42x14xbf16>, vector<48x14xf32> -> vector<48x14xf32>
    %109 = vector.extract_strided_slice %104 {offsets = [48, 0], sizes = [48, 42], strides = [1, 1]} : vector<336x42xbf16> to vector<48x42xbf16>
    %c1_65 = arith.constant 1 : index
    %c0_66 = arith.constant 0 : index
    %c0_67 = arith.constant 0 : index
    %110 = vector.load %arg12[%c1_65, %c0_66, %c0_67] : memref<7x42x14xbf16, #tpu.memory_space<vmem>>, vector<1x42x14xbf16>
    %111 = vector.shape_cast %110 : vector<1x42x14xbf16> to vector<42x14xbf16>
    %cst_68 = arith.constant dense<0.000000e+00> : vector<48x14xf32>
    %112 = tpu.matmul %109, %111, %cst_68 {dimension_numbers = #tpu.dot_dimension_numbers<[1], [0], [0], [1], [0, 0, 1, 1], [], []>} : vector<48x42xbf16>, vector<42x14xbf16>, vector<48x14xf32> -> vector<48x14xf32>
    %113 = arith.addf %108, %112 : vector<48x14xf32>
    %114 = vector.extract_strided_slice %104 {offsets = [96, 0], sizes = [48, 42], strides = [1, 1]} : vector<336x42xbf16> to vector<48x42xbf16>
    %c2_69 = arith.constant 2 : index
    %c0_70 = arith.constant 0 : index
    %c0_71 = arith.constant 0 : index
    %115 = vector.load %arg12[%c2_69, %c0_70, %c0_71] : memref<7x42x14xbf16, #tpu.memory_space<vmem>>, vector<1x42x14xbf16>
    %116 = vector.shape_cast %115 : vector<1x42x14xbf16> to vector<42x14xbf16>
    %cst_72 = arith.constant dense<0.000000e+00> : vector<48x14xf32>
    %117 = tpu.matmul %114, %116, %cst_72 {dimension_numbers = #tpu.dot_dimension_numbers<[1], [0], [0], [1], [0, 0, 1, 1], [], []>} : vector<48x42xbf16>, vector<42x14xbf16>, vector<48x14xf32> -> vector<48x14xf32>
    %118 = arith.addf %113, %117 : vector<48x14xf32>
    %119 = vector.extract_strided_slice %104 {offsets = [144, 0], sizes = [48, 42], strides = [1, 1]} : vector<336x42xbf16> to vector<48x42xbf16>
    %c3_73 = arith.constant 3 : index
    %c0_74 = arith.constant 0 : index
    %c0_75 = arith.constant 0 : index
    %120 = vector.load %arg12[%c3_73, %c0_74, %c0_75] : memref<7x42x14xbf16, #tpu.memory_space<vmem>>, vector<1x42x14xbf16>
    %121 = vector.shape_cast %120 : vector<1x42x14xbf16> to vector<42x14xbf16>
    %cst_76 = arith.constant dense<0.000000e+00> : vector<48x14xf32>
    %122 = tpu.matmul %119, %121, %cst_76 {dimension_numbers = #tpu.dot_dimension_numbers<[1], [0], [0], [1], [0, 0, 1, 1], [], []>} : vector<48x42xbf16>, vector<42x14xbf16>, vector<48x14xf32> -> vector<48x14xf32>
    %123 = arith.addf %118, %122 : vector<48x14xf32>
    %124 = vector.extract_strided_slice %104 {offsets = [192, 0], sizes = [48, 42], strides = [1, 1]} : vector<336x42xbf16> to vector<48x42xbf16>
    %c4_77 = arith.constant 4 : index
    %c0_78 = arith.constant 0 : index
    %c0_79 = arith.constant 0 : index
    %125 = vector.load %arg12[%c4_77, %c0_78, %c0_79] : memref<7x42x14xbf16, #tpu.memory_space<vmem>>, vector<1x42x14xbf16>
    %126 = vector.shape_cast %125 : vector<1x42x14xbf16> to vector<42x14xbf16>
    %cst_80 = arith.constant dense<0.000000e+00> : vector<48x14xf32>
    %127 = tpu.matmul %124, %126, %cst_80 {dimension_numbers = #tpu.dot_dimension_numbers<[1], [0], [0], [1], [0, 0, 1, 1], [], []>} : vector<48x42xbf16>, vector<42x14xbf16>, vector<48x14xf32> -> vector<48x14xf32>
    %128 = arith.addf %123, %127 : vector<48x14xf32>
    %129 = vector.extract_strided_slice %104 {offsets = [240, 0], sizes = [48, 42], strides = [1, 1]} : vector<336x42xbf16> to vector<48x42xbf16>
    %c5 = arith.constant 5 : index
    %c0_81 = arith.constant 0 : index
    %c0_82 = arith.constant 0 : index
    %130 = vector.load %arg12[%c5, %c0_81, %c0_82] : memref<7x42x14xbf16, #tpu.memory_space<vmem>>, vector<1x42x14xbf16>
    %131 = vector.shape_cast %130 : vector<1x42x14xbf16> to vector<42x14xbf16>
    %cst_83 = arith.constant dense<0.000000e+00> : vector<48x14xf32>
    %132 = tpu.matmul %129, %131, %cst_83 {dimension_numbers = #tpu.dot_dimension_numbers<[1], [0], [0], [1], [0, 0, 1, 1], [], []>} : vector<48x42xbf16>, vector<42x14xbf16>, vector<48x14xf32> -> vector<48x14xf32>
    %133 = arith.addf %128, %132 : vector<48x14xf32>
    %134 = vector.extract_strided_slice %104 {offsets = [288, 0], sizes = [48, 42], strides = [1, 1]} : vector<336x42xbf16> to vector<48x42xbf16>
    %c6 = arith.constant 6 : index
    %c0_84 = arith.constant 0 : index
    %c0_85 = arith.constant 0 : index
    %135 = vector.load %arg12[%c6, %c0_84, %c0_85] : memref<7x42x14xbf16, #tpu.memory_space<vmem>>, vector<1x42x14xbf16>
    %136 = vector.shape_cast %135 : vector<1x42x14xbf16> to vector<42x14xbf16>
    %cst_86 = arith.constant dense<0.000000e+00> : vector<48x14xf32>
    %137 = tpu.matmul %134, %136, %cst_86 {dimension_numbers = #tpu.dot_dimension_numbers<[1], [0], [0], [1], [0, 0, 1, 1], [], []>} : vector<48x42xbf16>, vector<42x14xbf16>, vector<48x14xf32> -> vector<48x14xf32>
    %138 = arith.addf %133, %137 : vector<48x14xf32>
    %c0_87 = arith.constant 0 : index
    %c0_88 = arith.constant 0 : index
    %139 = vector.load %arg13[%c0_87, %c0_88] : memref<1x14xf32, #tpu.memory_space<vmem>>, vector<1x14xf32>
    %140 = vector.broadcast %139 : vector<1x14xf32> to vector<48x14xf32>
    %141 = arith.addf %138, %140 : vector<48x14xf32>
    %cst_89 = arith.constant 0.00999999977 : f32
    %142 = vector.broadcast %cst_89 : f32 to vector<48x14xf32>
    %143 = arith.mulf %142, %141 : vector<48x14xf32>
    %144 = arith.maximumf %141, %143 : vector<48x14xf32>
    %145 = vector.extract_strided_slice %144 {offsets = [0, 0], sizes = [8, 14], strides = [1, 1]} : vector<48x14xf32> to vector<8x14xf32>
    %146 = vector.extract_strided_slice %144 {offsets = [8, 0], sizes = [8, 14], strides = [1, 1]} : vector<48x14xf32> to vector<8x14xf32>
    %147 = arith.maximumf %145, %146 : vector<8x14xf32>
    %148 = vector.extract_strided_slice %144 {offsets = [16, 0], sizes = [8, 14], strides = [1, 1]} : vector<48x14xf32> to vector<8x14xf32>
    %149 = arith.maximumf %147, %148 : vector<8x14xf32>
    %150 = vector.extract_strided_slice %144 {offsets = [24, 0], sizes = [8, 14], strides = [1, 1]} : vector<48x14xf32> to vector<8x14xf32>
    %151 = arith.maximumf %149, %150 : vector<8x14xf32>
    %152 = vector.extract_strided_slice %144 {offsets = [32, 0], sizes = [8, 14], strides = [1, 1]} : vector<48x14xf32> to vector<8x14xf32>
    %153 = arith.maximumf %151, %152 : vector<8x14xf32>
    %154 = vector.extract_strided_slice %144 {offsets = [40, 0], sizes = [8, 14], strides = [1, 1]} : vector<48x14xf32> to vector<8x14xf32>
    %155 = arith.maximumf %153, %154 : vector<8x14xf32>
    %156 = arith.truncf %155 : vector<8x14xf32> to vector<8x14xbf16>
    %c0_90 = arith.constant 0 : index
    %c0_91 = arith.constant 0 : index
    %c0_92 = arith.constant 0 : index
    %157 = vector.load %arg14[%c0_90, %c0_91, %c0_92] : memref<3x14x128xbf16, #tpu.memory_space<vmem>>, vector<1x14x128xbf16>
    %158 = vector.shape_cast %157 : vector<1x14x128xbf16> to vector<14x128xbf16>
    %cst_93 = arith.constant dense<0.000000e+00> : vector<8x128xf32>
    %159 = tpu.matmul %58, %158, %cst_93 {dimension_numbers = #tpu.dot_dimension_numbers<[1], [0], [0], [1], [0, 0, 1, 1], [], []>} : vector<8x14xbf16>, vector<14x128xbf16>, vector<8x128xf32> -> vector<8x128xf32>
    %c1_94 = arith.constant 1 : index
    %c0_95 = arith.constant 0 : index
    %c0_96 = arith.constant 0 : index
    %160 = vector.load %arg14[%c1_94, %c0_95, %c0_96] : memref<3x14x128xbf16, #tpu.memory_space<vmem>>, vector<1x14x128xbf16>
    %161 = vector.shape_cast %160 : vector<1x14x128xbf16> to vector<14x128xbf16>
    %cst_97 = arith.constant dense<0.000000e+00> : vector<8x128xf32>
    %162 = tpu.matmul %101, %161, %cst_97 {dimension_numbers = #tpu.dot_dimension_numbers<[1], [0], [0], [1], [0, 0, 1, 1], [], []>} : vector<8x14xbf16>, vector<14x128xbf16>, vector<8x128xf32> -> vector<8x128xf32>
    %163 = arith.addf %159, %162 : vector<8x128xf32>
    %c2_98 = arith.constant 2 : index
    %c0_99 = arith.constant 0 : index
    %c0_100 = arith.constant 0 : index
    %164 = vector.load %arg14[%c2_98, %c0_99, %c0_100] : memref<3x14x128xbf16, #tpu.memory_space<vmem>>, vector<1x14x128xbf16>
    %165 = vector.shape_cast %164 : vector<1x14x128xbf16> to vector<14x128xbf16>
    %cst_101 = arith.constant dense<0.000000e+00> : vector<8x128xf32>
    %166 = tpu.matmul %156, %165, %cst_101 {dimension_numbers = #tpu.dot_dimension_numbers<[1], [0], [0], [1], [0, 0, 1, 1], [], []>} : vector<8x14xbf16>, vector<14x128xbf16>, vector<8x128xf32> -> vector<8x128xf32>
    %167 = arith.addf %163, %166 : vector<8x128xf32>
    %c0_102 = arith.constant 0 : index
    %c0_103 = arith.constant 0 : index
    %168 = vector.load %arg15[%c0_102, %c0_103] : memref<1x128xf32, #tpu.memory_space<vmem>>, vector<1x128xf32>
    %169 = vector.broadcast %168 : vector<1x128xf32> to vector<8x128xf32>
    %170 = arith.addf %167, %169 : vector<8x128xf32>
    %c0_104 = arith.constant 0 : index
    %c0_105 = arith.constant 0 : index
    %171 = vector.load %arg16[%c0_104, %c0_105] : memref<8x128xf32, #tpu.memory_space<vmem>>, vector<8x128xf32>
    tpu.vector_store %arg16[%c0_104, %c0_105], %170 {strides = array<i32>} : memref<8x128xf32, #tpu.memory_space<vmem>>, vector<8x128xf32>,
    return
  }
  func.func @transform_0(%arg0: i32) -> (i32, i32) {
    %c0_i32 = arith.constant 0 : i32
    %c0_i32_0 = arith.constant 0 : i32
    return %arg0, %c0_i32 : i32, i32
  }
  func.func @transform_1(%arg0: i32) -> (i32, i32) {
    %c0_i32 = arith.constant 0 : i32
    %c0_i32_0 = arith.constant 0 : i32
    %c0_i32_1 = arith.constant 0 : i32
    return %c0_i32, %c0_i32_0 : i32, i32
  }
  func.func @transform_2(%arg0: i32) -> (i32, i32, i32) {
    %c0_i32 = arith.constant 0 : i32
    %c0_i32_0 = arith.constant 0 : i32
    %c0_i32_1 = arith.constant 0 : i32
    %c0_i32_2 = arith.constant 0 : i32
    return %c0_i32, %c0_i32_0, %c0_i32_1 : i32, i32, i32
  }
  func.func @transform_3(%arg0: i32) -> (i32, i32) {
    %c0_i32 = arith.constant 0 : i32
    %c0_i32_0 = arith.constant 0 : i32
    %c0_i32_1 = arith.constant 0 : i32
    return %c0_i32, %c0_i32_0 : i32, i32
  }
  func.func @transform_4(%arg0: i32) -> (i32, i32) {
    %c0_i32 = arith.constant 0 : i32
    %c0_i32_0 = arith.constant 0 : i32
    %c0_i32_1 = arith.constant 0 : i32
    return %c0_i32, %c0_i32_0 : i32, i32
  }
  func.func @transform_5(%arg0: i32) -> (i32, i32, i32) {
    %c0_i32 = arith.constant 0 : i32
    %c0_i32_0 = arith.constant 0 : i32
    %c0_i32_1 = arith.constant 0 : i32
    %c0_i32_2 = arith.constant 0 : i32
    return %c0_i32, %c0_i32_0, %c0_i32_1 : i32, i32, i32
  }
  func.func @transform_6(%arg0: i32) -> (i32, i32) {
    %c0_i32 = arith.constant 0 : i32
    %c0_i32_0 = arith.constant 0 : i32
    %c0_i32_1 = arith.constant 0 : i32
    return %c0_i32, %c0_i32_0 : i32, i32
  }
  func.func @transform_7(%arg0: i32) -> (i32, i32) {
    %c0_i32 = arith.constant 0 : i32
    %c0_i32_0 = arith.constant 0 : i32
    %c0_i32_1 = arith.constant 0 : i32
    return %c0_i32, %c0_i32_0 : i32, i32
  }
  func.func @transform_8(%arg0: i32) -> (i32, i32, i32) {
    %c0_i32 = arith.constant 0 : i32
    %c0_i32_0 = arith.constant 0 : i32
    %c0_i32_1 = arith.constant 0 : i32
    %c0_i32_2 = arith.constant 0 : i32
    return %c0_i32, %c0_i32_0, %c0_i32_1 : i32, i32, i32
  }
  func.func @transform_9(%arg0: i32) -> (i32, i32) {
    %c0_i32 = arith.constant 0 : i32
    %c0_i32_0 = arith.constant 0 : i32
    %c0_i32_1 = arith.constant 0 : i32
    return %c0_i32, %c0_i32_0 : i32, i32
  }
  func.func @transform_10(%arg0: i32) -> (i32, i32) {
    %c0_i32 = arith.constant 0 : i32
    %c0_i32_0 = arith.constant 0 : i32
    %c0_i32_1 = arith.constant 0 : i32
    return %c0_i32, %c0_i32_0 : i32, i32
  }
  func.func @transform_11(%arg0: i32) -> (i32, i32, i32) {
    %c0_i32 = arith.constant 0 : i32
    %c0_i32_0 = arith.constant 0 : i32
    %c0_i32_1 = arith.constant 0 : i32
    %c0_i32_2 = arith.constant 0 : i32
    return %c0_i32, %c0_i32_0, %c0_i32_1 : i32, i32, i32
  }
  func.func @transform_12(%arg0: i32) -> (i32, i32) {
    %c0_i32 = arith.constant 0 : i32
    %c0_i32_0 = arith.constant 0 : i32
    %c0_i32_1 = arith.constant 0 : i32
    return %c0_i32, %c0_i32_0 : i32, i32
  }
  func.func @transform_13(%arg0: i32) -> (i32, i32, i32) {
    %c0_i32 = arith.constant 0 : i32
    %c0_i32_0 = arith.constant 0 : i32
    %c0_i32_1 = arith.constant 0 : i32
    %c0_i32_2 = arith.constant 0 : i32
    return %c0_i32, %c0_i32_0, %c0_i32_1 : i32, i32, i32
  }
  func.func @transform_14(%arg0: i32) -> (i32, i32) {
    %c0_i32 = arith.constant 0 : i32
    %c0_i32_0 = arith.constant 0 : i32
    %c0_i32_1 = arith.constant 0 : i32
    return %c0_i32, %c0_i32_0 : i32, i32
  }
  func.func @transform_15(%arg0: i32) -> (i32, i32) {
    %c0_i32 = arith.constant 0 : i32
    %c0_i32_0 = arith.constant 0 : i32
    return %arg0, %c0_i32 : i32, i32
  }
}

</mosaic_0001>

<llo_original>
// kernel: generator_forward.1
$region0: #{generator_forward.1}
  #allocation0 [shape = 'u32[]', space=smem, size = 0x4, offset = 0x4, fixed_abs, tag = 'smem constant byte address 0x4 - core index']
  #allocation1 [shape = 'u32[72,128]{1,0:T(1,128)}', space=vmem, size = 0x9000, scoped, tag = 'internal scratch']
  %s0 = inlined_call_operand.vmem [shape: f32[512,14], index: 0, kind: input, shape index: {}]
  %s1 = inlined_call_operand.vmem [shape: bf16[384,256], index: 1, kind: input, shape index: {}]
  %s2 = inlined_call_operand.vmem [shape: bf16[3,14,42], index: 2, kind: input, shape index: {}]
  %s3 = inlined_call_operand.vmem [shape: f32[1,42], index: 3, kind: input, shape index: {}]
  %s4 = inlined_call_operand.vmem [shape: bf16[120,128], index: 4, kind: input, shape index: {}]
  %s5 = inlined_call_operand.vmem [shape: bf16[3,42,14], index: 5, kind: input, shape index: {}]
  %s6 = inlined_call_operand.vmem [shape: f32[1,14], index: 6, kind: input, shape index: {}]
  %s7 = inlined_call_operand.vmem [shape: bf16[200,128], index: 7, kind: input, shape index: {}]
  %s8 = inlined_call_operand.vmem [shape: bf16[5,42,14], index: 8, kind: input, shape index: {}]
  %s9 = inlined_call_operand.vmem [shape: f32[1,14], index: 9, kind: input, shape index: {}]
  %s10 = inlined_call_operand.vmem [shape: bf16[336,128], index: 10, kind: input, shape index: {}]
  %s11 = inlined_call_operand.vmem [shape: bf16[7,42,14], index: 11, kind: input, shape index: {}]
  %s12 = inlined_call_operand.vmem [shape: f32[1,14], index: 12, kind: input, shape index: {}]
  %s13 = inlined_call_operand.vmem [shape: bf16[3,14,128], index: 13, kind: input, shape index: {}]
  %s14 = inlined_call_operand.vmem [shape: f32[1,128], index: 14, kind: input, shape index: {}]
  %s15 = inlined_call_operand.vmem [shape: f32[16,128], index: 15, kind: output, shape index: {}]
  %s16 = sld [smem:[#allocation0]]
  $region93: #{generator_forward.1} parent=0
    _
  %s18 = ssub.s32 1, %s16
  %s19 = scalar_select 0, %s18, %s16
  loop: start=0, step=1, limit=4
  $region2: #{generator_forward.1} parent=0 // loop_pre_header
    _
  $region3: #{generator_forward.1} parent=0 // loop_header
    %s21 = sphi 0, %s25
    %p22 = scmp.ge.s32.totalorder %s21, 4
    %s31 = sphi 0, %s33
    %s34 = sphi 0, %s31
    %s35 = sphi 0, %s34
    %s51 = sphi 0, %s35
    %s55 = sphi 0, %s55
    %s57 = sphi 0, %s55
    %s58 = sphi 0, %s57
    %s72 = sphi 0, %s58
    %s76 = sphi 0, %s76
    %s78 = sphi 0, %s76
    %s79 = sphi 0, %s78
    %s93 = sphi 0, %s79
    %s97 = sphi 0, %s97
    %s99 = sphi 0, %s97
    %s100 = sphi 0, %s99
    %s114 = sphi 0, %s100
    %s118 = sphi 0, %s118
    %s120 = sphi 0, %s118
    %s121 = sphi 0, %s120
    %s135 = sphi 0, %s121
    %s139 = sphi 0, %s139
    %s141 = sphi 0, %s139
    %s142 = sphi 0, %s141
    %s156 = sphi 0, %s142
    %s160 = sphi 0, %s160
    %s162 = sphi 0, %s160
    %s163 = sphi 0, %s162
    %s177 = sphi 0, %s163
    %s181 = sphi 0, %s181
    %s183 = sphi 0, %s181
    %s184 = sphi 0, %s183
    %s198 = sphi 0, %s184
    %s202 = sphi 0, %s202
    %s204 = sphi 0, %s202
    %s205 = sphi 0, %s204
    %s219 = sphi 0, %s205
    %s223 = sphi 0, %s223
    %s225 = sphi 0, %s223
    %s226 = sphi 0, %s225
    %s240 = sphi 0, %s226
    %s244 = sphi 0, %s244
    %s246 = sphi 0, %s244
    %s247 = sphi 0, %s246
    %s261 = sphi 0, %s247
    %s265 = sphi 0, %s265
    %s267 = sphi 0, %s265
    %s268 = sphi 0, %s267
    %s282 = sphi 0, %s268
    %s286 = sphi 0, %s286
    %s288 = sphi 0, %s286
    %s289 = sphi 0, %s288
    %s303 = sphi 0, %s289
    %s307 = sphi 0, %s307
    %s309 = sphi 0, %s307
    %s310 = sphi 0, %s309
    %s324 = sphi 0, %s310
    %s328 = sphi 0, %s328
    %s330 = sphi 0, %s328
    %s331 = sphi 0, %s330
    %s345 = sphi 0, %s331
    %s351 = sphi 0, %s353
    %s354 = sphi 0, %s351
    %s355 = sphi 0, %s354
    %s371 = sphi 0, %s355
  $region4: #{generator_forward.1} parent=0 // loop_header_branch
    %24 = sbr.rel (%p22) target = $region8
  $region5: #{generator_forward.1} parent=0 // loop_body
    %s26 = ssub.s32 %s21, 1
    %s27 = ssub.s32 %s21, 2
    %s28 = sadd.s32 %s21, 1
    %s29 = ssub.s32 %s21, %s28
    %p30 = scmp.eq.s32.totalorder %s29, 0
    %s32 = sadd.s32 %s31, 1
    %s33 = scalar_select %p30, %s31, %s32
    %p36 = pneg %p30
    %p37 = scmp.eq.s32.totalorder %s21, 1
    %p38 = por %p36, %p37
    %p39 = scmp.ne.s32.totalorder %s31, %s34
    %p40 = scmp.eq.s32.totalorder %s21, 0
    %p41 = por %p39, %p40
    %p42 = scmp.ne.s32.totalorder %s31, %s34
    %p43 = scmp.eq.s32.totalorder %s26, 1
    %p44 = por %p42, %p43
    %p45 = scmp.ne.s32.totalorder %s34, %s35
    %p46 = scmp.eq.s32.totalorder %s26, 0
    %p47 = por %p45, %p46
    %p48 = scmp.ne.s32.totalorder %s34, %s35
    %p49 = scmp.eq.s32.totalorder %s27, 1
    %p50 = por %p48, %p49
    %p52 = scmp.ne.s32.totalorder %s35, %s51
    %p53 = scmp.eq.s32.totalorder %s27, 0
    %p54 = por %p52, %p53
    %s56 = sadd.s32 %s55, 1
    %p59 = scmp.eq.s32.totalorder %s21, 1
    %p60 = scmp.ne.s32.totalorder %s55, %s57
    %p61 = scmp.eq.s32.totalorder %s21, 0
    %p62 = por %p60, %p61
    %p63 = scmp.ne.s32.totalorder %s55, %s57
    %p64 = scmp.eq.s32.totalorder %s26, 1
    %p65 = por %p63, %p64
    %p66 = scmp.ne.s32.totalorder %s57, %s58
    %p67 = scmp.eq.s32.totalorder %s26, 0
    %p68 = por %p66, %p67
    %p69 = scmp.ne.s32.totalorder %s57, %s58
    %p70 = scmp.eq.s32.totalorder %s27, 1
    %p71 = por %p69, %p70
    %p73 = scmp.ne.s32.totalorder %s58, %s72
    %p74 = scmp.eq.s32.totalorder %s27, 0
    %p75 = por %p73, %p74
    %s77 = sadd.s32 %s76, 1
    %p80 = scmp.eq.s32.totalorder %s21, 1
    %p81 = scmp.ne.s32.totalorder %s76, %s78
    %p82 = scmp.eq.s32.totalorder %s21, 0
    %p83 = por %p81, %p82
    %p84 = scmp.ne.s32.totalorder %s76, %s78
    %p85 = scmp.eq.s32.totalorder %s26, 1
    %p86 = por %p84, %p85
    %p87 = scmp.ne.s32.totalorder %s78, %s79
    %p88 = scmp.eq.s32.totalorder %s26, 0
    %p89 = por %p87, %p88
    %p90 = scmp.ne.s32.totalorder %s78, %s79
    %p91 = scmp.eq.s32.totalorder %s27, 1
    %p92 = por %p90, %p91
    %p94 = scmp.ne.s32.totalorder %s79, %s93
    %p95 = scmp.eq.s32.totalorder %s27, 0
    %p96 = por %p94, %p95
    %s98 = sadd.s32 %s97, 1
    %p101 = scmp.eq.s32.totalorder %s21, 1
    %p102 = scmp.ne.s32.totalorder %s97, %s99
    %p103 = scmp.eq.s32.totalorder %s21, 0
    %p104 = por %p102, %p103
    %p105 = scmp.ne.s32.totalorder %s97, %s99
    %p106 = scmp.eq.s32.totalorder %s26, 1
    %p107 = por %p105, %p106
    %p108 = scmp.ne.s32.totalorder %s99, %s100
    %p109 = scmp.eq.s32.totalorder %s26, 0
    %p110 = por %p108, %p109
    %p111 = scmp.ne.s32.totalorder %s99, %s100
    %p112 = scmp.eq.s32.totalorder %s27, 1
    %p113 = por %p111, %p112
    %p115 = scmp.ne.s32.totalorder %s100, %s114
    %p116 = scmp.eq.s32.totalorder %s27, 0
    %p117 = por %p115, %p116
    %s119 = sadd.s32 %s118, 1
    %p122 = scmp.eq.s32.totalorder %s21, 1
    %p123 = scmp.ne.s32.totalorder %s118, %s120
    %p124 = scmp.eq.s32.totalorder %s21, 0
    %p125 = por %p123, %p124
    %p126 = scmp.ne.s32.totalorder %s118, %s120
    %p127 = scmp.eq.s32.totalorder %s26, 1
    %p128 = por %p126, %p127
    %p129 = scmp.ne.s32.totalorder %s120, %s121
    %p130 = scmp.eq.s32.totalorder %s26, 0
    %p131 = por %p129, %p130
    %p132 = scmp.ne.s32.totalorder %s120, %s121
    %p133 = scmp.eq.s32.totalorder %s27, 1
    %p134 = por %p132, %p133
    %p136 = scmp.ne.s32.totalorder %s121, %s135
    %p137 = scmp.eq.s32.totalorder %s27, 0
    %p138 = por %p136, %p137
    %s140 = sadd.s32 %s139, 1
    %p143 = scmp.eq.s32.totalorder %s21, 1
    %p144 = scmp.ne.s32.totalorder %s139, %s141
    %p145 = scmp.eq.s32.totalorder %s21, 0
    %p146 = por %p144, %p145
    %p147 = scmp.ne.s32.totalorder %s139, %s141
    %p148 = scmp.eq.s32.totalorder %s26, 1
    %p149 = por %p147, %p148
    %p150 = scmp.ne.s32.totalorder %s141, %s142
    %p151 = scmp.eq.s32.totalorder %s26, 0
    %p152 = por %p150, %p151
    %p153 = scmp.ne.s32.totalorder %s141, %s142
    %p154 = scmp.eq.s32.totalorder %s27, 1
    %p155 = por %p153, %p154
    %p157 = scmp.ne.s32.totalorder %s142, %s156
    %p158 = scmp.eq.s32.totalorder %s27, 0
    %p159 = por %p157, %p158
    %s161 = sadd.s32 %s160, 1
    %p164 = scmp.eq.s32.totalorder %s21, 1
    %p165 = scmp.ne.s32.totalorder %s160, %s162
    %p166 = scmp.eq.s32.totalorder %s21, 0
    %p167 = por %p165, %p166
    %p168 = scmp.ne.s32.totalorder %s160, %s162
    %p169 = scmp.eq.s32.totalorder %s26, 1
    %p170 = por %p168, %p169
    %p171 = scmp.ne.s32.totalorder %s162, %s163
    %p172 = scmp.eq.s32.totalorder %s26, 0
    %p173 = por %p171, %p172
    %p174 = scmp.ne.s32.totalorder %s162, %s163
    %p175 = scmp.eq.s32.totalorder %s27, 1
    %p176 = por %p174, %p175
    %p178 = scmp.ne.s32.totalorder %s163, %s177
    %p179 = scmp.eq.s32.totalorder %s27, 0
    %p180 = por %p178, %p179
    %s182 = sadd.s32 %s181, 1
    %p185 = scmp.eq.s32.totalorder %s21, 1
    %p186 = scmp.ne.s32.totalorder %s181, %s183
    %p187 = scmp.eq.s32.totalorder %s21, 0
    %p188 = por %p186, %p187
    %p189 = scmp.ne.s32.totalorder %s181, %s183
    %p190 = scmp.eq.s32.totalorder %s26, 1
    %p191 = por %p189, %p190
    %p192 = scmp.ne.s32.totalorder %s183, %s184
    %p193 = scmp.eq.s32.totalorder %s26, 0
    %p194 = por %p192, %p193
    %p195 = scmp.ne.s32.totalorder %s183, %s184
    %p196 = scmp.eq.s32.totalorder %s27, 1
    %p197 = por %p195, %p196
    %p199 = scmp.ne.s32.totalorder %s184, %s198
    %p200 = scmp.eq.s32.totalorder %s27, 0
    %p201 = por %p199, %p200
    %s203 = sadd.s32 %s202, 1
    %p206 = scmp.eq.s32.totalorder %s21, 1
    %p207 = scmp.ne.s32.totalorder %s202, %s204
    %p208 = scmp.eq.s32.totalorder %s21, 0
    %p209 = por %p207, %p208
    %p210 = scmp.ne.s32.totalorder %s202, %s204
    %p211 = scmp.eq.s32.totalorder %s26, 1
    %p212 = por %p210, %p211
    %p213 = scmp.ne.s32.totalorder %s204, %s205
    %p214 = scmp.eq.s32.totalorder %s26, 0
    %p215 = por %p213, %p214
    %p216 = scmp.ne.s32.totalorder %s204, %s205
    %p217 = scmp.eq.s32.totalorder %s27, 1
    %p218 = por %p216, %p217
    %p220 = scmp.ne.s32.totalorder %s205, %s219
    %p221 = scmp.eq.s32.totalorder %s27, 0
    %p222 = por %p220, %p221
    %s224 = sadd.s32 %s223, 1
    %p227 = scmp.eq.s32.totalorder %s21, 1
    %p228 = scmp.ne.s32.totalorder %s223, %s225
    %p229 = scmp.eq.s32.totalorder %s21, 0
    %p230 = por %p228, %p229
    %p231 = scmp.ne.s32.totalorder %s223, %s225
    %p232 = scmp.eq.s32.totalorder %s26, 1
    %p233 = por %p231, %p232
    %p234 = scmp.ne.s32.totalorder %s225, %s226
    %p235 = scmp.eq.s32.totalorder %s26, 0
    %p236 = por %p234, %p235
    %p237 = scmp.ne.s32.totalorder %s225, %s226
    %p238 = scmp.eq.s32.totalorder %s27, 1
    %p239 = por %p237, %p238
    %p241 = scmp.ne.s32.totalorder %s226, %s240
    %p242 = scmp.eq.s32.totalorder %s27, 0
    %p243 = por %p241, %p242
    %s245 = sadd.s32 %s244, 1
    %p248 = scmp.eq.s32.totalorder %s21, 1
    %p249 = scmp.ne.s32.totalorder %s244, %s246
    %p250 = scmp.eq.s32.totalorder %s21, 0
    %p251 = por %p249, %p250
    %p252 = scmp.ne.s32.totalorder %s244, %s246
    %p253 = scmp.eq.s32.totalorder %s26, 1
    %p254 = por %p252, %p253
    %p255 = scmp.ne.s32.totalorder %s246, %s247
    %p256 = scmp.eq.s32.totalorder %s26, 0
    %p257 = por %p255, %p256
    %p258 = scmp.ne.s32.totalorder %s246, %s247
    %p259 = scmp.eq.s32.totalorder %s27, 1
    %p260 = por %p258, %p259
    %p262 = scmp.ne.s32.totalorder %s247, %s261
    %p263 = scmp.eq.s32.totalorder %s27, 0
    %p264 = por %p262, %p263
    %s266 = sadd.s32 %s265, 1
    %p269 = scmp.eq.s32.totalorder %s21, 1
    %p270 = scmp.ne.s32.totalorder %s265, %s267
    %p271 = scmp.eq.s32.totalorder %s21, 0
    %p272 = por %p270, %p271
    %p273 = scmp.ne.s32.totalorder %s265, %s267
    %p274 = scmp.eq.s32.totalorder %s26, 1
    %p275 = por %p273, %p274
    %p276 = scmp.ne.s32.totalorder %s267, %s268
    %p277 = scmp.eq.s32.totalorder %s26, 0
    %p278 = por %p276, %p277
    %p279 = scmp.ne.s32.totalorder %s267, %s268
    %p280 = scmp.eq.s32.totalorder %s27, 1
    %p281 = por %p279, %p280
    %p283 = scmp.ne.s32.totalorder %s268, %s282
    %p284 = scmp.eq.s32.totalorder %s27, 0
    %p285 = por %p283, %p284
    %s287 = sadd.s32 %s286, 1
    %p290 = scmp.eq.s32.totalorder %s21, 1
    %p291 = scmp.ne.s32.totalorder %s286, %s288
    %p292 = scmp.eq.s32.totalorder %s21, 0
    %p293 = por %p291, %p292
    %p294 = scmp.ne.s32.totalorder %s286, %s288
    %p295 = scmp.eq.s32.totalorder %s26, 1
    %p296 = por %p294, %p295
    %p297 = scmp.ne.s32.totalorder %s288, %s289
    %p298 = scmp.eq.s32.totalorder %s26, 0
    %p299 = por %p297, %p298
    %p300 = scmp.ne.s32.totalorder %s288, %s289
    %p301 = scmp.eq.s32.totalorder %s27, 1
    %p302 = por %p300, %p301
    %p304 = scmp.ne.s32.totalorder %s289, %s303
    %p305 = scmp.eq.s32.totalorder %s27, 0
    %p306 = por %p304, %p305
    %s308 = sadd.s32 %s307, 1
    %p311 = scmp.eq.s32.totalorder %s21, 1
    %p312 = scmp.ne.s32.totalorder %s307, %s309
    %p313 = scmp.eq.s32.totalorder %s21, 0
    %p314 = por %p312, %p313
    %p315 = scmp.ne.s32.totalorder %s307, %s309
    %p316 = scmp.eq.s32.totalorder %s26, 1
    %p317 = por %p315, %p316
    %p318 = scmp.ne.s32.totalorder %s309, %s310
    %p319 = scmp.eq.s32.totalorder %s26, 0
    %p320 = por %p318, %p319
    %p321 = scmp.ne.s32.totalorder %s309, %s310
    %p322 = scmp.eq.s32.totalorder %s27, 1
    %p323 = por %p321, %p322
    %p325 = scmp.ne.s32.totalorder %s310, %s324
    %p326 = scmp.eq.s32.totalorder %s27, 0
    %p327 = por %p325, %p326
    %s329 = sadd.s32 %s328, 1
    %p332 = scmp.eq.s32.totalorder %s21, 1
    %p333 = scmp.ne.s32.totalorder %s328, %s330
    %p334 = scmp.eq.s32.totalorder %s21, 0
    %p335 = por %p333, %p334
    %p336 = scmp.ne.s32.totalorder %s328, %s330
    %p337 = scmp.eq.s32.totalorder %s26, 1
    %p338 = por %p336, %p337
    %p339 = scmp.ne.s32.totalorder %s330, %s331
    %p340 = scmp.eq.s32.totalorder %s26, 0
    %p341 = por %p339, %p340
    %p342 = scmp.ne.s32.totalorder %s330, %s331
    %p343 = scmp.eq.s32.totalorder %s27, 1
    %p344 = por %p342, %p343
    %p346 = scmp.ne.s32.totalorder %s331, %s345
    %p347 = scmp.eq.s32.totalorder %s27, 0
    %p348 = por %p346, %p347
    %s349 = ssub.s32 %s21, %s28
    %p350 = scmp.eq.s32.totalorder %s349, 0
    %s352 = sadd.s32 %s351, 1
    %s353 = scalar_select %p350, %s351, %s352
    %p356 = pneg %p350
    %p357 = scmp.eq.s32.totalorder %s21, 1
    %p358 = por %p356, %p357
    %p359 = scmp.ne.s32.totalorder %s351, %s354
    %p360 = scmp.eq.s32.totalorder %s21, 0
    %p361 = por %p359, %p360
    %p362 = scmp.ne.s32.totalorder %s351, %s354
    %p363 = scmp.eq.s32.totalorder %s26, 1
    %p364 = por %p362, %p363
    %p365 = scmp.ne.s32.totalorder %s354, %s355
    %p366 = scmp.eq.s32.totalorder %s26, 0
    %p367 = por %p365, %p366
    %p368 = scmp.ne.s32.totalorder %s354, %s355
    %p369 = scmp.eq.s32.totalorder %s27, 1
    %p370 = por %p368, %p369
    %p372 = scmp.ne.s32.totalorder %s355, %s371
    %p373 = scmp.eq.s32.totalorder %s27, 0
    %p374 = por %p372, %p373
    %p375 = scmp.le.s32.totalorder 1, %s21
    %p376 = scmp.lt.s32.totalorder %s21, 3
    %p377 = pnand %p375, %p376
    %p378 = pneg %p377
    // Predicated region
    $region9: #{generator_forward.1} parent=5 // pred_check
      _
    $region10: #{generator_forward.1} parent=5 // pred_check_branch
      %380 = sbr.rel (%p377) target = $region12
    $region11: #{generator_forward.1} parent=5 // pred_region
      %s381 = ssub.s32 %s21, 1
      // Predicated region
      $region13: #{generator_forward.1} parent=11 // pred_check
        %p382 = pneg %p68
      $region14: #{generator_forward.1} parent=11 // pred_check_branch
        %384 = sbr.rel (%p382) target = $region16
      $region15: #{generator_forward.1} parent=11 // pred_region
        _
      $region16: #{generator_forward.1} parent=11 // pred_fallthru
        _
      // Predicated region
      $region17: #{generator_forward.1} parent=11 // pred_check
        %p385 = pneg %p89
      $region18: #{generator_forward.1} parent=11 // pred_check_branch
        %387 = sbr.rel (%p385) target = $region20
      $region19: #{generator_forward.1} parent=11 // pred_region
        _
      $region20: #{generator_forward.1} parent=11 // pred_fallthru
        _
      // Predicated region
      $region21: #{generator_forward.1} parent=11 // pred_check
        %p388 = pneg %p110
      $region22: #{generator_forward.1} parent=11 // pred_check_branch
        %390 = sbr.rel (%p388) target = $region24
      $region23: #{generator_forward.1} parent=11 // pred_region
        _
      $region24: #{generator_forward.1} parent=11 // pred_fallthru
        _
      // Predicated region
      $region25: #{generator_forward.1} parent=11 // pred_check
        %p391 = pneg %p131
      $region26: #{generator_forward.1} parent=11 // pred_check_branch
        %393 = sbr.rel (%p391) target = $region28
      $region27: #{generator_forward.1} parent=11 // pred_region
        _
      $region28: #{generator_forward.1} parent=11 // pred_fallthru
        _
      // Predicated region
      $region29: #{generator_forward.1} parent=11 // pred_check
        %p394 = pneg %p152
      $region30: #{generator_forward.1} parent=11 // pred_check_branch
        %396 = sbr.rel (%p394) target = $region32
      $region31: #{generator_forward.1} parent=11 // pred_region
        _
      $region32: #{generator_forward.1} parent=11 // pred_fallthru
        _
      // Predicated region
      $region33: #{generator_forward.1} parent=11 // pred_check
        %p397 = pneg %p173
      $region34: #{generator_forward.1} parent=11 // pred_check_branch
        %399 = sbr.rel (%p397) target = $region36
      $region35: #{generator_forward.1} parent=11 // pred_region
        _
      $region36: #{generator_forward.1} parent=11 // pred_fallthru
        _
      // Predicated region
      $region37: #{generator_forward.1} parent=11 // pred_check
        %p400 = pneg %p194
      $region38: #{generator_forward.1} parent=11 // pred_check_branch
        %402 = sbr.rel (%p400) target = $region40
      $region39: #{generator_forward.1} parent=11 // pred_region
        _
      $region40: #{generator_forward.1} parent=11 // pred_fallthru
        _
      // Predicated region
      $region41: #{generator_forward.1} parent=11 // pred_check
        %p403 = pneg %p215
      $region42: #{generator_forward.1} parent=11 // pred_check_branch
        %405 = sbr.rel (%p403) target = $region44
      $region43: #{generator_forward.1} parent=11 // pred_region
        _
      $region44: #{generator_forward.1} parent=11 // pred_fallthru
        _
      // Predicated region
      $region45: #{generator_forward.1} parent=11 // pred_check
        %p406 = pneg %p236
      $region46: #{generator_forward.1} parent=11 // pred_check_branch
        %408 = sbr.rel (%p406) target = $region48
      $region47: #{generator_forward.1} parent=11 // pred_region
        _
      $region48: #{generator_forward.1} parent=11 // pred_fallthru
        _
      // Predicated region
      $region49: #{generator_forward.1} parent=11 // pred_check
        %p409 = pneg %p257
      $region50: #{generator_forward.1} parent=11 // pred_check_branch
        %411 = sbr.rel (%p409) target = $region52
      $region51: #{generator_forward.1} parent=11 // pred_region
        _
      $region52: #{generator_forward.1} parent=11 // pred_fallthru
        _
      // Predicated region
      $region53: #{generator_forward.1} parent=11 // pred_check
        %p412 = pneg %p278
      $region54: #{generator_forward.1} parent=11 // pred_check_branch
        %414 = sbr.rel (%p412) target = $region56
      $region55: #{generator_forward.1} parent=11 // pred_region
        _
      $region56: #{generator_forward.1} parent=11 // pred_fallthru
        _
      // Predicated region
      $region57: #{generator_forward.1} parent=11 // pred_check
        %p415 = pneg %p299
      $region58: #{generator_forward.1} parent=11 // pred_check_branch
        %417 = sbr.rel (%p415) target = $region60
      $region59: #{generator_forward.1} parent=11 // pred_region
        _
      $region60: #{generator_forward.1} parent=11 // pred_fallthru
        _
      // Predicated region
      $region61: #{generator_forward.1} parent=11 // pred_check
        %p418 = pneg %p320
      $region62: #{generator_forward.1} parent=11 // pred_check_branch
        %420 = sbr.rel (%p418) target = $region64
      $region63: #{generator_forward.1} parent=11 // pred_region
        _
      $region64: #{generator_forward.1} parent=11 // pred_fallthru
        _
      // Predicated region
      $region65: #{generator_forward.1} parent=11 // pred_check
        %p421 = pneg %p341
      $region66: #{generator_forward.1} parent=11 // pred_check_branch
        %423 = sbr.rel (%p421) target = $region68
      $region67: #{generator_forward.1} parent=11 // pred_region
        _
      $region68: #{generator_forward.1} parent=11 // pred_fallthru
        _
    $region12: #{generator_forward.1} parent=5 // pred_fallthru
      _
    %p424 = scmp.lt.s32.totalorder %s21, 2
    // Predicated region
    $region69: #{generator_forward.1} parent=5 // pred_check
      %p425 = pneg %p424
    $region70: #{generator_forward.1} parent=5 // pred_check_branch
      %427 = sbr.rel (%p425) target = $region72
    $region71: #{generator_forward.1} parent=5 // pred_region
      // Predicated region
      $region73: #{generator_forward.1} parent=71 // pred_check
        %p428 = pneg %p41
      $region74: #{generator_forward.1} parent=71 // pred_check_branch
        %430 = sbr.rel (%p428) target = $region76
      $region75: #{generator_forward.1} parent=71 // pred_region
        %s431 = smul.u32 32, %s21
        %p432 = scmp.lt.s32.totalorder %s431, 63
        %s433 = scalar_select %p432, %s431, 63
        %s434 = smul.addr %s433, 8
        %s435 = scalar_lea.vmem %s0, %s434
        %s436 = smul.u32 32, %s21
      $region76: #{generator_forward.1} parent=71 // pred_fallthru
        _
    $region72: #{generator_forward.1} parent=5 // pred_fallthru
      _
    %p437 = scmp.le.s32.totalorder 1, %s21
    %p438 = scmp.lt.s32.totalorder %s21, 3
    %p439 = pnand %p437, %p438
    %p440 = pneg %p439
    // Predicated region
    $region77: #{generator_forward.1} parent=5 // pred_check
      _
    $region78: #{generator_forward.1} parent=5 // pred_check_branch
      %442 = sbr.rel (%p439) target = $region80
    $region79: #{generator_forward.1} parent=5 // pred_region
      %s443 = ssub.s32 %s21, 1
      %s444 = smul.u32 32, %s26
      %p445 = scmp.lt.s32.totalorder %s444, 63
      %s446 = scalar_select %p445, %s444, 63
      %s447 = smul.addr %s446, 8
      %s448 = scalar_lea.vmem %s0, %s447
      %p449 = pneg %p47
      %p450 = pneg %p44
      %p451 = pneg %p68
      %p452 = pneg %p65
      %p453 = pneg %p89
      %p454 = pneg %p86
      %p455 = pneg %p110
      %p456 = pneg %p107
      %p457 = pneg %p131
      %p458 = pneg %p128
      %p459 = pneg %p152
      %p460 = pneg %p149
      %p461 = pneg %p173
      %p462 = pneg %p170
      %p463 = pneg %p194
      %p464 = pneg %p191
      %p465 = pneg %p215
      %p466 = pneg %p212
      %p467 = pneg %p236
      %p468 = pneg %p233
      %p469 = pneg %p257
      %p470 = pneg %p254
      %p471 = pneg %p278
      %p472 = pneg %p275
      %p473 = pneg %p299
      %p474 = pneg %p296
      %p475 = pneg %p320
      %p476 = pneg %p317
      %p477 = pneg %p341
      %p478 = pneg %p338
      %p479 = pneg %p367
      %p480 = pneg %p364
      %p481 = scmp.lt.s32.totalorder %s26, 1
      %s482 = scalar_select %p481, %s26, 1
      %s483 = smul.addr %s482, 8
      %s484 = scalar_lea.vmem %s15, %s483
      %s485 = smul.u32 32, %s26
      %p486 = scmp.lt.s32.totalorder %s485, 63
      %s487 = scalar_select %p486, %s485, 63
      %s488 = smul.addr %s487, 8
      %s489 = scalar_lea.vmem %s0, %s488
      %s490 = smul.u32 32, %s26
      %p491 = scmp.lt.s32.totalorder %s26, 1
      %s492 = scalar_select %p491, %s26, 1
      %s493 = smul.addr %s492, 8
      %s494 = scalar_lea.vmem %s15, %s493
      %v496 = vld [vmem:[%s489] sm:$0xff]
      %v497 = vld [vmem:[%s489 + $0x8] sm:$0xff]
      %v498 = vld [vmem:[%s489 + $0x10] sm:$0xff]
      %v499 = vld [vmem:[%s489 + $0x18] sm:$0xff]
      %v500 = vld [vmem:[%s489 + $0x20] sm:$0xff]
      %v501 = vld [vmem:[%s489 + $0x28] sm:$0xff]
      %v502 = vld [vmem:[%s489 + $0x30] sm:$0xff]
      %v503 = vld [vmem:[%s489 + $0x38] sm:$0xff]
      %v504 = vld [vmem:[%s489 + $0x40] sm:$0xff]
      %v505 = vld [vmem:[%s489 + $0x48] sm:$0xff]
      %v506 = vld [vmem:[%s489 + $0x50] sm:$0xff]
      %v507 = vld [vmem:[%s489 + $0x58] sm:$0xff]
      %v508 = vld [vmem:[%s489 + $0x60] sm:$0xff]
      %v509 = vld [vmem:[%s489 + $0x68] sm:$0xff]
      %v510 = vld [vmem:[%s489 + $0x70] sm:$0xff]
      %v511 = vld [vmem:[%s489 + $0x78] sm:$0xff]
      %v512 = vld [vmem:[%s489 + $0x80] sm:$0xff]
      %v513 = vld [vmem:[%s489 + $0x88] sm:$0xff]
      %v514 = vld [vmem:[%s489 + $0x90] sm:$0xff]
      %v515 = vld [vmem:[%s489 + $0x98] sm:$0xff]
      %v516 = vld [vmem:[%s489 + $0xa0] sm:$0xff]
      %v517 = vld [vmem:[%s489 + $0xa8] sm:$0xff]
      %v518 = vld [vmem:[%s489 + $0xb0] sm:$0xff]
      %v519 = vld [vmem:[%s489 + $0xb8] sm:$0xff]
      %v520 = vld [vmem:[%s489 + $0xc0] sm:$0xff]
      %v521 = vld [vmem:[%s489 + $0xc8] sm:$0xff]
      %v522 = vld [vmem:[%s489 + $0xd0] sm:$0xff]
      %v523 = vld [vmem:[%s489 + $0xd8] sm:$0xff]
      %v524 = vld [vmem:[%s489 + $0xe0] sm:$0xff]
      %v525 = vld [vmem:[%s489 + $0xe8] sm:$0xff]
      %v526 = vld [vmem:[%s489 + $0xf0] sm:$0xff]
      %v527 = vld [vmem:[%s489 + $0xf8] sm:$0xff]
      %v528 = vpack.c.bf16 %v497, %v496
      %v529 = vpack.c.bf16 %v499, %v498
      %v530 = vpack.c.bf16 %v501, %v500
      %v531 = vpack.c.bf16 %v503, %v502
      %v532 = vpack.c.bf16 %v505, %v504
      %v533 = vpack.c.bf16 %v507, %v506
      %v534 = vpack.c.bf16 %v509, %v508
      %v535 = vpack.c.bf16 %v511, %v510
      %v536 = vpack.c.bf16 %v513, %v512
      %v537 = vpack.c.bf16 %v515, %v514
      %v538 = vpack.c.bf16 %v517, %v516
      %v539 = vpack.c.bf16 %v519, %v518
      %v540 = vpack.c.bf16 %v521, %v520
      %v541 = vpack.c.bf16 %v523, %v522
      %v542 = vpack.c.bf16 %v525, %v524
      %v543 = vpack.c.bf16 %v527, %v526
      %v544 = vld [vmem:[%s1] sm:$0xff]
      %v545 = vld [vmem:[%s1 + $0x8] sm:$0xff]
      %v546 = vld [vmem:[%s1 + $0x10] sm:$0xff]
      %v547 = vld [vmem:[%s1 + $0x18] sm:$0xff]
      %v548 = vld [vmem:[%s1 + $0x20] sm:$0xff]
      %v549 = vld [vmem:[%s1 + $0x28] sm:$0xff]
      %v550 = vld [vmem:[%s1 + $0x30] sm:$0xff]
      %v551 = vld [vmem:[%s1 + $0x38] sm:$0xff]
      %v552 = vld [vmem:[%s1 + $0x40] sm:$0xff]
      %v553 = vld [vmem:[%s1 + $0x48] sm:$0xff]
      %v554 = vld [vmem:[%s1 + $0x50] sm:$0xff]
      %v555 = vld [vmem:[%s1 + $0x58] sm:$0xff]
      %v556 = vld [vmem:[%s1 + $0x60] sm:$0xff]
      %v557 = vld [vmem:[%s1 + $0x68] sm:$0xff]
      %v558 = vld [vmem:[%s1 + $0x70] sm:$0xff]
      %v559 = vld [vmem:[%s1 + $0x78] sm:$0xff]
      %v560 = vld [vmem:[%s1 + $0x80] sm:$0xff]
      %v561 = vld [vmem:[%s1 + $0x88] sm:$0xff]
      %v562 = vld [vmem:[%s1 + $0x90] sm:$0xff]
      %v563 = vld [vmem:[%s1 + $0x98] sm:$0xff]
      %v564 = vld [vmem:[%s1 + $0xa0] sm:$0xff]
      %v565 = vld [vmem:[%s1 + $0xa8] sm:$0xff]
      %v566 = vld [vmem:[%s1 + $0xb0] sm:$0xff]
      %v567 = vld [vmem:[%s1 + $0xb8] sm:$0xff]
      %v568 = vld [vmem:[%s1 + $0xc0] sm:$0xff]
      %v569 = vld [vmem:[%s1 + $0xc8] sm:$0xff]
      %v570 = vld [vmem:[%s1 + $0xd0] sm:$0xff]
      %v571 = vld [vmem:[%s1 + $0xd8] sm:$0xff]
      %v572 = vld [vmem:[%s1 + $0xe0] sm:$0xff]
      %v573 = vld [vmem:[%s1 + $0xe8] sm:$0xff]
      %v574 = vld [vmem:[%s1 + $0xf0] sm:$0xff]
      %v575 = vld [vmem:[%s1 + $0xf8] sm:$0xff]
      %v576 = vld [vmem:[%s1 + $0x100] sm:$0xff]
      %v577 = vld [vmem:[%s1 + $0x108] sm:$0xff]
      %v578 = vld [vmem:[%s1 + $0x110] sm:$0xff]
      %v579 = vld [vmem:[%s1 + $0x118] sm:$0xff]
      %v580 = vld [vmem:[%s1 + $0x120] sm:$0xff]
      %v581 = vld [vmem:[%s1 + $0x128] sm:$0xff]
      %v582 = vld [vmem:[%s1 + $0x130] sm:$0xff]
      %v583 = vld [vmem:[%s1 + $0x138] sm:$0xff]
      %v584 = vld [vmem:[%s1 + $0x140] sm:$0xff]
      %v585 = vld [vmem:[%s1 + $0x148] sm:$0xff]
      %v586 = vld [vmem:[%s1 + $0x150] sm:$0xff]
      %v587 = vld [vmem:[%s1 + $0x158] sm:$0xff]
      %v588 = vld [vmem:[%s1 + $0x160] sm:$0xff]
      %v589 = vld [vmem:[%s1 + $0x168] sm:$0xff]
      %v590 = vld [vmem:[%s1 + $0x170] sm:$0xff]
      %v591 = vld [vmem:[%s1 + $0x178] sm:$0xff]
      %v640 = vunpack.c.l.b16 %v544
      %v641 = vunpack.c.h.b16 %v544
      %v642 = vunpack.c.l.b16 %v545
      %v643 = vunpack.c.h.b16 %v545
      %v644 = vunpack.c.l.b16 %v546
      %v645 = vunpack.c.h.b16 %v546
      %v646 = vunpack.c.l.b16 %v547
      %v647 = vunpack.c.h.b16 %v547
      %v648 = vunpack.c.l.b16 %v548
      %v649 = vunpack.c.h.b16 %v548
      %v650 = vunpack.c.l.b16 %v549
      %v651 = vunpack.c.h.b16 %v549
      %v652 = vunpack.c.l.b16 %v550
      %v653 = vunpack.c.h.b16 %v550
      %v654 = vunpack.c.l.b16 %v551
      %v655 = vunpack.c.h.b16 %v551
      %v656 = vunpack.c.l.b16 %v552
      %v657 = vunpack.c.h.b16 %v552
      %v658 = vunpack.c.l.b16 %v553
      %v659 = vunpack.c.h.b16 %v553
      %v660 = vunpack.c.l.b16 %v554
      %v661 = vunpack.c.h.b16 %v554
      %v662 = vunpack.c.l.b16 %v555
      %v663 = vunpack.c.h.b16 %v555
      %v664 = vunpack.c.l.b16 %v556
      %v665 = vunpack.c.h.b16 %v556
      %v666 = vunpack.c.l.b16 %v557
      %v667 = vunpack.c.h.b16 %v557
      %v668 = vunpack.c.l.b16 %v558
      %v669 = vunpack.c.h.b16 %v558
      %v670 = vunpack.c.l.b16 %v559
      %v671 = vunpack.c.h.b16 %v559
      %v672 = vunpack.c.l.b16 %v560
      %v673 = vunpack.c.h.b16 %v560
      %v674 = vunpack.c.l.b16 %v561
      %v675 = vunpack.c.h.b16 %v561
      %v676 = vunpack.c.l.b16 %v562
      %v677 = vunpack.c.h.b16 %v562
      %v678 = vunpack.c.l.b16 %v563
      %v679 = vunpack.c.h.b16 %v563
      %v680 = vunpack.c.l.b16 %v564
      %v681 = vunpack.c.h.b16 %v564
      %v682 = vunpack.c.l.b16 %v565
      %v683 = vunpack.c.h.b16 %v565
      %v684 = vunpack.c.l.b16 %v566
      %v685 = vunpack.c.h.b16 %v566
      %v686 = vunpack.c.l.b16 %v567
      %v687 = vunpack.c.h.b16 %v567
      %v688 = vunpack.c.l.b16 %v568
      %v689 = vunpack.c.h.b16 %v568
      %v690 = vunpack.c.l.b16 %v569
      %v691 = vunpack.c.h.b16 %v569
      %v692 = vunpack.c.l.b16 %v570
      %v693 = vunpack.c.h.b16 %v570
      %v694 = vunpack.c.l.b16 %v571
      %v695 = vunpack.c.h.b16 %v571
      %v696 = vunpack.c.l.b16 %v572
      %v697 = vunpack.c.h.b16 %v572
      %v698 = vunpack.c.l.b16 %v573
      %v699 = vunpack.c.h.b16 %v573
      %v700 = vunpack.c.l.b16 %v574
      %v701 = vunpack.c.h.b16 %v574
      %v702 = vunpack.c.l.b16 %v575
      %v703 = vunpack.c.h.b16 %v575
      %v704 = vunpack.c.l.b16 %v576
      %v705 = vunpack.c.h.b16 %v576
      %v706 = vunpack.c.l.b16 %v577
      %v707 = vunpack.c.h.b16 %v577
      %v708 = vunpack.c.l.b16 %v578
      %v709 = vunpack.c.h.b16 %v578
      %v710 = vunpack.c.l.b16 %v579
      %v711 = vunpack.c.h.b16 %v579
      %v712 = vunpack.c.l.b16 %v580
      %v713 = vunpack.c.h.b16 %v580
      %v714 = vunpack.c.l.b16 %v581
      %v715 = vunpack.c.h.b16 %v581
      %v716 = vunpack.c.l.b16 %v582
      %v717 = vunpack.c.h.b16 %v582
      %v718 = vunpack.c.l.b16 %v583
      %v719 = vunpack.c.h.b16 %v583
      %v720 = vunpack.c.l.b16 %v584
      %v721 = vunpack.c.h.b16 %v584
      %v722 = vunpack.c.l.b16 %v585
      %v723 = vunpack.c.h.b16 %v585
      %v724 = vunpack.c.l.b16 %v586
      %v725 = vunpack.c.h.b16 %v586
      %v726 = vunpack.c.l.b16 %v587
      %v727 = vunpack.c.h.b16 %v587
      %v728 = vunpack.c.l.b16 %v588
      %v729 = vunpack.c.h.b16 %v588
      %v730 = vunpack.c.l.b16 %v589
      %v731 = vunpack.c.h.b16 %v589
      %v732 = vunpack.c.l.b16 %v590
      %v733 = vunpack.c.h.b16 %v590
      %v734 = vunpack.c.l.b16 %v591
      %v735 = vunpack.c.h.b16 %v591
      %v736 = vpack.c.b16 %v642, %v640
      %v737 = vpack.c.b16 %v643, %v641
      %v738 = vpack.c.b16 %v646, %v644
      %v739 = vpack.c.b16 %v647, %v645
      %v740 = vpack.c.b16 %v650, %v648
      %v741 = vpack.c.b16 %v651, %v649
      %v742 = vpack.c.b16 %v654, %v652
      %v743 = vpack.c.b16 %v655, %v653
      %v744 = vpack.c.b16 %v658, %v656
      %v745 = vpack.c.b16 %v659, %v657
      %v746 = vpack.c.b16 %v662, %v660
      %v747 = vpack.c.b16 %v663, %v661
      %v748 = vpack.c.b16 %v666, %v664
      %v749 = vpack.c.b16 %v667, %v665
      %v750 = vpack.c.b16 %v670, %v668
      %v751 = vpack.c.b16 %v671, %v669
      %v752 = vpack.c.b16 %v674, %v672
      %v753 = vpack.c.b16 %v675, %v673
      %v754 = vpack.c.b16 %v678, %v676
      %v755 = vpack.c.b16 %v679, %v677
      %v756 = vpack.c.b16 %v682, %v680
      %v757 = vpack.c.b16 %v683, %v681
      %v758 = vpack.c.b16 %v686, %v684
      %v759 = vpack.c.b16 %v687, %v685
      %v760 = vpack.c.b16 %v690, %v688
      %v761 = vpack.c.b16 %v691, %v689
      %v762 = vpack.c.b16 %v694, %v692
      %v763 = vpack.c.b16 %v695, %v693
      %v764 = vpack.c.b16 %v698, %v696
      %v765 = vpack.c.b16 %v699, %v697
      %v766 = vpack.c.b16 %v702, %v700
      %v767 = vpack.c.b16 %v703, %v701
      %v768 = vpack.c.b16 %v706, %v704
      %v769 = vpack.c.b16 %v707, %v705
      %v770 = vpack.c.b16 %v710, %v708
      %v771 = vpack.c.b16 %v711, %v709
      %v772 = vpack.c.b16 %v714, %v712
      %v773 = vpack.c.b16 %v715, %v713
      %v774 = vpack.c.b16 %v718, %v716
      %v775 = vpack.c.b16 %v719, %v717
      %v776 = vpack.c.b16 %v722, %v720
      %v777 = vpack.c.b16 %v723, %v721
      %v778 = vpack.c.b16 %v726, %v724
      %v779 = vpack.c.b16 %v727, %v725
      %v780 = vpack.c.b16 %v730, %v728
      %v781 = vpack.c.b16 %v731, %v729
      %v782 = vpack.c.b16 %v734, %v732
      %v783 = vpack.c.b16 %v735, %v733
      %832 = vmatpush.bf16.msra.mxu0 %v535
      %833 = vmatpush.bf16.msra.mxu0 %v534
      %834 = vmatpush.bf16.msra.mxu0 %v533
      %835 = vmatpush.bf16.msra.mxu0 %v532
      %836 = vmatpush.bf16.msra.mxu0 %v531
      %837 = vmatpush.bf16.msra.mxu0 %v530
      %838 = vmatpush.bf16.msra.mxu0 %v529
      %839 = vmatpush.bf16.msra.mxu0 %v528
      %840 = vmatmul.bf16.gmra.mxu0 %v736
      %v841 = vpop.f32.mrf.mxu0
      %v842 = vadd.f32 0.0, %v841
      %v843 = vpop.f32.mrf.mxu0
      %v844 = vadd.f32 0.0, %v843
      %845 = vmatmul.bf16.gmra.mxu0 %v738
      %v846 = vpop.f32.mrf.mxu0
      %v847 = vadd.f32 0.0, %v846
      %v848 = vpop.f32.mrf.mxu0
      %v849 = vadd.f32 0.0, %v848
      %850 = vmatmul.bf16.gmra.mxu0 %v740
      %v851 = vpop.f32.mrf.mxu0
      %v852 = vadd.f32 0.0, %v851
      %v853 = vpop.f32.mrf.mxu0
      %v854 = vadd.f32 0.0, %v853
      %855 = vmatmul.bf16.gmra.mxu0 %v742
      %v856 = vpop.f32.mrf.mxu0
      %v857 = vadd.f32 0.0, %v856
      %v858 = vpop.f32.mrf.mxu0
      %v859 = vadd.f32 0.0, %v858
      %860 = vmatmul.bf16.gmra.mxu0 %v744
      %v861 = vpop.f32.mrf.mxu0
      %v862 = vadd.f32 0.0, %v861
      %v863 = vpop.f32.mrf.mxu0
      %v864 = vadd.f32 0.0, %v863
      %865 = vmatmul.bf16.gmra.mxu0 %v746
      %v866 = vpop.f32.mrf.mxu0
      %v867 = vadd.f32 0.0, %v866
      %v868 = vpop.f32.mrf.mxu0
      %v869 = vadd.f32 0.0, %v868
      %870 = vmatmul.bf16.gmra.mxu0 %v748
      %v871 = vpop.f32.mrf.mxu0
      %v872 = vadd.f32 0.0, %v871
      %v873 = vpop.f32.mrf.mxu0
      %v874 = vadd.f32 0.0, %v873
      %875 = vmatmul.bf16.gmra.mxu0 %v750
      %v876 = vpop.f32.mrf.mxu0
      %v877 = vadd.f32 0.0, %v876
      %v878 = vpop.f32.mrf.mxu0
      %v879 = vadd.f32 0.0, %v878
      %880 = vmatmul.bf16.gmra.mxu0 %v752
      %v881 = vpop.f32.mrf.mxu0
      %v882 = vadd.f32 0.0, %v881
      %v883 = vpop.f32.mrf.mxu0
      %v884 = vadd.f32 0.0, %v883
      %885 = vmatmul.bf16.gmra.mxu0 %v754
      %v886 = vpop.f32.mrf.mxu0
      %v887 = vadd.f32 0.0, %v886
      %v888 = vpop.f32.mrf.mxu0
      %v889 = vadd.f32 0.0, %v888
      %890 = vmatmul.bf16.gmra.mxu0 %v756
      %v891 = vpop.f32.mrf.mxu0
      %v892 = vadd.f32 0.0, %v891
      %v893 = vpop.f32.mrf.mxu0
      %v894 = vadd.f32 0.0, %v893
      %895 = vmatmul.bf16.gmra.mxu0 %v758
      %v896 = vpop.f32.mrf.mxu0
      %v897 = vadd.f32 0.0, %v896
      %v898 = vpop.f32.mrf.mxu0
      %v899 = vadd.f32 0.0, %v898
      %900 = vmatmul.bf16.gmra.mxu0 %v760
      %v901 = vpop.f32.mrf.mxu0
      %v902 = vadd.f32 0.0, %v901
      %v903 = vpop.f32.mrf.mxu0
      %v904 = vadd.f32 0.0, %v903
      %905 = vmatmul.bf16.gmra.mxu0 %v762
      %v906 = vpop.f32.mrf.mxu0
      %v907 = vadd.f32 0.0, %v906
      %v908 = vpop.f32.mrf.mxu0
      %v909 = vadd.f32 0.0, %v908
      %910 = vmatmul.bf16.gmra.mxu0 %v764
      %v911 = vpop.f32.mrf.mxu0
      %v912 = vadd.f32 0.0, %v911
      %v913 = vpop.f32.mrf.mxu0
      %v914 = vadd.f32 0.0, %v913
      %915 = vmatmul.bf16.gmra.mxu0 %v766
      %v916 = vpop.f32.mrf.mxu0
      %v917 = vadd.f32 0.0, %v916
      %v918 = vpop.f32.mrf.mxu0
      %v919 = vadd.f32 0.0, %v918
      %920 = vmatmul.bf16.gmra.mxu0 %v768
      %v921 = vpop.f32.mrf.mxu0
      %v922 = vadd.f32 0.0, %v921
      %v923 = vpop.f32.mrf.mxu0
      %v924 = vadd.f32 0.0, %v923
      %925 = vmatmul.bf16.gmra.mxu0 %v770
      %v926 = vpop.f32.mrf.mxu0
      %v927 = vadd.f32 0.0, %v926
      %v928 = vpop.f32.mrf.mxu0
      %v929 = vadd.f32 0.0, %v928
      %930 = vmatmul.bf16.gmra.mxu0 %v772
      %v931 = vpop.f32.mrf.mxu0
      %v932 = vadd.f32 0.0, %v931
      %v933 = vpop.f32.mrf.mxu0
      %v934 = vadd.f32 0.0, %v933
      %935 = vmatmul.bf16.gmra.mxu0 %v774
      %v936 = vpop.f32.mrf.mxu0
      %v937 = vadd.f32 0.0, %v936
      %v938 = vpop.f32.mrf.mxu0
      %v939 = vadd.f32 0.0, %v938
      %940 = vmatmul.bf16.gmra.mxu0 %v776
      %v941 = vpop.f32.mrf.mxu0
      %v942 = vadd.f32 0.0, %v941
      %v943 = vpop.f32.mrf.mxu0
      %v944 = vadd.f32 0.0, %v943
      %945 = vmatmul.bf16.gmra.mxu0 %v778
      %v946 = vpop.f32.mrf.mxu0
      %v947 = vadd.f32 0.0, %v946
      %v948 = vpop.f32.mrf.mxu0
      %v949 = vadd.f32 0.0, %v948
      %950 = vmatmul.bf16.gmra.mxu0 %v780
      %v951 = vpop.f32.mrf.mxu0
      %v952 = vadd.f32 0.0, %v951
      %v953 = vpop.f32.mrf.mxu0
      %v954 = vadd.f32 0.0, %v953
      %955 = vmatmul.bf16.gmra.mxu0 %v782
      %v956 = vpop.f32.mrf.mxu0
      %v957 = vadd.f32 0.0, %v956
      %v958 = vpop.f32.mrf.mxu0
      %v959 = vadd.f32 0.0, %v958
      %960 = vdwg.mxu0
      %961 = vmatpush.bf16.msra.mxu0 %v543
      %962 = vmatpush.bf16.msra.mxu0 %v542
      %963 = vmatpush.bf16.msra.mxu0 %v541
      %964 = vmatpush.bf16.msra.mxu0 %v540
      %965 = vmatpush.bf16.msra.mxu0 %v539
      %966 = vmatpush.bf16.msra.mxu0 %v538
      %967 = vmatpush.bf16.msra.mxu0 %v537
      %968 = vmatpush.bf16.msra.mxu0 %v536
      %969 = vmatmul.bf16.gmra.mxu0 %v737
      %v970 = vpop.f32.mrf.mxu0
      %v971 = vadd.f32 %v842, %v970
      %v972 = vpop.f32.mrf.mxu0
      %v973 = vadd.f32 %v844, %v972
      %974 = vmatmul.bf16.gmra.mxu0 %v739
      %v975 = vpop.f32.mrf.mxu0
      %v976 = vadd.f32 %v847, %v975
      %v977 = vpop.f32.mrf.mxu0
      %v978 = vadd.f32 %v849, %v977
      %979 = vmatmul.bf16.gmra.mxu0 %v741
      %v980 = vpop.f32.mrf.mxu0
      %v981 = vadd.f32 %v852, %v980
      %v982 = vpop.f32.mrf.mxu0
      %v983 = vadd.f32 %v854, %v982
      %984 = vmatmul.bf16.gmra.mxu0 %v743
      %v985 = vpop.f32.mrf.mxu0
      %v986 = vadd.f32 %v857, %v985
      %v987 = vpop.f32.mrf.mxu0
      %v988 = vadd.f32 %v859, %v987
      %989 = vmatmul.bf16.gmra.mxu0 %v745
      %v990 = vpop.f32.mrf.mxu0
      %v991 = vadd.f32 %v862, %v990
      %v992 = vpop.f32.mrf.mxu0
      %v993 = vadd.f32 %v864, %v992
      %994 = vmatmul.bf16.gmra.mxu0 %v747
      %v995 = vpop.f32.mrf.mxu0
      %v996 = vadd.f32 %v867, %v995
      %v997 = vpop.f32.mrf.mxu0
      %v998 = vadd.f32 %v869, %v997
      %999 = vmatmul.bf16.gmra.mxu0 %v749
      %v1000 = vpop.f32.mrf.mxu0
      %v1001 = vadd.f32 %v872, %v1000
      %v1002 = vpop.f32.mrf.mxu0
      %v1003 = vadd.f32 %v874, %v1002
      %1004 = vmatmul.bf16.gmra.mxu0 %v751
      %v1005 = vpop.f32.mrf.mxu0
      %v1006 = vadd.f32 %v877, %v1005
      %v1007 = vpop.f32.mrf.mxu0
      %v1008 = vadd.f32 %v879, %v1007
      %1009 = vmatmul.bf16.gmra.mxu0 %v753
      %v1010 = vpop.f32.mrf.mxu0
      %v1011 = vadd.f32 %v882, %v1010
      %v1012 = vpop.f32.mrf.mxu0
      %v1013 = vadd.f32 %v884, %v1012
      %1014 = vmatmul.bf16.gmra.mxu0 %v755
      %v1015 = vpop.f32.mrf.mxu0
      %v1016 = vadd.f32 %v887, %v1015
      %v1017 = vpop.f32.mrf.mxu0
      %v1018 = vadd.f32 %v889, %v1017
      %1019 = vmatmul.bf16.gmra.mxu0 %v757
      %v1020 = vpop.f32.mrf.mxu0
      %v1021 = vadd.f32 %v892, %v1020
      %v1022 = vpop.f32.mrf.mxu0
      %v1023 = vadd.f32 %v894, %v1022
      %1024 = vmatmul.bf16.gmra.mxu0 %v759
      %v1025 = vpop.f32.mrf.mxu0
      %v1026 = vadd.f32 %v897, %v1025
      %v1027 = vpop.f32.mrf.mxu0
      %v1028 = vadd.f32 %v899, %v1027
      %1029 = vmatmul.bf16.gmra.mxu0 %v761
      %v1030 = vpop.f32.mrf.mxu0
      %v1031 = vadd.f32 %v902, %v1030
      %v1032 = vpop.f32.mrf.mxu0
      %v1033 = vadd.f32 %v904, %v1032
      %1034 = vmatmul.bf16.gmra.mxu0 %v763
      %v1035 = vpop.f32.mrf.mxu0
      %v1036 = vadd.f32 %v907, %v1035
      %v1037 = vpop.f32.mrf.mxu0
      %v1038 = vadd.f32 %v909, %v1037
      %1039 = vmatmul.bf16.gmra.mxu0 %v765
      %v1040 = vpop.f32.mrf.mxu0
      %v1041 = vadd.f32 %v912, %v1040
      %v1042 = vpop.f32.mrf.mxu0
      %v1043 = vadd.f32 %v914, %v1042
      %1044 = vmatmul.bf16.gmra.mxu0 %v767
      %v1045 = vpop.f32.mrf.mxu0
      %v1046 = vadd.f32 %v917, %v1045
      %v1047 = vpop.f32.mrf.mxu0
      %v1048 = vadd.f32 %v919, %v1047
      %1049 = vmatmul.bf16.gmra.mxu0 %v769
      %v1050 = vpop.f32.mrf.mxu0
      %v1051 = vadd.f32 %v922, %v1050
      %v1052 = vpop.f32.mrf.mxu0
      %v1053 = vadd.f32 %v924, %v1052
      %1054 = vmatmul.bf16.gmra.mxu0 %v771
      %v1055 = vpop.f32.mrf.mxu0
      %v1056 = vadd.f32 %v927, %v1055
      %v1057 = vpop.f32.mrf.mxu0
      %v1058 = vadd.f32 %v929, %v1057
      %1059 = vmatmul.bf16.gmra.mxu0 %v773
      %v1060 = vpop.f32.mrf.mxu0
      %v1061 = vadd.f32 %v932, %v1060
      %v1062 = vpop.f32.mrf.mxu0
      %v1063 = vadd.f32 %v934, %v1062
      %1064 = vmatmul.bf16.gmra.mxu0 %v775
      %v1065 = vpop.f32.mrf.mxu0
      %v1066 = vadd.f32 %v937, %v1065
      %v1067 = vpop.f32.mrf.mxu0
      %v1068 = vadd.f32 %v939, %v1067
      %1069 = vmatmul.bf16.gmra.mxu0 %v777
      %v1070 = vpop.f32.mrf.mxu0
      %v1071 = vadd.f32 %v942, %v1070
      %v1072 = vpop.f32.mrf.mxu0
      %v1073 = vadd.f32 %v944, %v1072
      %1074 = vmatmul.bf16.gmra.mxu0 %v779
      %v1075 = vpop.f32.mrf.mxu0
      %v1076 = vadd.f32 %v947, %v1075
      %v1077 = vpop.f32.mrf.mxu0
      %v1078 = vadd.f32 %v949, %v1077
      %1079 = vmatmul.bf16.gmra.mxu0 %v781
      %v1080 = vpop.f32.mrf.mxu0
      %v1081 = vadd.f32 %v952, %v1080
      %v1082 = vpop.f32.mrf.mxu0
      %v1083 = vadd.f32 %v954, %v1082
      %1084 = vmatmul.bf16.gmra.mxu0 %v783
      %v1085 = vpop.f32.mrf.mxu0
      %v1086 = vadd.f32 %v957, %v1085
      %v1087 = vpop.f32.mrf.mxu0
      %v1088 = vadd.f32 %v959, %v1087
      %1089 = vdwg.mxu0
      %v1090 = vpack.c.bf16 %v971, %v971
      %v1091 = vpack.c.bf16 %v973, %v973
      %v1092 = vpack.c.bf16 %v976, %v976
      %v1093 = vpack.c.bf16 %v978, %v978
      %v1094 = vpack.c.bf16 %v981, %v981
      %v1095 = vpack.c.bf16 %v983, %v983
      %v1096 = vpack.c.bf16 %v986, %v986
      %v1097 = vpack.c.bf16 %v988, %v988
      %v1098 = vpack.c.bf16 %v991, %v991
      %v1099 = vpack.c.bf16 %v993, %v993
      %v1100 = vpack.c.bf16 %v996, %v996
      %v1101 = vpack.c.bf16 %v998, %v998
      %v1102 = vpack.c.bf16 %v1001, %v1001
      %v1103 = vpack.c.bf16 %v1003, %v1003
      %v1104 = vpack.c.bf16 %v1006, %v1006
      %v1105 = vpack.c.bf16 %v1008, %v1008
      %v1106 = vpack.c.bf16 %v1011, %v1011
      %v1107 = vpack.c.bf16 %v1013, %v1013
      %v1108 = vpack.c.bf16 %v1016, %v1016
      %v1109 = vpack.c.bf16 %v1018, %v1018
      %v1110 = vpack.c.bf16 %v1021, %v1021
      %v1111 = vpack.c.bf16 %v1023, %v1023
      %v1112 = vpack.c.bf16 %v1026, %v1026
      %v1113 = vpack.c.bf16 %v1028, %v1028
      %v1114 = vpack.c.bf16 %v1031, %v1031
      %v1115 = vpack.c.bf16 %v1033, %v1033
      %v1116 = vpack.c.bf16 %v1036, %v1036
      %v1117 = vpack.c.bf16 %v1038, %v1038
      %v1118 = vpack.c.bf16 %v1041, %v1041
      %v1119 = vpack.c.bf16 %v1043, %v1043
      %v1120 = vpack.c.bf16 %v1046, %v1046
      %v1121 = vpack.c.bf16 %v1048, %v1048
      %v1122 = vpack.c.bf16 %v1051, %v1051
      %v1123 = vpack.c.bf16 %v1053, %v1053
      %v1124 = vpack.c.bf16 %v1056, %v1056
      %v1125 = vpack.c.bf16 %v1058, %v1058
      %v1126 = vpack.c.bf16 %v1061, %v1061
      %v1127 = vpack.c.bf16 %v1063, %v1063
      %v1128 = vpack.c.bf16 %v1066, %v1066
      %v1129 = vpack.c.bf16 %v1068, %v1068
      %v1130 = vpack.c.bf16 %v1071, %v1071
      %v1131 = vpack.c.bf16 %v1073, %v1073
      %v1132 = vpack.c.bf16 %v1076, %v1076
      %v1133 = vpack.c.bf16 %v1078, %v1078
      %v1134 = vpack.c.bf16 %v1081, %v1081
      %v1135 = vpack.c.bf16 %v1083, %v1083
      %v1136 = vpack.c.bf16 %v1086, %v1086
      %v1137 = vpack.c.bf16 %v1088, %v1088
      %v1138 = vld [vmem:[%s2] sm:$0xf]
      %v1139 = vld [vmem:[%s2 + $0x4] sm:$0x7]
      %s1140 = scalar_lea.vmem %s2, 8
      %v1141 = vld [vmem:[%s1140] sm:$0xf]
      %v1142 = vld [vmem:[%s1140 + $0x4] sm:$0x7]
      %v1159 = vunpack.c.l.b16 %v1106
      %v1160 = vunpack.c.l.b16 %v1107
      %v1161 = vunpack.c.l.b16 %v1108
      %v1162 = vunpack.c.l.b16 %v1109
      %v1163 = vunpack.c.l.b16 %v1110
      %v1164 = vunpack.c.l.b16 %v1111
      %v1165 = vunpack.c.l.b16 %v1112
      %v1166 = vunpack.c.l.b16 %v1113
      %v1167 = vunpack.c.l.b16 %v1114
      %v1168 = vunpack.c.l.b16 %v1115
      %v1169 = vunpack.c.l.b16 %v1116
      %v1170 = vunpack.c.l.b16 %v1117
      %v1171 = vunpack.c.l.b16 %v1118
      %v1172 = vunpack.c.l.b16 %v1119
      %v1173 = vunpack.c.l.b16 %v1120
      %v1174 = vunpack.c.l.b16 %v1121
      %v1175 = vpack.c.b16 %v1160, %v1159
      %v1176 = vpack.c.b16 %v1162, %v1161
      %v1177 = vpack.c.b16 %v1164, %v1163
      %v1178 = vpack.c.b16 %v1166, %v1165
      %v1179 = vpack.c.b16 %v1168, %v1167
      %v1180 = vpack.c.b16 %v1170, %v1169
      %v1181 = vpack.c.b16 %v1172, %v1171
      %v1182 = vpack.c.b16 %v1174, %v1173
      %v1185 = vunpack.c.l.b16 %v1141
      %v1186 = vunpack.c.l.b16 %v1142
      %v1187 = vpack.c.b16 %v1186, %v1185
      %vm1188 = vcmask 113664
      %v1190 = vsel %vm1188, %v1175, 0
      %v1193 = vsel %vm1188, %v1176, 0
      %v1196 = vsel %vm1188, %v1177, 0
      %v1199 = vsel %vm1188, %v1178, 0
      %v1202 = vsel %vm1188, %v1179, 0
      %v1205 = vsel %vm1188, %v1180, 0
      %v1208 = vsel %vm1188, %v1181, 0
      %v1211 = vsel %vm1188, %v1182, 0
      %vm1213 = vcmask 1046528
      %v1215 = vsel %vm1213, %v1187, 0
      %1217 = vmatpush.bf16.msra.mxu0 0
      %1218 = vmatpush.bf16.msra.mxu0 0
      %1219 = vmatpush.bf16.msra.mxu0 0
      %1220 = vmatpush.bf16.msra.mxu0 0
      %1221 = vmatpush.bf16.msra.mxu0 0
      %1222 = vmatpush.bf16.msra.mxu0 0
      %1223 = vmatpush.bf16.msra.mxu0 0
      %1224 = vmatpush.bf16.msra.mxu0 %v1215
      %1225 = vmatmul.bf16.gmra.mxu0 %v1190
      %v1226 = vpop.f32.mrf.mxu0
      %v1227 = vadd.f32 0.0, %v1226
      %v1228 = vpop.f32.mrf.mxu0
      %v1229 = vadd.f32 0.0, %v1228
      %1230 = vmatmul.bf16.gmra.mxu0 %v1193
      %v1231 = vpop.f32.mrf.mxu0
      %v1232 = vadd.f32 0.0, %v1231
      %v1233 = vpop.f32.mrf.mxu0
      %v1234 = vadd.f32 0.0, %v1233
      %1235 = vmatmul.bf16.gmra.mxu0 %v1196
      %v1236 = vpop.f32.mrf.mxu0
      %v1237 = vadd.f32 0.0, %v1236
      %v1238 = vpop.f32.mrf.mxu0
      %v1239 = vadd.f32 0.0, %v1238
      %1240 = vmatmul.bf16.gmra.mxu0 %v1199
      %v1241 = vpop.f32.mrf.mxu0
      %v1242 = vadd.f32 0.0, %v1241
      %v1243 = vpop.f32.mrf.mxu0
      %v1244 = vadd.f32 0.0, %v1243
      %1245 = vmatmul.bf16.gmra.mxu0 %v1202
      %v1246 = vpop.f32.mrf.mxu0
      %v1247 = vadd.f32 0.0, %v1246
      %v1248 = vpop.f32.mrf.mxu0
      %v1249 = vadd.f32 0.0, %v1248
      %1250 = vmatmul.bf16.gmra.mxu0 %v1205
      %v1251 = vpop.f32.mrf.mxu0
      %v1252 = vadd.f32 0.0, %v1251
      %v1253 = vpop.f32.mrf.mxu0
      %v1254 = vadd.f32 0.0, %v1253
      %1255 = vmatmul.bf16.gmra.mxu0 %v1208
      %v1256 = vpop.f32.mrf.mxu0
      %v1257 = vadd.f32 0.0, %v1256
      %v1258 = vpop.f32.mrf.mxu0
      %v1259 = vadd.f32 0.0, %v1258
      %1260 = vmatmul.bf16.gmra.mxu0 %v1211
      %v1261 = vpop.f32.mrf.mxu0
      %v1262 = vadd.f32 0.0, %v1261
      %v1263 = vpop.f32.mrf.mxu0
      %v1264 = vadd.f32 0.0, %v1263
      %1265 = vdwg.mxu0
      %v1282 = vunpack.c.l.b16 %v1090
      %v1283 = vunpack.c.l.b16 %v1091
      %v1284 = vunpack.c.l.b16 %v1092
      %v1285 = vunpack.c.l.b16 %v1093
      %v1286 = vunpack.c.l.b16 %v1094
      %v1287 = vunpack.c.l.b16 %v1095
      %v1288 = vunpack.c.l.b16 %v1096
      %v1289 = vunpack.c.l.b16 %v1097
      %v1290 = vunpack.c.l.b16 %v1098
      %v1291 = vunpack.c.l.b16 %v1099
      %v1292 = vunpack.c.l.b16 %v1100
      %v1293 = vunpack.c.l.b16 %v1101
      %v1294 = vunpack.c.l.b16 %v1102
      %v1295 = vunpack.c.l.b16 %v1103
      %v1296 = vunpack.c.l.b16 %v1104
      %v1297 = vunpack.c.l.b16 %v1105
      %v1298 = vpack.c.b16 %v1283, %v1282
      %v1299 = vpack.c.b16 %v1285, %v1284
      %v1300 = vpack.c.b16 %v1287, %v1286
      %v1301 = vpack.c.b16 %v1289, %v1288
      %v1302 = vpack.c.b16 %v1291, %v1290
      %v1303 = vpack.c.b16 %v1293, %v1292
      %v1304 = vpack.c.b16 %v1295, %v1294
      %v1305 = vpack.c.b16 %v1297, %v1296
      %v1308 = vunpack.c.l.b16 %v1138
      %v1309 = vunpack.c.l.b16 %v1139
      %v1310 = vpack.c.b16 %v1309, %v1308
      %v1312 = vsel %vm1188, %v1298, 0
      %v1315 = vsel %vm1188, %v1299, 0
      %v1318 = vsel %vm1188, %v1300, 0
      %v1321 = vsel %vm1188, %v1301, 0
      %v1324 = vsel %vm1188, %v1302, 0
      %v1327 = vsel %vm1188, %v1303, 0
      %v1330 = vsel %vm1188, %v1304, 0
      %v1333 = vsel %vm1188, %v1305, 0
      %v1336 = vsel %vm1213, %v1310, 0
      %1338 = vmatpush.bf16.msra.mxu0 0
      %1339 = vmatpush.bf16.msra.mxu0 0
      %1340 = vmatpush.bf16.msra.mxu0 0
      %1341 = vmatpush.bf16.msra.mxu0 0
      %1342 = vmatpush.bf16.msra.mxu0 0
      %1343 = vmatpush.bf16.msra.mxu0 0
      %1344 = vmatpush.bf16.msra.mxu0 0
      %1345 = vmatpush.bf16.msra.mxu0 %v1336
      %1346 = vmatmul.bf16.gmra.mxu0 %v1312
      %v1347 = vpop.f32.mrf.mxu0
      %v1348 = vadd.f32 %v1227, %v1347
      %v1349 = vpop.f32.mrf.mxu0
      %v1350 = vadd.f32 %v1229, %v1349
      %1351 = vmatmul.bf16.gmra.mxu0 %v1315
      %v1352 = vpop.f32.mrf.mxu0
      %v1353 = vadd.f32 %v1232, %v1352
      %v1354 = vpop.f32.mrf.mxu0
      %v1355 = vadd.f32 %v1234, %v1354
      %1356 = vmatmul.bf16.gmra.mxu0 %v1318
      %v1357 = vpop.f32.mrf.mxu0
      %v1358 = vadd.f32 %v1237, %v1357
      %v1359 = vpop.f32.mrf.mxu0
      %v1360 = vadd.f32 %v1239, %v1359
      %1361 = vmatmul.bf16.gmra.mxu0 %v1321
      %v1362 = vpop.f32.mrf.mxu0
      %v1363 = vadd.f32 %v1242, %v1362
      %v1364 = vpop.f32.mrf.mxu0
      %v1365 = vadd.f32 %v1244, %v1364
      %1366 = vmatmul.bf16.gmra.mxu0 %v1324
      %v1367 = vpop.f32.mrf.mxu0
      %v1368 = vadd.f32 %v1247, %v1367
      %v1369 = vpop.f32.mrf.mxu0
      %v1370 = vadd.f32 %v1249, %v1369
      %1371 = vmatmul.bf16.gmra.mxu0 %v1327
      %v1372 = vpop.f32.mrf.mxu0
      %v1373 = vadd.f32 %v1252, %v1372
      %v1374 = vpop.f32.mrf.mxu0
      %v1375 = vadd.f32 %v1254, %v1374
      %1376 = vmatmul.bf16.gmra.mxu0 %v1330
      %v1377 = vpop.f32.mrf.mxu0
      %v1378 = vadd.f32 %v1257, %v1377
      %v1379 = vpop.f32.mrf.mxu0
      %v1380 = vadd.f32 %v1259, %v1379
      %1381 = vmatmul.bf16.gmra.mxu0 %v1333
      %v1382 = vpop.f32.mrf.mxu0
      %v1383 = vadd.f32 %v1262, %v1382
      %v1384 = vpop.f32.mrf.mxu0
      %v1385 = vadd.f32 %v1264, %v1384
      %1386 = vdwg.mxu0
      %s1387 = scalar_lea.vmem %s2, 16
      %v1388 = vld [vmem:[%s1387] sm:$0xf]
      %v1389 = vld [vmem:[%s1387 + $0x4] sm:$0x7]
      %v1406 = vunpack.c.l.b16 %v1122
      %v1407 = vunpack.c.l.b16 %v1123
      %v1408 = vunpack.c.l.b16 %v1124
      %v1409 = vunpack.c.l.b16 %v1125
      %v1410 = vunpack.c.l.b16 %v1126
      %v1411 = vunpack.c.l.b16 %v1127
      %v1412 = vunpack.c.l.b16 %v1128
      %v1413 = vunpack.c.l.b16 %v1129
      %v1414 = vunpack.c.l.b16 %v1130
      %v1415 = vunpack.c.l.b16 %v1131
      %v1416 = vunpack.c.l.b16 %v1132
      %v1417 = vunpack.c.l.b16 %v1133
      %v1418 = vunpack.c.l.b16 %v1134
      %v1419 = vunpack.c.l.b16 %v1135
      %v1420 = vunpack.c.l.b16 %v1136
      %v1421 = vunpack.c.l.b16 %v1137
      %v1422 = vpack.c.b16 %v1407, %v1406
      %v1423 = vpack.c.b16 %v1409, %v1408
      %v1424 = vpack.c.b16 %v1411, %v1410
      %v1425 = vpack.c.b16 %v1413, %v1412
      %v1426 = vpack.c.b16 %v1415, %v1414
      %v1427 = vpack.c.b16 %v1417, %v1416
      %v1428 = vpack.c.b16 %v1419, %v1418
      %v1429 = vpack.c.b16 %v1421, %v1420
      %v1432 = vunpack.c.l.b16 %v1388
      %v1433 = vunpack.c.l.b16 %v1389
      %v1434 = vpack.c.b16 %v1433, %v1432
      %v1436 = vsel %vm1188, %v1422, 0
      %v1439 = vsel %vm1188, %v1423, 0
      %v1442 = vsel %vm1188, %v1424, 0
      %v1445 = vsel %vm1188, %v1425, 0
      %v1448 = vsel %vm1188, %v1426, 0
      %v1451 = vsel %vm1188, %v1427, 0
      %v1454 = vsel %vm1188, %v1428, 0
      %v1457 = vsel %vm1188, %v1429, 0
      %v1460 = vsel %vm1213, %v1434, 0
      %1462 = vmatpush.bf16.msra.mxu0 0
      %1463 = vmatpush.bf16.msra.mxu0 0
      %1464 = vmatpush.bf16.msra.mxu0 0
      %1465 = vmatpush.bf16.msra.mxu0 0
      %1466 = vmatpush.bf16.msra.mxu0 0
      %1467 = vmatpush.bf16.msra.mxu0 0
      %1468 = vmatpush.bf16.msra.mxu0 0
      %1469 = vmatpush.bf16.msra.mxu0 %v1460
      %1470 = vmatmul.bf16.gmra.mxu0 %v1436
      %v1471 = vpop.f32.mrf.mxu0
      %v1472 = vadd.f32 0.0, %v1471
      %v1473 = vpop.f32.mrf.mxu0
      %v1474 = vadd.f32 0.0, %v1473
      %1475 = vmatmul.bf16.gmra.mxu0 %v1439
      %v1476 = vpop.f32.mrf.mxu0
      %v1477 = vadd.f32 0.0, %v1476
      %v1478 = vpop.f32.mrf.mxu0
      %v1479 = vadd.f32 0.0, %v1478
      %1480 = vmatmul.bf16.gmra.mxu0 %v1442
      %v1481 = vpop.f32.mrf.mxu0
      %v1482 = vadd.f32 0.0, %v1481
      %v1483 = vpop.f32.mrf.mxu0
      %v1484 = vadd.f32 0.0, %v1483
      %1485 = vmatmul.bf16.gmra.mxu0 %v1445
      %v1486 = vpop.f32.mrf.mxu0
      %v1487 = vadd.f32 0.0, %v1486
      %v1488 = vpop.f32.mrf.mxu0
      %v1489 = vadd.f32 0.0, %v1488
      %1490 = vmatmul.bf16.gmra.mxu0 %v1448
      %v1491 = vpop.f32.mrf.mxu0
      %v1492 = vadd.f32 0.0, %v1491
      %v1493 = vpop.f32.mrf.mxu0
      %v1494 = vadd.f32 0.0, %v1493
      %1495 = vmatmul.bf16.gmra.mxu0 %v1451
      %v1496 = vpop.f32.mrf.mxu0
      %v1497 = vadd.f32 0.0, %v1496
      %v1498 = vpop.f32.mrf.mxu0
      %v1499 = vadd.f32 0.0, %v1498
      %1500 = vmatmul.bf16.gmra.mxu0 %v1454
      %v1501 = vpop.f32.mrf.mxu0
      %v1502 = vadd.f32 0.0, %v1501
      %v1503 = vpop.f32.mrf.mxu0
      %v1504 = vadd.f32 0.0, %v1503
      %1505 = vmatmul.bf16.gmra.mxu0 %v1457
      %v1506 = vpop.f32.mrf.mxu0
      %v1507 = vadd.f32 0.0, %v1506
      %v1508 = vpop.f32.mrf.mxu0
      %v1509 = vadd.f32 0.0, %v1508
      %1510 = vdwg.mxu0
      %v1511 = vadd.f32 %v1348, %v1472
      %v1512 = vadd.f32 %v1350, %v1474
      %v1513 = vadd.f32 %v1353, %v1477
      %v1514 = vadd.f32 %v1355, %v1479
      %v1515 = vadd.f32 %v1358, %v1482
      %v1516 = vadd.f32 %v1360, %v1484
      %v1517 = vadd.f32 %v1363, %v1487
      %v1518 = vadd.f32 %v1365, %v1489
      %v1519 = vadd.f32 %v1368, %v1492
      %v1520 = vadd.f32 %v1370, %v1494
      %v1521 = vadd.f32 %v1373, %v1497
      %v1522 = vadd.f32 %v1375, %v1499
      %v1523 = vadd.f32 %v1378, %v1502
      %v1524 = vadd.f32 %v1380, %v1504
      %v1525 = vadd.f32 %v1383, %v1507
      %v1526 = vadd.f32 %v1385, %v1509
      %v1527 = vld [vmem:[%s3] sm:$0x1]
      %v1529 = vperm.slane %v1527, 0
      %v1531 = vadd.f32 %v1511, %v1529
      %v1532 = vadd.f32 %v1512, %v1529
      %v1533 = vadd.f32 %v1513, %v1529
      %v1534 = vadd.f32 %v1514, %v1529
      %v1535 = vadd.f32 %v1515, %v1529
      %v1536 = vadd.f32 %v1516, %v1529
      %v1537 = vadd.f32 %v1517, %v1529
      %v1538 = vadd.f32 %v1518, %v1529
      %v1539 = vadd.f32 %v1519, %v1529
      %v1540 = vadd.f32 %v1520, %v1529
      %v1541 = vadd.f32 %v1521, %v1529
      %v1542 = vadd.f32 %v1522, %v1529
      %v1543 = vadd.f32 %v1523, %v1529
      %v1544 = vadd.f32 %v1524, %v1529
      %v1545 = vadd.f32 %v1525, %v1529
      %v1546 = vadd.f32 %v1526, %v1529
      %v1547 = vmul.f32 %v1531, 0.01
      %v1548 = vmul.f32 %v1532, 0.01
      %v1549 = vmul.f32 %v1533, 0.01
      %v1550 = vmul.f32 %v1534, 0.01
      %v1551 = vmul.f32 %v1535, 0.01
      %v1552 = vmul.f32 %v1536, 0.01
      %v1553 = vmul.f32 %v1537, 0.01
      %v1554 = vmul.f32 %v1538, 0.01
      %v1555 = vmul.f32 %v1539, 0.01
      %v1556 = vmul.f32 %v1540, 0.01
      %v1557 = vmul.f32 %v1541, 0.01
      %v1558 = vmul.f32 %v1542, 0.01
      %v1559 = vmul.f32 %v1543, 0.01
      %v1560 = vmul.f32 %v1544, 0.01
      %v1561 = vmul.f32 %v1545, 0.01
      %v1562 = vmul.f32 %v1546, 0.01
      %v1563 = vmax.f32 %v1531, %v1547
      %v1564 = vmax.f32 %v1532, %v1548
      %v1565 = vmax.f32 %v1533, %v1549
      %v1566 = vmax.f32 %v1534, %v1550
      %v1567 = vmax.f32 %v1535, %v1551
      %v1568 = vmax.f32 %v1536, %v1552
      %v1569 = vmax.f32 %v1537, %v1553
      %v1570 = vmax.f32 %v1538, %v1554
      %v1571 = vmax.f32 %v1539, %v1555
      %v1572 = vmax.f32 %v1540, %v1556
      %v1573 = vmax.f32 %v1541, %v1557
      %v1574 = vmax.f32 %v1542, %v1558
      %v1575 = vmax.f32 %v1543, %v1559
      %v1576 = vmax.f32 %v1544, %v1560
      %v1577 = vmax.f32 %v1545, %v1561
      %v1578 = vmax.f32 %v1546, %v1562
      %v1579 = vpack.c.bf16 %v1564, %v1563
      %v1580 = vpack.c.bf16 %v1566, %v1565
      %v1581 = vpack.c.bf16 %v1568, %v1567
      %v1582 = vpack.c.bf16 %v1570, %v1569
      %v1583 = vpack.c.bf16 %v1572, %v1571
      %v1584 = vpack.c.bf16 %v1574, %v1573
      %v1585 = vpack.c.bf16 %v1576, %v1575
      %v1586 = vpack.c.bf16 %v1578, %v1577
      %v1587 = vld [vmem:[%s4] sm:$0xf]
      %v1588 = vld [vmem:[%s4 + $0x4] sm:$0xf]
      %v1589 = vld [vmem:[%s4 + $0x8] sm:$0xf]
      %v1590 = vld [vmem:[%s4 + $0xc] sm:$0xf]
      %v1591 = vld [vmem:[%s4 + $0x10] sm:$0xf]
      %v1592 = vld [vmem:[%s4 + $0x14] sm:$0xf]
      %v1593 = vld [vmem:[%s4 + $0x18] sm:$0xf]
      %v1594 = vld [vmem:[%s4 + $0x1c] sm:$0xf]
      %v1595 = vld [vmem:[%s4 + $0x20] sm:$0xf]
      %v1596 = vld [vmem:[%s4 + $0x24] sm:$0xf]
      %v1597 = vld [vmem:[%s4 + $0x28] sm:$0xf]
      %v1598 = vld [vmem:[%s4 + $0x2c] sm:$0xf]
      %v1599 = vld [vmem:[%s4 + $0x30] sm:$0xf]
      %v1600 = vld [vmem:[%s4 + $0x34] sm:$0xf]
      %v1601 = vld [vmem:[%s4 + $0x38] sm:$0xf]
      %v1617 = vunpack.c.l.b16 %v1587
      %v1618 = vunpack.c.l.b16 %v1588
      %v1619 = vunpack.c.l.b16 %v1589
      %v1620 = vunpack.c.l.b16 %v1590
      %v1621 = vunpack.c.l.b16 %v1591
      %v1622 = vunpack.c.l.b16 %v1592
      %v1623 = vunpack.c.l.b16 %v1593
      %v1624 = vunpack.c.l.b16 %v1594
      %v1625 = vunpack.c.l.b16 %v1595
      %v1626 = vunpack.c.l.b16 %v1596
      %v1627 = vunpack.c.l.b16 %v1597
      %v1628 = vunpack.c.l.b16 %v1598
      %v1629 = vunpack.c.l.b16 %v1599
      %v1630 = vunpack.c.l.b16 %v1600
      %v1631 = vunpack.c.l.b16 %v1601
      %v1632 = vpack.c.b16 %v1618, %v1617
      %v1633 = vpack.c.b16 %v1620, %v1619
      %v1634 = vpack.c.b16 %v1622, %v1621
      %v1635 = vpack.c.b16 %v1624, %v1623
      %v1636 = vpack.c.b16 %v1626, %v1625
      %v1637 = vpack.c.b16 %v1628, %v1627
      %v1638 = vpack.c.b16 %v1630, %v1629
      %v1639 = vpack.c.b16 %v1631, %v1631
      %1648 = vmatpush.bf16.msra.mxu0 %v1586
      %1649 = vmatpush.bf16.msra.mxu0 %v1585
      %1650 = vmatpush.bf16.msra.mxu0 %v1584
      %1651 = vmatpush.bf16.msra.mxu0 %v1583
      %1652 = vmatpush.bf16.msra.mxu0 %v1582
      %1653 = vmatpush.bf16.msra.mxu0 %v1581
      %1654 = vmatpush.bf16.msra.mxu0 %v1580
      %1655 = vmatpush.bf16.msra.mxu0 %v1579
      %1656 = vmatmul.bf16.gmra.mxu0 %v1632
      %v1657 = vpop.f32.mrf.mxu0
      %v1658 = vadd.f32 0.0, %v1657
      %v1659 = vpop.f32.mrf.mxu0
      %v1660 = vadd.f32 0.0, %v1659
      %1661 = vmatmul.bf16.gmra.mxu0 %v1633
      %v1662 = vpop.f32.mrf.mxu0
      %v1663 = vadd.f32 0.0, %v1662
      %v1664 = vpop.f32.mrf.mxu0
      %v1665 = vadd.f32 0.0, %v1664
      %1666 = vmatmul.bf16.gmra.mxu0 %v1634
      %v1667 = vpop.f32.mrf.mxu0
      %v1668 = vadd.f32 0.0, %v1667
      %v1669 = vpop.f32.mrf.mxu0
      %v1670 = vadd.f32 0.0, %v1669
      %1671 = vmatmul.bf16.gmra.mxu0 %v1635
      %v1672 = vpop.f32.mrf.mxu0
      %v1673 = vadd.f32 0.0, %v1672
      %v1674 = vpop.f32.mrf.mxu0
      %v1675 = vadd.f32 0.0, %v1674
      %1676 = vmatmul.bf16.gmra.mxu0 %v1636
      %v1677 = vpop.f32.mrf.mxu0
      %v1678 = vadd.f32 0.0, %v1677
      %v1679 = vpop.f32.mrf.mxu0
      %v1680 = vadd.f32 0.0, %v1679
      %1681 = vmatmul.bf16.gmra.mxu0 %v1637
      %v1682 = vpop.f32.mrf.mxu0
      %v1683 = vadd.f32 0.0, %v1682
      %v1684 = vpop.f32.mrf.mxu0
      %v1685 = vadd.f32 0.0, %v1684
      %1686 = vmatmul.bf16.gmra.mxu0 %v1638
      %v1687 = vpop.f32.mrf.mxu0
      %v1688 = vadd.f32 0.0, %v1687
      %v1689 = vpop.f32.mrf.mxu0
      %v1690 = vadd.f32 0.0, %v1689
      %1691 = vmatmul.bf16.gmra.mxu0 %v1639
      %v1692 = vpop.f32.mrf.mxu0
      %v1693 = vadd.f32 0.0, %v1692
      %v1694 = vpop.f32.mrf.mxu0
      %1695 = vdwg.mxu0
      %v1696 = vpack.c.bf16 %v1658, %v1658
      %v1697 = vpack.c.bf16 %v1660, %v1660
      %v1698 = vpack.c.bf16 %v1663, %v1663
      %v1699 = vpack.c.bf16 %v1665, %v1665
      %v1700 = vpack.c.bf16 %v1668, %v1668
      %v1701 = vpack.c.bf16 %v1670, %v1670
      %v1702 = vpack.c.bf16 %v1673, %v1673
      %v1703 = vpack.c.bf16 %v1675, %v1675
      %v1704 = vpack.c.bf16 %v1678, %v1678
      %v1705 = vpack.c.bf16 %v1680, %v1680
      %v1706 = vpack.c.bf16 %v1683, %v1683
      %v1707 = vpack.c.bf16 %v1685, %v1685
      %v1708 = vpack.c.bf16 %v1688, %v1688
      %v1709 = vpack.c.bf16 %v1690, %v1690
      %v1710 = vpack.c.bf16 %v1693, %v1693
      %v1711 = vld [vmem:[%s5] sm:$0xf]
      %v1712 = vld [vmem:[%s5 + $0x4] sm:$0xf]
      %v1713 = vld [vmem:[%s5 + $0x8] sm:$0xf]
      %v1714 = vld [vmem:[%s5 + $0xc] sm:$0xf]
      %v1715 = vld [vmem:[%s5 + $0x10] sm:$0xf]
      %v1716 = vld [vmem:[%s5 + $0x14] sm:$0x1]
      %s1717 = scalar_lea.vmem %s5, 24
      %v1718 = vld [vmem:[%s1717] sm:$0xf]
      %v1719 = vld [vmem:[%s1717 + $0x4] sm:$0xf]
      %v1720 = vld [vmem:[%s1717 + $0x8] sm:$0xf]
      %v1721 = vld [vmem:[%s1717 + $0xc] sm:$0xf]
      %v1722 = vld [vmem:[%s1717 + $0x10] sm:$0xf]
      %v1723 = vld [vmem:[%s1717 + $0x14] sm:$0x1]
      %v1729 = vunpack.c.l.b16 %v1701
      %v1730 = vunpack.c.l.b16 %v1702
      %v1731 = vunpack.c.l.b16 %v1703
      %v1732 = vunpack.c.l.b16 %v1704
      %v1733 = vunpack.c.l.b16 %v1705
      %v1734 = vpack.c.b16 %v1730, %v1729
      %v1735 = vpack.c.b16 %v1732, %v1731
      %v1736 = vpack.c.b16 %v1733, %v1733
      %v1743 = vunpack.c.l.b16 %v1718
      %v1744 = vunpack.c.l.b16 %v1719
      %v1745 = vunpack.c.l.b16 %v1720
      %v1746 = vunpack.c.l.b16 %v1721
      %v1747 = vunpack.c.l.b16 %v1722
      %v1748 = vunpack.c.l.b16 %v1723
      %v1749 = vpack.c.b16 %v1744, %v1743
      %v1750 = vpack.c.b16 %v1746, %v1745
      %v1751 = vpack.c.b16 %v1748, %v1747
      %vm1754 = vcmask 343040
      %v1756 = vsel %vm1754, %v1734, 0
      %v1759 = vsel %vm1754, %v1735, 0
      %v1762 = vsel %vm1754, %v1736, 0
      %vm1764 = vcmask 1044480
      %v1766 = vsel %vm1764, %v1751, 0
      %1768 = vmatpush.bf16.msra.mxu0 0
      %1769 = vmatpush.bf16.msra.mxu0 0
      %1770 = vmatpush.bf16.msra.mxu0 0
      %1771 = vmatpush.bf16.msra.mxu0 0
      %1772 = vmatpush.bf16.msra.mxu0 0
      %1773 = vmatpush.bf16.msra.mxu0 %v1766
      %1774 = vmatpush.bf16.msra.mxu0 %v1750
      %1775 = vmatpush.bf16.msra.mxu0 %v1749
      %1776 = vmatmul.bf16.gmra.mxu0 %v1756
      %v1777 = vpop.f32.mrf.mxu0
      %v1778 = vadd.f32 0.0, %v1777
      %v1779 = vpop.f32.mrf.mxu0
      %v1780 = vadd.f32 0.0, %v1779
      %1781 = vmatmul.bf16.gmra.mxu0 %v1759
      %v1782 = vpop.f32.mrf.mxu0
      %v1783 = vadd.f32 0.0, %v1782
      %v1784 = vpop.f32.mrf.mxu0
      %v1785 = vadd.f32 0.0, %v1784
      %1786 = vmatmul.bf16.gmra.mxu0 %v1762
      %v1787 = vpop.f32.mrf.mxu0
      %v1788 = vadd.f32 0.0, %v1787
      %v1789 = vpop.f32.mrf.mxu0
      %1790 = vdwg.mxu0
      %v1796 = vunpack.c.l.b16 %v1696
      %v1797 = vunpack.c.l.b16 %v1697
      %v1798 = vunpack.c.l.b16 %v1698
      %v1799 = vunpack.c.l.b16 %v1699
      %v1800 = vunpack.c.l.b16 %v1700
      %v1801 = vpack.c.b16 %v1797, %v1796
      %v1802 = vpack.c.b16 %v1799, %v1798
      %v1803 = vpack.c.b16 %v1800, %v1800
      %v1810 = vunpack.c.l.b16 %v1711
      %v1811 = vunpack.c.l.b16 %v1712
      %v1812 = vunpack.c.l.b16 %v1713
      %v1813 = vunpack.c.l.b16 %v1714
      %v1814 = vunpack.c.l.b16 %v1715
      %v1815 = vunpack.c.l.b16 %v1716
      %v1816 = vpack.c.b16 %v1811, %v1810
      %v1817 = vpack.c.b16 %v1813, %v1812
      %v1818 = vpack.c.b16 %v1815, %v1814
      %v1822 = vsel %vm1754, %v1801, 0
      %v1825 = vsel %vm1754, %v1802, 0
      %v1828 = vsel %vm1754, %v1803, 0
      %v1831 = vsel %vm1764, %v1818, 0
      %1833 = vmatpush.bf16.msra.mxu0 0
      %1834 = vmatpush.bf16.msra.mxu0 0
      %1835 = vmatpush.bf16.msra.mxu0 0
      %1836 = vmatpush.bf16.msra.mxu0 0
      %1837 = vmatpush.bf16.msra.mxu0 0
      %1838 = vmatpush.bf16.msra.mxu0 %v1831
      %1839 = vmatpush.bf16.msra.mxu0 %v1817
      %1840 = vmatpush.bf16.msra.mxu0 %v1816
      %1841 = vmatmul.bf16.gmra.mxu0 %v1822
      %v1842 = vpop.f32.mrf.mxu0
      %v1843 = vadd.f32 %v1778, %v1842
      %v1844 = vpop.f32.mrf.mxu0
      %v1845 = vadd.f32 %v1780, %v1844
      %1846 = vmatmul.bf16.gmra.mxu0 %v1825
      %v1847 = vpop.f32.mrf.mxu0
      %v1848 = vadd.f32 %v1783, %v1847
      %v1849 = vpop.f32.mrf.mxu0
      %v1850 = vadd.f32 %v1785, %v1849
      %1851 = vmatmul.bf16.gmra.mxu0 %v1828
      %v1852 = vpop.f32.mrf.mxu0
      %v1853 = vadd.f32 %v1788, %v1852
      %v1854 = vpop.f32.mrf.mxu0
      %1855 = vdwg.mxu0
      %s1856 = scalar_lea.vmem %s5, 48
      %v1857 = vld [vmem:[%s1856] sm:$0xf]
      %v1858 = vld [vmem:[%s1856 + $0x4] sm:$0xf]
      %v1859 = vld [vmem:[%s1856 + $0x8] sm:$0xf]
      %v1860 = vld [vmem:[%s1856 + $0xc] sm:$0xf]
      %v1861 = vld [vmem:[%s1856 + $0x10] sm:$0xf]
      %v1862 = vld [vmem:[%s1856 + $0x14] sm:$0x1]
      %v1868 = vunpack.c.l.b16 %v1706
      %v1869 = vunpack.c.l.b16 %v1707
      %v1870 = vunpack.c.l.b16 %v1708
      %v1871 = vunpack.c.l.b16 %v1709
      %v1872 = vunpack.c.l.b16 %v1710
      %v1873 = vpack.c.b16 %v1869, %v1868
      %v1874 = vpack.c.b16 %v1871, %v1870
      %v1875 = vpack.c.b16 %v1872, %v1872
      %v1882 = vunpack.c.l.b16 %v1857
      %v1883 = vunpack.c.l.b16 %v1858
      %v1884 = vunpack.c.l.b16 %v1859
      %v1885 = vunpack.c.l.b16 %v1860
      %v1886 = vunpack.c.l.b16 %v1861
      %v1887 = vunpack.c.l.b16 %v1862
      %v1888 = vpack.c.b16 %v1883, %v1882
      %v1889 = vpack.c.b16 %v1885, %v1884
      %v1890 = vpack.c.b16 %v1887, %v1886
      %v1894 = vsel %vm1754, %v1873, 0
      %v1897 = vsel %vm1754, %v1874, 0
      %v1900 = vsel %vm1754, %v1875, 0
      %v1903 = vsel %vm1764, %v1890, 0
      %1905 = vmatpush.bf16.msra.mxu0 0
      %1906 = vmatpush.bf16.msra.mxu0 0
      %1907 = vmatpush.bf16.msra.mxu0 0
      %1908 = vmatpush.bf16.msra.mxu0 0
      %1909 = vmatpush.bf16.msra.mxu0 0
      %1910 = vmatpush.bf16.msra.mxu0 %v1903
      %1911 = vmatpush.bf16.msra.mxu0 %v1889
      %1912 = vmatpush.bf16.msra.mxu0 %v1888
      %1913 = vmatmul.bf16.gmra.mxu0 %v1894
      %v1914 = vpop.f32.mrf.mxu0
      %v1915 = vadd.f32 0.0, %v1914
      %v1916 = vpop.f32.mrf.mxu0
      %v1917 = vadd.f32 0.0, %v1916
      %1918 = vmatmul.bf16.gmra.mxu0 %v1897
      %v1919 = vpop.f32.mrf.mxu0
      %v1920 = vadd.f32 0.0, %v1919
      %v1921 = vpop.f32.mrf.mxu0
      %v1922 = vadd.f32 0.0, %v1921
      %1923 = vmatmul.bf16.gmra.mxu0 %v1900
      %v1924 = vpop.f32.mrf.mxu0
      %v1925 = vadd.f32 0.0, %v1924
      %v1926 = vpop.f32.mrf.mxu0
      %1927 = vdwg.mxu0
      %v1928 = vadd.f32 %v1843, %v1915
      %v1929 = vadd.f32 %v1845, %v1917
      %v1930 = vadd.f32 %v1848, %v1920
      %v1931 = vadd.f32 %v1850, %v1922
      %v1932 = vadd.f32 %v1853, %v1925
      %v1933 = vld [vmem:[%s6] sm:$0x1]
      %v1935 = vperm.slane %v1933, 0
      %v1937 = vadd.f32 %v1928, %v1935
      %v1938 = vadd.f32 %v1929, %v1935
      %v1939 = vadd.f32 %v1930, %v1935
      %v1940 = vadd.f32 %v1931, %v1935
      %v1941 = vadd.f32 %v1932, %v1935
      %v1942 = vmul.f32 %v1937, 0.01
      %v1943 = vmul.f32 %v1938, 0.01
      %v1944 = vmul.f32 %v1939, 0.01
      %v1945 = vmul.f32 %v1940, 0.01
      %v1946 = vmul.f32 %v1941, 0.01
      %v1947 = vmax.f32 %v1937, %v1942
      %v1948 = vmax.f32 %v1938, %v1943
      %v1949 = vmax.f32 %v1939, %v1944
      %v1950 = vmax.f32 %v1940, %v1945
      %v1951 = vmax.f32 %v1941, %v1946
      %v1952 = vmax.f32 %v1947, %v1948
      %v1953 = vmax.f32 %v1952, %v1949
      %v1954 = vmax.f32 %v1953, %v1950
      %v1955 = vmax.f32 %v1954, %v1951
      %v1956 = vpack.c.bf16 %v1955, %v1955
      %v1957 = vld [vmem:[%s7] sm:$0xf]
      %v1958 = vld [vmem:[%s7 + $0x4] sm:$0xf]
      %v1959 = vld [vmem:[%s7 + $0x8] sm:$0xf]
      %v1960 = vld [vmem:[%s7 + $0xc] sm:$0xf]
      %v1961 = vld [vmem:[%s7 + $0x10] sm:$0xf]
      %v1962 = vld [vmem:[%s7 + $0x14] sm:$0xf]
      %v1963 = vld [vmem:[%s7 + $0x18] sm:$0xf]
      %v1964 = vld [vmem:[%s7 + $0x1c] sm:$0xf]
      %v1965 = vld [vmem:[%s7 + $0x20] sm:$0xf]
      %v1966 = vld [vmem:[%s7 + $0x24] sm:$0xf]
      %v1967 = vld [vmem:[%s7 + $0x28] sm:$0xf]
      %v1968 = vld [vmem:[%s7 + $0x2c] sm:$0xf]
      %v1969 = vld [vmem:[%s7 + $0x30] sm:$0xf]
      %v1970 = vld [vmem:[%s7 + $0x34] sm:$0xf]
      %v1971 = vld [vmem:[%s7 + $0x38] sm:$0xf]
      %v1972 = vld [vmem:[%s7 + $0x3c] sm:$0xf]
      %v1973 = vld [vmem:[%s7 + $0x40] sm:$0xf]
      %v1974 = vld [vmem:[%s7 + $0x44] sm:$0xf]
      %v1975 = vld [vmem:[%s7 + $0x48] sm:$0xf]
      %v1976 = vld [vmem:[%s7 + $0x4c] sm:$0xf]
      %v1977 = vld [vmem:[%s7 + $0x50] sm:$0xf]
      %v1978 = vld [vmem:[%s7 + $0x54] sm:$0xf]
      %v1979 = vld [vmem:[%s7 + $0x58] sm:$0xf]
      %v1980 = vld [vmem:[%s7 + $0x5c] sm:$0xf]
      %v1981 = vld [vmem:[%s7 + $0x60] sm:$0xf]
      %v2007 = vunpack.c.l.b16 %v1957
      %v2008 = vunpack.c.l.b16 %v1958
      %v2009 = vunpack.c.l.b16 %v1959
      %v2010 = vunpack.c.l.b16 %v1960
      %v2011 = vunpack.c.l.b16 %v1961
      %v2012 = vunpack.c.l.b16 %v1962
      %v2013 = vunpack.c.l.b16 %v1963
      %v2014 = vunpack.c.l.b16 %v1964
      %v2015 = vunpack.c.l.b16 %v1965
      %v2016 = vunpack.c.l.b16 %v1966
      %v2017 = vunpack.c.l.b16 %v1967
      %v2018 = vunpack.c.l.b16 %v1968
      %v2019 = vunpack.c.l.b16 %v1969
      %v2020 = vunpack.c.l.b16 %v1970
      %v2021 = vunpack.c.l.b16 %v1971
      %v2022 = vunpack.c.l.b16 %v1972
      %v2023 = vunpack.c.l.b16 %v1973
      %v2024 = vunpack.c.l.b16 %v1974
      %v2025 = vunpack.c.l.b16 %v1975
      %v2026 = vunpack.c.l.b16 %v1976
      %v2027 = vunpack.c.l.b16 %v1977
      %v2028 = vunpack.c.l.b16 %v1978
      %v2029 = vunpack.c.l.b16 %v1979
      %v2030 = vunpack.c.l.b16 %v1980
      %v2031 = vunpack.c.l.b16 %v1981
      %v2032 = vpack.c.b16 %v2008, %v2007
      %v2033 = vpack.c.b16 %v2010, %v2009
      %v2034 = vpack.c.b16 %v2012, %v2011
      %v2035 = vpack.c.b16 %v2014, %v2013
      %v2036 = vpack.c.b16 %v2016, %v2015
      %v2037 = vpack.c.b16 %v2018, %v2017
      %v2038 = vpack.c.b16 %v2020, %v2019
      %v2039 = vpack.c.b16 %v2022, %v2021
      %v2040 = vpack.c.b16 %v2024, %v2023
      %v2041 = vpack.c.b16 %v2026, %v2025
      %v2042 = vpack.c.b16 %v2028, %v2027
      %v2043 = vpack.c.b16 %v2030, %v2029
      %v2044 = vpack.c.b16 %v2031, %v2031
      %2058 = vmatpush.bf16.msra.mxu0 %v1586
      %2059 = vmatpush.bf16.msra.mxu0 %v1585
      %2060 = vmatpush.bf16.msra.mxu0 %v1584
      %2061 = vmatpush.bf16.msra.mxu0 %v1583
      %2062 = vmatpush.bf16.msra.mxu0 %v1582
      %2063 = vmatpush.bf16.msra.mxu0 %v1581
      %2064 = vmatpush.bf16.msra.mxu0 %v1580
      %2065 = vmatpush.bf16.msra.mxu0 %v1579
      %2066 = vmatmul.bf16.gmra.mxu0 %v2032
      %v2067 = vpop.f32.mrf.mxu0
      %v2068 = vadd.f32 0.0, %v2067
      %v2069 = vpop.f32.mrf.mxu0
      %v2070 = vadd.f32 0.0, %v2069
      %2071 = vmatmul.bf16.gmra.mxu0 %v2033
      %v2072 = vpop.f32.mrf.mxu0
      %v2073 = vadd.f32 0.0, %v2072
      %v2074 = vpop.f32.mrf.mxu0
      %v2075 = vadd.f32 0.0, %v2074
      %2076 = vmatmul.bf16.gmra.mxu0 %v2034
      %v2077 = vpop.f32.mrf.mxu0
      %v2078 = vadd.f32 0.0, %v2077
      %v2079 = vpop.f32.mrf.mxu0
      %v2080 = vadd.f32 0.0, %v2079
      %2081 = vmatmul.bf16.gmra.mxu0 %v2035
      %v2082 = vpop.f32.mrf.mxu0
      %v2083 = vadd.f32 0.0, %v2082
      %v2084 = vpop.f32.mrf.mxu0
      %v2085 = vadd.f32 0.0, %v2084
      %2086 = vmatmul.bf16.gmra.mxu0 %v2036
      %v2087 = vpop.f32.mrf.mxu0
      %v2088 = vadd.f32 0.0, %v2087
      %v2089 = vpop.f32.mrf.mxu0
      %v2090 = vadd.f32 0.0, %v2089
      %2091 = vmatmul.bf16.gmra.mxu0 %v2037
      %v2092 = vpop.f32.mrf.mxu0
      %v2093 = vadd.f32 0.0, %v2092
      %v2094 = vpop.f32.mrf.mxu0
      %v2095 = vadd.f32 0.0, %v2094
      %2096 = vmatmul.bf16.gmra.mxu0 %v2038
      %v2097 = vpop.f32.mrf.mxu0
      %v2098 = vadd.f32 0.0, %v2097
      %v2099 = vpop.f32.mrf.mxu0
      %v2100 = vadd.f32 0.0, %v2099
      %2101 = vmatmul.bf16.gmra.mxu0 %v2039
      %v2102 = vpop.f32.mrf.mxu0
      %v2103 = vadd.f32 0.0, %v2102
      %v2104 = vpop.f32.mrf.mxu0
      %v2105 = vadd.f32 0.0, %v2104
      %2106 = vmatmul.bf16.gmra.mxu0 %v2040
      %v2107 = vpop.f32.mrf.mxu0
      %v2108 = vadd.f32 0.0, %v2107
      %v2109 = vpop.f32.mrf.mxu0
      %v2110 = vadd.f32 0.0, %v2109
      %2111 = vmatmul.bf16.gmra.mxu0 %v2041
      %v2112 = vpop.f32.mrf.mxu0
      %v2113 = vadd.f32 0.0, %v2112
      %v2114 = vpop.f32.mrf.mxu0
      %v2115 = vadd.f32 0.0, %v2114
      %2116 = vmatmul.bf16.gmra.mxu0 %v2042
      %v2117 = vpop.f32.mrf.mxu0
      %v2118 = vadd.f32 0.0, %v2117
      %v2119 = vpop.f32.mrf.mxu0
      %v2120 = vadd.f32 0.0, %v2119
      %2121 = vmatmul.bf16.gmra.mxu0 %v2043
      %v2122 = vpop.f32.mrf.mxu0
      %v2123 = vadd.f32 0.0, %v2122
      %v2124 = vpop.f32.mrf.mxu0
      %v2125 = vadd.f32 0.0, %v2124
      %2126 = vmatmul.bf16.gmra.mxu0 %v2044
      %v2127 = vpop.f32.mrf.mxu0
      %v2128 = vadd.f32 0.0, %v2127
      %v2129 = vpop.f32.mrf.mxu0
      %2130 = vdwg.mxu0
      %v2131 = vpack.c.bf16 %v2068, %v2068
      %v2132 = vpack.c.bf16 %v2070, %v2070
      %v2133 = vpack.c.bf16 %v2073, %v2073
      %v2134 = vpack.c.bf16 %v2075, %v2075
      %v2135 = vpack.c.bf16 %v2078, %v2078
      %v2136 = vpack.c.bf16 %v2080, %v2080
      %v2137 = vpack.c.bf16 %v2083, %v2083
      %v2138 = vpack.c.bf16 %v2085, %v2085
      %v2139 = vpack.c.bf16 %v2088, %v2088
      %v2140 = vpack.c.bf16 %v2090, %v2090
      %v2141 = vpack.c.bf16 %v2093, %v2093
      %v2142 = vpack.c.bf16 %v2095, %v2095
      %v2143 = vpack.c.bf16 %v2098, %v2098
      %v2144 = vpack.c.bf16 %v2100, %v2100
      %v2145 = vpack.c.bf16 %v2103, %v2103
      %v2146 = vpack.c.bf16 %v2105, %v2105
      %v2147 = vpack.c.bf16 %v2108, %v2108
      %v2148 = vpack.c.bf16 %v2110, %v2110
      %v2149 = vpack.c.bf16 %v2113, %v2113
      %v2150 = vpack.c.bf16 %v2115, %v2115
      %v2151 = vpack.c.bf16 %v2118, %v2118
      %v2152 = vpack.c.bf16 %v2120, %v2120
      %v2153 = vpack.c.bf16 %v2123, %v2123
      %v2154 = vpack.c.bf16 %v2125, %v2125
      %v2155 = vpack.c.bf16 %v2128, %v2128
      %v2156 = vld [vmem:[%s8] sm:$0xf]
      %v2157 = vld [vmem:[%s8 + $0x4] sm:$0xf]
      %v2158 = vld [vmem:[%s8 + $0x8] sm:$0xf]
      %v2159 = vld [vmem:[%s8 + $0xc] sm:$0xf]
      %v2160 = vld [vmem:[%s8 + $0x10] sm:$0xf]
      %v2161 = vld [vmem:[%s8 + $0x14] sm:$0x1]
      %s2162 = scalar_lea.vmem %s8, 24
      %v2163 = vld [vmem:[%s2162] sm:$0xf]
      %v2164 = vld [vmem:[%s2162 + $0x4] sm:$0xf]
      %v2165 = vld [vmem:[%s2162 + $0x8] sm:$0xf]
      %v2166 = vld [vmem:[%s2162 + $0xc] sm:$0xf]
      %v2167 = vld [vmem:[%s2162 + $0x10] sm:$0xf]
      %v2168 = vld [vmem:[%s2162 + $0x14] sm:$0x1]
      %v2174 = vunpack.c.l.b16 %v2136
      %v2175 = vunpack.c.l.b16 %v2137
      %v2176 = vunpack.c.l.b16 %v2138
      %v2177 = vunpack.c.l.b16 %v2139
      %v2178 = vunpack.c.l.b16 %v2140
      %v2179 = vpack.c.b16 %v2175, %v2174
      %v2180 = vpack.c.b16 %v2177, %v2176
      %v2181 = vpack.c.b16 %v2178, %v2178
      %v2188 = vunpack.c.l.b16 %v2163
      %v2189 = vunpack.c.l.b16 %v2164
      %v2190 = vunpack.c.l.b16 %v2165
      %v2191 = vunpack.c.l.b16 %v2166
      %v2192 = vunpack.c.l.b16 %v2167
      %v2193 = vunpack.c.l.b16 %v2168
      %v2194 = vpack.c.b16 %v2189, %v2188
      %v2195 = vpack.c.b16 %v2191, %v2190
      %v2196 = vpack.c.b16 %v2193, %v2192
      %v2200 = vsel %vm1754, %v2179, 0
      %v2203 = vsel %vm1754, %v2180, 0
      %v2206 = vsel %vm1754, %v2181, 0
      %v2209 = vsel %vm1764, %v2196, 0
      %2211 = vmatpush.bf16.msra.mxu0 0
      %2212 = vmatpush.bf16.msra.mxu0 0
      %2213 = vmatpush.bf16.msra.mxu0 0
      %2214 = vmatpush.bf16.msra.mxu0 0
      %2215 = vmatpush.bf16.msra.mxu0 0
      %2216 = vmatpush.bf16.msra.mxu0 %v2209
      %2217 = vmatpush.bf16.msra.mxu0 %v2195
      %2218 = vmatpush.bf16.msra.mxu0 %v2194
      %2219 = vmatmul.bf16.gmra.mxu0 %v2200
      %v2220 = vpop.f32.mrf.mxu0
      %v2221 = vadd.f32 0.0, %v2220
      %v2222 = vpop.f32.mrf.mxu0
      %v2223 = vadd.f32 0.0, %v2222
      %2224 = vmatmul.bf16.gmra.mxu0 %v2203
      %v2225 = vpop.f32.mrf.mxu0
      %v2226 = vadd.f32 0.0, %v2225
      %v2227 = vpop.f32.mrf.mxu0
      %v2228 = vadd.f32 0.0, %v2227
      %2229 = vmatmul.bf16.gmra.mxu0 %v2206
      %v2230 = vpop.f32.mrf.mxu0
      %v2231 = vadd.f32 0.0, %v2230
      %v2232 = vpop.f32.mrf.mxu0
      %2233 = vdwg.mxu0
      %v2239 = vunpack.c.l.b16 %v2131
      %v2240 = vunpack.c.l.b16 %v2132
      %v2241 = vunpack.c.l.b16 %v2133
      %v2242 = vunpack.c.l.b16 %v2134
      %v2243 = vunpack.c.l.b16 %v2135
      %v2244 = vpack.c.b16 %v2240, %v2239
      %v2245 = vpack.c.b16 %v2242, %v2241
      %v2246 = vpack.c.b16 %v2243, %v2243
      %v2253 = vunpack.c.l.b16 %v2156
      %v2254 = vunpack.c.l.b16 %v2157
      %v2255 = vunpack.c.l.b16 %v2158
      %v2256 = vunpack.c.l.b16 %v2159
      %v2257 = vunpack.c.l.b16 %v2160
      %v2258 = vunpack.c.l.b16 %v2161
      %v2259 = vpack.c.b16 %v2254, %v2253
      %v2260 = vpack.c.b16 %v2256, %v2255
      %v2261 = vpack.c.b16 %v2258, %v2257
      %v2265 = vsel %vm1754, %v2244, 0
      %v2268 = vsel %vm1754, %v2245, 0
      %v2271 = vsel %vm1754, %v2246, 0
      %v2274 = vsel %vm1764, %v2261, 0
      %2276 = vmatpush.bf16.msra.mxu0 0
      %2277 = vmatpush.bf16.msra.mxu0 0
      %2278 = vmatpush.bf16.msra.mxu0 0
      %2279 = vmatpush.bf16.msra.mxu0 0
      %2280 = vmatpush.bf16.msra.mxu0 0
      %2281 = vmatpush.bf16.msra.mxu0 %v2274
      %2282 = vmatpush.bf16.msra.mxu0 %v2260
      %2283 = vmatpush.bf16.msra.mxu0 %v2259
      %2284 = vmatmul.bf16.gmra.mxu0 %v2265
      %v2285 = vpop.f32.mrf.mxu0
      %v2286 = vadd.f32 %v2221, %v2285
      %v2287 = vpop.f32.mrf.mxu0
      %v2288 = vadd.f32 %v2223, %v2287
      %2289 = vmatmul.bf16.gmra.mxu0 %v2268
      %v2290 = vpop.f32.mrf.mxu0
      %v2291 = vadd.f32 %v2226, %v2290
      %v2292 = vpop.f32.mrf.mxu0
      %v2293 = vadd.f32 %v2228, %v2292
      %2294 = vmatmul.bf16.gmra.mxu0 %v2271
      %v2295 = vpop.f32.mrf.mxu0
      %v2296 = vadd.f32 %v2231, %v2295
      %v2297 = vpop.f32.mrf.mxu0
      %2298 = vdwg.mxu0
      %s2299 = scalar_lea.vmem %s8, 48
      %v2300 = vld [vmem:[%s2299] sm:$0xf]
      %v2301 = vld [vmem:[%s2299 + $0x4] sm:$0xf]
      %v2302 = vld [vmem:[%s2299 + $0x8] sm:$0xf]
      %v2303 = vld [vmem:[%s2299 + $0xc] sm:$0xf]
      %v2304 = vld [vmem:[%s2299 + $0x10] sm:$0xf]
      %v2305 = vld [vmem:[%s2299 + $0x14] sm:$0x1]
      %v2311 = vunpack.c.l.b16 %v2141
      %v2312 = vunpack.c.l.b16 %v2142
      %v2313 = vunpack.c.l.b16 %v2143
      %v2314 = vunpack.c.l.b16 %v2144
      %v2315 = vunpack.c.l.b16 %v2145
      %v2316 = vpack.c.b16 %v2312, %v2311
      %v2317 = vpack.c.b16 %v2314, %v2313
      %v2318 = vpack.c.b16 %v2315, %v2315
      %v2325 = vunpack.c.l.b16 %v2300
      %v2326 = vunpack.c.l.b16 %v2301
      %v2327 = vunpack.c.l.b16 %v2302
      %v2328 = vunpack.c.l.b16 %v2303
      %v2329 = vunpack.c.l.b16 %v2304
      %v2330 = vunpack.c.l.b16 %v2305
      %v2331 = vpack.c.b16 %v2326, %v2325
      %v2332 = vpack.c.b16 %v2328, %v2327
      %v2333 = vpack.c.b16 %v2330, %v2329
      %v2337 = vsel %vm1754, %v2316, 0
      %v2340 = vsel %vm1754, %v2317, 0
      %v2343 = vsel %vm1754, %v2318, 0
      %v2346 = vsel %vm1764, %v2333, 0
      %2348 = vmatpush.bf16.msra.mxu0 0
      %2349 = vmatpush.bf16.msra.mxu0 0
      %2350 = vmatpush.bf16.msra.mxu0 0
      %2351 = vmatpush.bf16.msra.mxu0 0
      %2352 = vmatpush.bf16.msra.mxu0 0
      %2353 = vmatpush.bf16.msra.mxu0 %v2346
      %2354 = vmatpush.bf16.msra.mxu0 %v2332
      %2355 = vmatpush.bf16.msra.mxu0 %v2331
      %2356 = vmatmul.bf16.gmra.mxu0 %v2337
      %v2357 = vpop.f32.mrf.mxu0
      %v2358 = vadd.f32 0.0, %v2357
      %v2359 = vpop.f32.mrf.mxu0
      %v2360 = vadd.f32 0.0, %v2359
      %2361 = vmatmul.bf16.gmra.mxu0 %v2340
      %v2362 = vpop.f32.mrf.mxu0
      %v2363 = vadd.f32 0.0, %v2362
      %v2364 = vpop.f32.mrf.mxu0
      %v2365 = vadd.f32 0.0, %v2364
      %2366 = vmatmul.bf16.gmra.mxu0 %v2343
      %v2367 = vpop.f32.mrf.mxu0
      %v2368 = vadd.f32 0.0, %v2367
      %v2369 = vpop.f32.mrf.mxu0
      %2370 = vdwg.mxu0
      %v2371 = vadd.f32 %v2286, %v2358
      %v2372 = vadd.f32 %v2288, %v2360
      %v2373 = vadd.f32 %v2291, %v2363
      %v2374 = vadd.f32 %v2293, %v2365
      %v2375 = vadd.f32 %v2296, %v2368
      %s2376 = scalar_lea.vmem %s8, 72
      %v2377 = vld [vmem:[%s2376] sm:$0xf]
      %v2378 = vld [vmem:[%s2376 + $0x4] sm:$0xf]
      %v2379 = vld [vmem:[%s2376 + $0x8] sm:$0xf]
      %v2380 = vld [vmem:[%s2376 + $0xc] sm:$0xf]
      %v2381 = vld [vmem:[%s2376 + $0x10] sm:$0xf]
      %v2382 = vld [vmem:[%s2376 + $0x14] sm:$0x1]
      %v2388 = vunpack.c.l.b16 %v2146
      %v2389 = vunpack.c.l.b16 %v2147
      %v2390 = vunpack.c.l.b16 %v2148
      %v2391 = vunpack.c.l.b16 %v2149
      %v2392 = vunpack.c.l.b16 %v2150
      %v2393 = vpack.c.b16 %v2389, %v2388
      %v2394 = vpack.c.b16 %v2391, %v2390
      %v2395 = vpack.c.b16 %v2392, %v2392
      %v2402 = vunpack.c.l.b16 %v2377
      %v2403 = vunpack.c.l.b16 %v2378
      %v2404 = vunpack.c.l.b16 %v2379
      %v2405 = vunpack.c.l.b16 %v2380
      %v2406 = vunpack.c.l.b16 %v2381
      %v2407 = vunpack.c.l.b16 %v2382
      %v2408 = vpack.c.b16 %v2403, %v2402
      %v2409 = vpack.c.b16 %v2405, %v2404
      %v2410 = vpack.c.b16 %v2407, %v2406
      %v2414 = vsel %vm1754, %v2393, 0
      %v2417 = vsel %vm1754, %v2394, 0
      %v2420 = vsel %vm1754, %v2395, 0
      %v2423 = vsel %vm1764, %v2410, 0
      %2425 = vmatpush.bf16.msra.mxu0 0
      %2426 = vmatpush.bf16.msra.mxu0 0
      %2427 = vmatpush.bf16.msra.mxu0 0
      %2428 = vmatpush.bf16.msra.mxu0 0
      %2429 = vmatpush.bf16.msra.mxu0 0
      %2430 = vmatpush.bf16.msra.mxu0 %v2423
      %2431 = vmatpush.bf16.msra.mxu0 %v2409
      %2432 = vmatpush.bf16.msra.mxu0 %v2408
      %2433 = vmatmul.bf16.gmra.mxu0 %v2414
      %v2434 = vpop.f32.mrf.mxu0
      %v2435 = vadd.f32 0.0, %v2434
      %v2436 = vpop.f32.mrf.mxu0
      %v2437 = vadd.f32 0.0, %v2436
      %2438 = vmatmul.bf16.gmra.mxu0 %v2417
      %v2439 = vpop.f32.mrf.mxu0
      %v2440 = vadd.f32 0.0, %v2439
      %v2441 = vpop.f32.mrf.mxu0
      %v2442 = vadd.f32 0.0, %v2441
      %2443 = vmatmul.bf16.gmra.mxu0 %v2420
      %v2444 = vpop.f32.mrf.mxu0
      %v2445 = vadd.f32 0.0, %v2444
      %v2446 = vpop.f32.mrf.mxu0
      %2447 = vdwg.mxu0
      %v2448 = vadd.f32 %v2371, %v2435
      %v2449 = vadd.f32 %v2372, %v2437
      %v2450 = vadd.f32 %v2373, %v2440
      %v2451 = vadd.f32 %v2374, %v2442
      %v2452 = vadd.f32 %v2375, %v2445
      %s2453 = scalar_lea.vmem %s8, 96
      %v2454 = vld [vmem:[%s2453] sm:$0xf]
      %v2455 = vld [vmem:[%s2453 + $0x4] sm:$0xf]
      %v2456 = vld [vmem:[%s2453 + $0x8] sm:$0xf]
      %v2457 = vld [vmem:[%s2453 + $0xc] sm:$0xf]
      %v2458 = vld [vmem:[%s2453 + $0x10] sm:$0xf]
      %v2459 = vld [vmem:[%s2453 + $0x14] sm:$0x1]
      %v2465 = vunpack.c.l.b16 %v2151
      %v2466 = vunpack.c.l.b16 %v2152
      %v2467 = vunpack.c.l.b16 %v2153
      %v2468 = vunpack.c.l.b16 %v2154
      %v2469 = vunpack.c.l.b16 %v2155
      %v2470 = vpack.c.b16 %v2466, %v2465
      %v2471 = vpack.c.b16 %v2468, %v2467
      %v2472 = vpack.c.b16 %v2469, %v2469
      %v2479 = vunpack.c.l.b16 %v2454
      %v2480 = vunpack.c.l.b16 %v2455
      %v2481 = vunpack.c.l.b16 %v2456
      %v2482 = vunpack.c.l.b16 %v2457
      %v2483 = vunpack.c.l.b16 %v2458
      %v2484 = vunpack.c.l.b16 %v2459
      %v2485 = vpack.c.b16 %v2480, %v2479
      %v2486 = vpack.c.b16 %v2482, %v2481
      %v2487 = vpack.c.b16 %v2484, %v2483
      %v2491 = vsel %vm1754, %v2470, 0
      %v2494 = vsel %vm1754, %v2471, 0
      %v2497 = vsel %vm1754, %v2472, 0
      %v2500 = vsel %vm1764, %v2487, 0
      %2502 = vmatpush.bf16.msra.mxu0 0
      %2503 = vmatpush.bf16.msra.mxu0 0
      %2504 = vmatpush.bf16.msra.mxu0 0
      %2505 = vmatpush.bf16.msra.mxu0 0
      %2506 = vmatpush.bf16.msra.mxu0 0
      %2507 = vmatpush.bf16.msra.mxu0 %v2500
      %2508 = vmatpush.bf16.msra.mxu0 %v2486
      %2509 = vmatpush.bf16.msra.mxu0 %v2485
      %2510 = vmatmul.bf16.gmra.mxu0 %v2491
      %v2511 = vpop.f32.mrf.mxu0
      %v2512 = vadd.f32 0.0, %v2511
      %v2513 = vpop.f32.mrf.mxu0
      %v2514 = vadd.f32 0.0, %v2513
      %2515 = vmatmul.bf16.gmra.mxu0 %v2494
      %v2516 = vpop.f32.mrf.mxu0
      %v2517 = vadd.f32 0.0, %v2516
      %v2518 = vpop.f32.mrf.mxu0
      %v2519 = vadd.f32 0.0, %v2518
      %2520 = vmatmul.bf16.gmra.mxu0 %v2497
      %v2521 = vpop.f32.mrf.mxu0
      %v2522 = vadd.f32 0.0, %v2521
      %v2523 = vpop.f32.mrf.mxu0
      %2524 = vdwg.mxu0
      %v2525 = vadd.f32 %v2448, %v2512
      %v2526 = vadd.f32 %v2449, %v2514
      %v2527 = vadd.f32 %v2450, %v2517
      %v2528 = vadd.f32 %v2451, %v2519
      %v2529 = vadd.f32 %v2452, %v2522
      %v2530 = vld [vmem:[%s9] sm:$0x1]
      %v2532 = vperm.slane %v2530, 0
      %v2534 = vadd.f32 %v2525, %v2532
      %v2535 = vadd.f32 %v2526, %v2532
      %v2536 = vadd.f32 %v2527, %v2532
      %v2537 = vadd.f32 %v2528, %v2532
      %v2538 = vadd.f32 %v2529, %v2532
      %v2539 = vmul.f32 %v2534, 0.01
      %v2540 = vmul.f32 %v2535, 0.01
      %v2541 = vmul.f32 %v2536, 0.01
      %v2542 = vmul.f32 %v2537, 0.01
      %v2543 = vmul.f32 %v2538, 0.01
      %v2544 = vmax.f32 %v2534, %v2539
      %v2545 = vmax.f32 %v2535, %v2540
      %v2546 = vmax.f32 %v2536, %v2541
      %v2547 = vmax.f32 %v2537, %v2542
      %v2548 = vmax.f32 %v2538, %v2543
      %v2549 = vmax.f32 %v2544, %v2545
      %v2550 = vmax.f32 %v2549, %v2546
      %v2551 = vmax.f32 %v2550, %v2547
      %v2552 = vmax.f32 %v2551, %v2548
      %v2553 = vpack.c.bf16 %v2552, %v2552
      %v2554 = vld [vmem:[%s10] sm:$0xf]
      %v2555 = vld [vmem:[%s10 + $0x4] sm:$0xf]
      %v2556 = vld [vmem:[%s10 + $0x8] sm:$0xf]
      %v2557 = vld [vmem:[%s10 + $0xc] sm:$0xf]
      %v2558 = vld [vmem:[%s10 + $0x10] sm:$0xf]
      %v2559 = vld [vmem:[%s10 + $0x14] sm:$0xf]
      %v2560 = vld [vmem:[%s10 + $0x18] sm:$0xf]
      %v2561 = vld [vmem:[%s10 + $0x1c] sm:$0xf]
      %v2562 = vld [vmem:[%s10 + $0x20] sm:$0xf]
      %v2563 = vld [vmem:[%s10 + $0x24] sm:$0xf]
      %v2564 = vld [vmem:[%s10 + $0x28] sm:$0xf]
      %v2565 = vld [vmem:[%s10 + $0x2c] sm:$0xf]
      %v2566 = vld [vmem:[%s10 + $0x30] sm:$0xf]
      %v2567 = vld [vmem:[%s10 + $0x34] sm:$0xf]
      %v2568 = vld [vmem:[%s10 + $0x38] sm:$0xf]
      %v2569 = vld [vmem:[%s10 + $0x3c] sm:$0xf]
      %v2570 = vld [vmem:[%s10 + $0x40] sm:$0xf]
      %v2571 = vld [vmem:[%s10 + $0x44] sm:$0xf]
      %v2572 = vld [vmem:[%s10 + $0x48] sm:$0xf]
      %v2573 = vld [vmem:[%s10 + $0x4c] sm:$0xf]
      %v2574 = vld [vmem:[%s10 + $0x50] sm:$0xf]
      %v2575 = vld [vmem:[%s10 + $0x54] sm:$0xf]
      %v2576 = vld [vmem:[%s10 + $0x58] sm:$0xf]
      %v2577 = vld [vmem:[%s10 + $0x5c] sm:$0xf]
      %v2578 = vld [vmem:[%s10 + $0x60] sm:$0xf]
      %v2579 = vld [vmem:[%s10 + $0x64] sm:$0xf]
      %v2580 = vld [vmem:[%s10 + $0x68] sm:$0xf]
      %v2581 = vld [vmem:[%s10 + $0x6c] sm:$0xf]
      %v2582 = vld [vmem:[%s10 + $0x70] sm:$0xf]
      %v2583 = vld [vmem:[%s10 + $0x74] sm:$0xf]
      %v2584 = vld [vmem:[%s10 + $0x78] sm:$0xf]
      %v2585 = vld [vmem:[%s10 + $0x7c] sm:$0xf]
      %v2586 = vld [vmem:[%s10 + $0x80] sm:$0xf]
      %v2587 = vld [vmem:[%s10 + $0x84] sm:$0xf]
      %v2588 = vld [vmem:[%s10 + $0x88] sm:$0xf]
      %v2589 = vld [vmem:[%s10 + $0x8c] sm:$0xf]
      %v2590 = vld [vmem:[%s10 + $0x90] sm:$0xf]
      %v2591 = vld [vmem:[%s10 + $0x94] sm:$0xf]
      %v2592 = vld [vmem:[%s10 + $0x98] sm:$0xf]
      %v2593 = vld [vmem:[%s10 + $0x9c] sm:$0xf]
      %v2594 = vld [vmem:[%s10 + $0xa0] sm:$0xf]
      %v2595 = vld [vmem:[%s10 + $0xa4] sm:$0xf]
      %v2638 = vunpack.c.l.b16 %v2554
      %v2639 = vunpack.c.l.b16 %v2555
      %v2640 = vunpack.c.l.b16 %v2556
      %v2641 = vunpack.c.l.b16 %v2557
      %v2642 = vunpack.c.l.b16 %v2558
      %v2643 = vunpack.c.l.b16 %v2559
      %v2644 = vunpack.c.l.b16 %v2560
      %v2645 = vunpack.c.l.b16 %v2561
      %v2646 = vunpack.c.l.b16 %v2562
      %v2647 = vunpack.c.l.b16 %v2563
      %v2648 = vunpack.c.l.b16 %v2564
      %v2649 = vunpack.c.l.b16 %v2565
      %v2650 = vunpack.c.l.b16 %v2566
      %v2651 = vunpack.c.l.b16 %v2567
      %v2652 = vunpack.c.l.b16 %v2568
      %v2653 = vunpack.c.l.b16 %v2569
      %v2654 = vunpack.c.l.b16 %v2570
      %v2655 = vunpack.c.l.b16 %v2571
      %v2656 = vunpack.c.l.b16 %v2572
      %v2657 = vunpack.c.l.b16 %v2573
      %v2658 = vunpack.c.l.b16 %v2574
      %v2659 = vunpack.c.l.b16 %v2575
      %v2660 = vunpack.c.l.b16 %v2576
      %v2661 = vunpack.c.l.b16 %v2577
      %v2662 = vunpack.c.l.b16 %v2578
      %v2663 = vunpack.c.l.b16 %v2579
      %v2664 = vunpack.c.l.b16 %v2580
      %v2665 = vunpack.c.l.b16 %v2581
      %v2666 = vunpack.c.l.b16 %v2582
      %v2667 = vunpack.c.l.b16 %v2583
      %v2668 = vunpack.c.l.b16 %v2584
      %v2669 = vunpack.c.l.b16 %v2585
      %v2670 = vunpack.c.l.b16 %v2586
      %v2671 = vunpack.c.l.b16 %v2587
      %v2672 = vunpack.c.l.b16 %v2588
      %v2673 = vunpack.c.l.b16 %v2589
      %v2674 = vunpack.c.l.b16 %v2590
      %v2675 = vunpack.c.l.b16 %v2591
      %v2676 = vunpack.c.l.b16 %v2592
      %v2677 = vunpack.c.l.b16 %v2593
      %v2678 = vunpack.c.l.b16 %v2594
      %v2679 = vunpack.c.l.b16 %v2595
      %v2680 = vpack.c.b16 %v2639, %v2638
      %v2681 = vpack.c.b16 %v2641, %v2640
      %v2682 = vpack.c.b16 %v2643, %v2642
      %v2683 = vpack.c.b16 %v2645, %v2644
      %v2684 = vpack.c.b16 %v2647, %v2646
      %v2685 = vpack.c.b16 %v2649, %v2648
      %v2686 = vpack.c.b16 %v2651, %v2650
      %v2687 = vpack.c.b16 %v2653, %v2652
      %v2688 = vpack.c.b16 %v2655, %v2654
      %v2689 = vpack.c.b16 %v2657, %v2656
      %v2690 = vpack.c.b16 %v2659, %v2658
      %v2691 = vpack.c.b16 %v2661, %v2660
      %v2692 = vpack.c.b16 %v2663, %v2662
      %v2693 = vpack.c.b16 %v2665, %v2664
      %v2694 = vpack.c.b16 %v2667, %v2666
      %v2695 = vpack.c.b16 %v2669, %v2668
      %v2696 = vpack.c.b16 %v2671, %v2670
      %v2697 = vpack.c.b16 %v2673, %v2672
      %v2698 = vpack.c.b16 %v2675, %v2674
      %v2699 = vpack.c.b16 %v2677, %v2676
      %v2700 = vpack.c.b16 %v2679, %v2678
      %2722 = vmatpush.bf16.msra.mxu0 %v1586
      %2723 = vmatpush.bf16.msra.mxu0 %v1585
      %2724 = vmatpush.bf16.msra.mxu0 %v1584
      %2725 = vmatpush.bf16.msra.mxu0 %v1583
      %2726 = vmatpush.bf16.msra.mxu0 %v1582
      %2727 = vmatpush.bf16.msra.mxu0 %v1581
      %2728 = vmatpush.bf16.msra.mxu0 %v1580
      %2729 = vmatpush.bf16.msra.mxu0 %v1579
      %2730 = vmatmul.bf16.gmra.mxu0 %v2680
      %v2731 = vpop.f32.mrf.mxu0
      %v2732 = vadd.f32 0.0, %v2731
      %v2733 = vpop.f32.mrf.mxu0
      %v2734 = vadd.f32 0.0, %v2733
      %2735 = vmatmul.bf16.gmra.mxu0 %v2681
      %v2736 = vpop.f32.mrf.mxu0
      %v2737 = vadd.f32 0.0, %v2736
      %v2738 = vpop.f32.mrf.mxu0
      %v2739 = vadd.f32 0.0, %v2738
      %2740 = vmatmul.bf16.gmra.mxu0 %v2682
      %v2741 = vpop.f32.mrf.mxu0
      %v2742 = vadd.f32 0.0, %v2741
      %v2743 = vpop.f32.mrf.mxu0
      %v2744 = vadd.f32 0.0, %v2743
      %2745 = vmatmul.bf16.gmra.mxu0 %v2683
      %v2746 = vpop.f32.mrf.mxu0
      %v2747 = vadd.f32 0.0, %v2746
      %v2748 = vpop.f32.mrf.mxu0
      %v2749 = vadd.f32 0.0, %v2748
      %2750 = vmatmul.bf16.gmra.mxu0 %v2684
      %v2751 = vpop.f32.mrf.mxu0
      %v2752 = vadd.f32 0.0, %v2751
      %v2753 = vpop.f32.mrf.mxu0
      %v2754 = vadd.f32 0.0, %v2753
      %2755 = vmatmul.bf16.gmra.mxu0 %v2685
      %v2756 = vpop.f32.mrf.mxu0
      %v2757 = vadd.f32 0.0, %v2756
      %v2758 = vpop.f32.mrf.mxu0
      %v2759 = vadd.f32 0.0, %v2758
      %2760 = vmatmul.bf16.gmra.mxu0 %v2686
      %v2761 = vpop.f32.mrf.mxu0
      %v2762 = vadd.f32 0.0, %v2761
      %v2763 = vpop.f32.mrf.mxu0
      %v2764 = vadd.f32 0.0, %v2763
      %2765 = vmatmul.bf16.gmra.mxu0 %v2687
      %v2766 = vpop.f32.mrf.mxu0
      %v2767 = vadd.f32 0.0, %v2766
      %v2768 = vpop.f32.mrf.mxu0
      %v2769 = vadd.f32 0.0, %v2768
      %2770 = vmatmul.bf16.gmra.mxu0 %v2688
      %v2771 = vpop.f32.mrf.mxu0
      %v2772 = vadd.f32 0.0, %v2771
      %v2773 = vpop.f32.mrf.mxu0
      %v2774 = vadd.f32 0.0, %v2773
      %2775 = vmatmul.bf16.gmra.mxu0 %v2689
      %v2776 = vpop.f32.mrf.mxu0
      %v2777 = vadd.f32 0.0, %v2776
      %v2778 = vpop.f32.mrf.mxu0
      %v2779 = vadd.f32 0.0, %v2778
      %2780 = vmatmul.bf16.gmra.mxu0 %v2690
      %v2781 = vpop.f32.mrf.mxu0
      %v2782 = vadd.f32 0.0, %v2781
      %v2783 = vpop.f32.mrf.mxu0
      %v2784 = vadd.f32 0.0, %v2783
      %2785 = vmatmul.bf16.gmra.mxu0 %v2691
      %v2786 = vpop.f32.mrf.mxu0
      %v2787 = vadd.f32 0.0, %v2786
      %v2788 = vpop.f32.mrf.mxu0
      %v2789 = vadd.f32 0.0, %v2788
      %2790 = vmatmul.bf16.gmra.mxu0 %v2692
      %v2791 = vpop.f32.mrf.mxu0
      %v2792 = vadd.f32 0.0, %v2791
      %v2793 = vpop.f32.mrf.mxu0
      %v2794 = vadd.f32 0.0, %v2793
      %2795 = vmatmul.bf16.gmra.mxu0 %v2693
      %v2796 = vpop.f32.mrf.mxu0
      %v2797 = vadd.f32 0.0, %v2796
      %v2798 = vpop.f32.mrf.mxu0
      %v2799 = vadd.f32 0.0, %v2798
      %2800 = vmatmul.bf16.gmra.mxu0 %v2694
      %v2801 = vpop.f32.mrf.mxu0
      %v2802 = vadd.f32 0.0, %v2801
      %v2803 = vpop.f32.mrf.mxu0
      %v2804 = vadd.f32 0.0, %v2803
      %2805 = vmatmul.bf16.gmra.mxu0 %v2695
      %v2806 = vpop.f32.mrf.mxu0
      %v2807 = vadd.f32 0.0, %v2806
      %v2808 = vpop.f32.mrf.mxu0
      %v2809 = vadd.f32 0.0, %v2808
      %2810 = vmatmul.bf16.gmra.mxu0 %v2696
      %v2811 = vpop.f32.mrf.mxu0
      %v2812 = vadd.f32 0.0, %v2811
      %v2813 = vpop.f32.mrf.mxu0
      %v2814 = vadd.f32 0.0, %v2813
      %2815 = vmatmul.bf16.gmra.mxu0 %v2697
      %v2816 = vpop.f32.mrf.mxu0
      %v2817 = vadd.f32 0.0, %v2816
      %v2818 = vpop.f32.mrf.mxu0
      %v2819 = vadd.f32 0.0, %v2818
      %2820 = vmatmul.bf16.gmra.mxu0 %v2698
      %v2821 = vpop.f32.mrf.mxu0
      %v2822 = vadd.f32 0.0, %v2821
      %v2823 = vpop.f32.mrf.mxu0
      %v2824 = vadd.f32 0.0, %v2823
      %2825 = vmatmul.bf16.gmra.mxu0 %v2699
      %v2826 = vpop.f32.mrf.mxu0
      %v2827 = vadd.f32 0.0, %v2826
      %v2828 = vpop.f32.mrf.mxu0
      %v2829 = vadd.f32 0.0, %v2828
      %2830 = vmatmul.bf16.gmra.mxu0 %v2700
      %v2831 = vpop.f32.mrf.mxu0
      %v2832 = vadd.f32 0.0, %v2831
      %v2833 = vpop.f32.mrf.mxu0
      %v2834 = vadd.f32 0.0, %v2833
      %2835 = vdwg.mxu0
      %v2836 = vpack.c.bf16 %v2732, %v2732
      %v2837 = vpack.c.bf16 %v2734, %v2734
      %v2838 = vpack.c.bf16 %v2737, %v2737
      %v2839 = vpack.c.bf16 %v2739, %v2739
      %v2840 = vpack.c.bf16 %v2742, %v2742
      %v2841 = vpack.c.bf16 %v2744, %v2744
      %v2842 = vpack.c.bf16 %v2747, %v2747
      %v2843 = vpack.c.bf16 %v2749, %v2749
      %v2844 = vpack.c.bf16 %v2752, %v2752
      %v2845 = vpack.c.bf16 %v2754, %v2754
      %v2846 = vpack.c.bf16 %v2757, %v2757
      %v2847 = vpack.c.bf16 %v2759, %v2759
      %v2848 = vpack.c.bf16 %v2762, %v2762
      %v2849 = vpack.c.bf16 %v2764, %v2764
      %v2850 = vpack.c.bf16 %v2767, %v2767
      %v2851 = vpack.c.bf16 %v2769, %v2769
      %v2852 = vpack.c.bf16 %v2772, %v2772
      %v2853 = vpack.c.bf16 %v2774, %v2774
      %v2854 = vpack.c.bf16 %v2777, %v2777
      %v2855 = vpack.c.bf16 %v2779, %v2779
      %v2856 = vpack.c.bf16 %v2782, %v2782
      %v2857 = vpack.c.bf16 %v2784, %v2784
      %v2858 = vpack.c.bf16 %v2787, %v2787
      %v2859 = vpack.c.bf16 %v2789, %v2789
      %v2860 = vpack.c.bf16 %v2792, %v2792
      %v2861 = vpack.c.bf16 %v2794, %v2794
      %v2862 = vpack.c.bf16 %v2797, %v2797
      %v2863 = vpack.c.bf16 %v2799, %v2799
      %v2864 = vpack.c.bf16 %v2802, %v2802
      %v2865 = vpack.c.bf16 %v2804, %v2804
      %v2866 = vpack.c.bf16 %v2807, %v2807
      %v2867 = vpack.c.bf16 %v2809, %v2809
      %v2868 = vpack.c.bf16 %v2812, %v2812
      %v2869 = vpack.c.bf16 %v2814, %v2814
      %v2870 = vpack.c.bf16 %v2817, %v2817
      %v2871 = vpack.c.bf16 %v2819, %v2819
      %v2872 = vpack.c.bf16 %v2822, %v2822
      %v2873 = vpack.c.bf16 %v2824, %v2824
      %v2874 = vpack.c.bf16 %v2827, %v2827
      %v2875 = vpack.c.bf16 %v2829, %v2829
      %v2876 = vpack.c.bf16 %v2832, %v2832
      %v2877 = vpack.c.bf16 %v2834, %v2834
      %v2878 = vld [vmem:[%s11] sm:$0xf]
      %v2879 = vld [vmem:[%s11 + $0x4] sm:$0xf]
      %v2880 = vld [vmem:[%s11 + $0x8] sm:$0xf]
      %v2881 = vld [vmem:[%s11 + $0xc] sm:$0xf]
      %v2882 = vld [vmem:[%s11 + $0x10] sm:$0xf]
      %v2883 = vld [vmem:[%s11 + $0x14] sm:$0x1]
      %s2884 = scalar_lea.vmem %s11, 24
      %v2885 = vld [vmem:[%s2884] sm:$0xf]
      %v2886 = vld [vmem:[%s2884 + $0x4] sm:$0xf]
      %v2887 = vld [vmem:[%s2884 + $0x8] sm:$0xf]
      %v2888 = vld [vmem:[%s2884 + $0xc] sm:$0xf]
      %v2889 = vld [vmem:[%s2884 + $0x10] sm:$0xf]
      %v2890 = vld [vmem:[%s2884 + $0x14] sm:$0x1]
      %v2897 = vunpack.c.l.b16 %v2842
      %v2898 = vunpack.c.l.b16 %v2843
      %v2899 = vunpack.c.l.b16 %v2844
      %v2900 = vunpack.c.l.b16 %v2845
      %v2901 = vunpack.c.l.b16 %v2846
      %v2902 = vunpack.c.l.b16 %v2847
      %v2903 = vpack.c.b16 %v2898, %v2897
      %v2904 = vpack.c.b16 %v2900, %v2899
      %v2905 = vpack.c.b16 %v2902, %v2901
      %v2912 = vunpack.c.l.b16 %v2885
      %v2913 = vunpack.c.l.b16 %v2886
      %v2914 = vunpack.c.l.b16 %v2887
      %v2915 = vunpack.c.l.b16 %v2888
      %v2916 = vunpack.c.l.b16 %v2889
      %v2917 = vunpack.c.l.b16 %v2890
      %v2918 = vpack.c.b16 %v2913, %v2912
      %v2919 = vpack.c.b16 %v2915, %v2914
      %v2920 = vpack.c.b16 %v2917, %v2916
      %v2924 = vsel %vm1754, %v2903, 0
      %v2927 = vsel %vm1754, %v2904, 0
      %v2930 = vsel %vm1754, %v2905, 0
      %v2933 = vsel %vm1764, %v2920, 0
      %2935 = vmatpush.bf16.msra.mxu0 0
      %2936 = vmatpush.bf16.msra.mxu0 0
      %2937 = vmatpush.bf16.msra.mxu0 0
      %2938 = vmatpush.bf16.msra.mxu0 0
      %2939 = vmatpush.bf16.msra.mxu0 0
      %2940 = vmatpush.bf16.msra.mxu0 %v2933
      %2941 = vmatpush.bf16.msra.mxu0 %v2919
      %2942 = vmatpush.bf16.msra.mxu0 %v2918
      %2943 = vmatmul.bf16.gmra.mxu0 %v2924
      %v2944 = vpop.f32.mrf.mxu0
      %v2945 = vadd.f32 0.0, %v2944
      %v2946 = vpop.f32.mrf.mxu0
      %v2947 = vadd.f32 0.0, %v2946
      %2948 = vmatmul.bf16.gmra.mxu0 %v2927
      %v2949 = vpop.f32.mrf.mxu0
      %v2950 = vadd.f32 0.0, %v2949
      %v2951 = vpop.f32.mrf.mxu0
      %v2952 = vadd.f32 0.0, %v2951
      %2953 = vmatmul.bf16.gmra.mxu0 %v2930
      %v2954 = vpop.f32.mrf.mxu0
      %v2955 = vadd.f32 0.0, %v2954
      %v2956 = vpop.f32.mrf.mxu0
      %v2957 = vadd.f32 0.0, %v2956
      %2958 = vdwg.mxu0
      %v2965 = vunpack.c.l.b16 %v2836
      %v2966 = vunpack.c.l.b16 %v2837
      %v2967 = vunpack.c.l.b16 %v2838
      %v2968 = vunpack.c.l.b16 %v2839
      %v2969 = vunpack.c.l.b16 %v2840
      %v2970 = vunpack.c.l.b16 %v2841
      %v2971 = vpack.c.b16 %v2966, %v2965
      %v2972 = vpack.c.b16 %v2968, %v2967
      %v2973 = vpack.c.b16 %v2970, %v2969
      %v2980 = vunpack.c.l.b16 %v2878
      %v2981 = vunpack.c.l.b16 %v2879
      %v2982 = vunpack.c.l.b16 %v2880
      %v2983 = vunpack.c.l.b16 %v2881
      %v2984 = vunpack.c.l.b16 %v2882
      %v2985 = vunpack.c.l.b16 %v2883
      %v2986 = vpack.c.b16 %v2981, %v2980
      %v2987 = vpack.c.b16 %v2983, %v2982
      %v2988 = vpack.c.b16 %v2985, %v2984
      %v2992 = vsel %vm1754, %v2971, 0
      %v2995 = vsel %vm1754, %v2972, 0
      %v2998 = vsel %vm1754, %v2973, 0
      %v3001 = vsel %vm1764, %v2988, 0
      %3003 = vmatpush.bf16.msra.mxu0 0
      %3004 = vmatpush.bf16.msra.mxu0 0
      %3005 = vmatpush.bf16.msra.mxu0 0
      %3006 = vmatpush.bf16.msra.mxu0 0
      %3007 = vmatpush.bf16.msra.mxu0 0
      %3008 = vmatpush.bf16.msra.mxu0 %v3001
      %3009 = vmatpush.bf16.msra.mxu0 %v2987
      %3010 = vmatpush.bf16.msra.mxu0 %v2986
      %3011 = vmatmul.bf16.gmra.mxu0 %v2992
      %v3012 = vpop.f32.mrf.mxu0
      %v3013 = vadd.f32 %v2945, %v3012
      %v3014 = vpop.f32.mrf.mxu0
      %v3015 = vadd.f32 %v2947, %v3014
      %3016 = vmatmul.bf16.gmra.mxu0 %v2995
      %v3017 = vpop.f32.mrf.mxu0
      %v3018 = vadd.f32 %v2950, %v3017
      %v3019 = vpop.f32.mrf.mxu0
      %v3020 = vadd.f32 %v2952, %v3019
      %3021 = vmatmul.bf16.gmra.mxu0 %v2998
      %v3022 = vpop.f32.mrf.mxu0
      %v3023 = vadd.f32 %v2955, %v3022
      %v3024 = vpop.f32.mrf.mxu0
      %v3025 = vadd.f32 %v2957, %v3024
      %3026 = vdwg.mxu0
      %s3027 = scalar_lea.vmem %s11, 48
      %v3028 = vld [vmem:[%s3027] sm:$0xf]
      %v3029 = vld [vmem:[%s3027 + $0x4] sm:$0xf]
      %v3030 = vld [vmem:[%s3027 + $0x8] sm:$0xf]
      %v3031 = vld [vmem:[%s3027 + $0xc] sm:$0xf]
      %v3032 = vld [vmem:[%s3027 + $0x10] sm:$0xf]
      %v3033 = vld [vmem:[%s3027 + $0x14] sm:$0x1]
      %v3040 = vunpack.c.l.b16 %v2848
      %v3041 = vunpack.c.l.b16 %v2849
      %v3042 = vunpack.c.l.b16 %v2850
      %v3043 = vunpack.c.l.b16 %v2851
      %v3044 = vunpack.c.l.b16 %v2852
      %v3045 = vunpack.c.l.b16 %v2853
      %v3046 = vpack.c.b16 %v3041, %v3040
      %v3047 = vpack.c.b16 %v3043, %v3042
      %v3048 = vpack.c.b16 %v3045, %v3044
      %v3055 = vunpack.c.l.b16 %v3028
      %v3056 = vunpack.c.l.b16 %v3029
      %v3057 = vunpack.c.l.b16 %v3030
      %v3058 = vunpack.c.l.b16 %v3031
      %v3059 = vunpack.c.l.b16 %v3032
      %v3060 = vunpack.c.l.b16 %v3033
      %v3061 = vpack.c.b16 %v3056, %v3055
      %v3062 = vpack.c.b16 %v3058, %v3057
      %v3063 = vpack.c.b16 %v3060, %v3059
      %v3067 = vsel %vm1754, %v3046, 0
      %v3070 = vsel %vm1754, %v3047, 0
      %v3073 = vsel %vm1754, %v3048, 0
      %v3076 = vsel %vm1764, %v3063, 0
      %3078 = vmatpush.bf16.msra.mxu0 0
      %3079 = vmatpush.bf16.msra.mxu0 0
      %3080 = vmatpush.bf16.msra.mxu0 0
      %3081 = vmatpush.bf16.msra.mxu0 0
      %3082 = vmatpush.bf16.msra.mxu0 0
      %3083 = vmatpush.bf16.msra.mxu0 %v3076
      %3084 = vmatpush.bf16.msra.mxu0 %v3062
      %3085 = vmatpush.bf16.msra.mxu0 %v3061
      %3086 = vmatmul.bf16.gmra.mxu0 %v3067
      %v3087 = vpop.f32.mrf.mxu0
      %v3088 = vadd.f32 0.0, %v3087
      %v3089 = vpop.f32.mrf.mxu0
      %v3090 = vadd.f32 0.0, %v3089
      %3091 = vmatmul.bf16.gmra.mxu0 %v3070
      %v3092 = vpop.f32.mrf.mxu0
      %v3093 = vadd.f32 0.0, %v3092
      %v3094 = vpop.f32.mrf.mxu0
      %v3095 = vadd.f32 0.0, %v3094
      %3096 = vmatmul.bf16.gmra.mxu0 %v3073
      %v3097 = vpop.f32.mrf.mxu0
      %v3098 = vadd.f32 0.0, %v3097
      %v3099 = vpop.f32.mrf.mxu0
      %v3100 = vadd.f32 0.0, %v3099
      %3101 = vdwg.mxu0
      %v3102 = vadd.f32 %v3013, %v3088
      %v3103 = vadd.f32 %v3015, %v3090
      %v3104 = vadd.f32 %v3018, %v3093
      %v3105 = vadd.f32 %v3020, %v3095
      %v3106 = vadd.f32 %v3023, %v3098
      %v3107 = vadd.f32 %v3025, %v3100
      %s3108 = scalar_lea.vmem %s11, 72
      %v3109 = vld [vmem:[%s3108] sm:$0xf]
      %v3110 = vld [vmem:[%s3108 + $0x4] sm:$0xf]
      %v3111 = vld [vmem:[%s3108 + $0x8] sm:$0xf]
      %v3112 = vld [vmem:[%s3108 + $0xc] sm:$0xf]
      %v3113 = vld [vmem:[%s3108 + $0x10] sm:$0xf]
      %v3114 = vld [vmem:[%s3108 + $0x14] sm:$0x1]
      %v3121 = vunpack.c.l.b16 %v2854
      %v3122 = vunpack.c.l.b16 %v2855
      %v3123 = vunpack.c.l.b16 %v2856
      %v3124 = vunpack.c.l.b16 %v2857
      %v3125 = vunpack.c.l.b16 %v2858
      %v3126 = vunpack.c.l.b16 %v2859
      %v3127 = vpack.c.b16 %v3122, %v3121
      %v3128 = vpack.c.b16 %v3124, %v3123
      %v3129 = vpack.c.b16 %v3126, %v3125
      %v3136 = vunpack.c.l.b16 %v3109
      %v3137 = vunpack.c.l.b16 %v3110
      %v3138 = vunpack.c.l.b16 %v3111
      %v3139 = vunpack.c.l.b16 %v3112
      %v3140 = vunpack.c.l.b16 %v3113
      %v3141 = vunpack.c.l.b16 %v3114
      %v3142 = vpack.c.b16 %v3137, %v3136
      %v3143 = vpack.c.b16 %v3139, %v3138
      %v3144 = vpack.c.b16 %v3141, %v3140
      %v3148 = vsel %vm1754, %v3127, 0
      %v3151 = vsel %vm1754, %v3128, 0
      %v3154 = vsel %vm1754, %v3129, 0
      %v3157 = vsel %vm1764, %v3144, 0
      %3159 = vmatpush.bf16.msra.mxu0 0
      %3160 = vmatpush.bf16.msra.mxu0 0
      %3161 = vmatpush.bf16.msra.mxu0 0
      %3162 = vmatpush.bf16.msra.mxu0 0
      %3163 = vmatpush.bf16.msra.mxu0 0
      %3164 = vmatpush.bf16.msra.mxu0 %v3157
      %3165 = vmatpush.bf16.msra.mxu0 %v3143
      %3166 = vmatpush.bf16.msra.mxu0 %v3142
      %3167 = vmatmul.bf16.gmra.mxu0 %v3148
      %v3168 = vpop.f32.mrf.mxu0
      %v3169 = vadd.f32 0.0, %v3168
      %v3170 = vpop.f32.mrf.mxu0
      %v3171 = vadd.f32 0.0, %v3170
      %3172 = vmatmul.bf16.gmra.mxu0 %v3151
      %v3173 = vpop.f32.mrf.mxu0
      %v3174 = vadd.f32 0.0, %v3173
      %v3175 = vpop.f32.mrf.mxu0
      %v3176 = vadd.f32 0.0, %v3175
      %3177 = vmatmul.bf16.gmra.mxu0 %v3154
      %v3178 = vpop.f32.mrf.mxu0
      %v3179 = vadd.f32 0.0, %v3178
      %v3180 = vpop.f32.mrf.mxu0
      %v3181 = vadd.f32 0.0, %v3180
      %3182 = vdwg.mxu0
      %v3183 = vadd.f32 %v3102, %v3169
      %v3184 = vadd.f32 %v3103, %v3171
      %v3185 = vadd.f32 %v3104, %v3174
      %v3186 = vadd.f32 %v3105, %v3176
      %v3187 = vadd.f32 %v3106, %v3179
      %v3188 = vadd.f32 %v3107, %v3181
      %s3189 = scalar_lea.vmem %s11, 96
      %v3190 = vld [vmem:[%s3189] sm:$0xf]
      %v3191 = vld [vmem:[%s3189 + $0x4] sm:$0xf]
      %v3192 = vld [vmem:[%s3189 + $0x8] sm:$0xf]
      %v3193 = vld [vmem:[%s3189 + $0xc] sm:$0xf]
      %v3194 = vld [vmem:[%s3189 + $0x10] sm:$0xf]
      %v3195 = vld [vmem:[%s3189 + $0x14] sm:$0x1]
      %v3202 = vunpack.c.l.b16 %v2860
      %v3203 = vunpack.c.l.b16 %v2861
      %v3204 = vunpack.c.l.b16 %v2862
      %v3205 = vunpack.c.l.b16 %v2863
      %v3206 = vunpack.c.l.b16 %v2864
      %v3207 = vunpack.c.l.b16 %v2865
      %v3208 = vpack.c.b16 %v3203, %v3202
      %v3209 = vpack.c.b16 %v3205, %v3204
      %v3210 = vpack.c.b16 %v3207, %v3206
      %v3217 = vunpack.c.l.b16 %v3190
      %v3218 = vunpack.c.l.b16 %v3191
      %v3219 = vunpack.c.l.b16 %v3192
      %v3220 = vunpack.c.l.b16 %v3193
      %v3221 = vunpack.c.l.b16 %v3194
      %v3222 = vunpack.c.l.b16 %v3195
      %v3223 = vpack.c.b16 %v3218, %v3217
      %v3224 = vpack.c.b16 %v3220, %v3219
      %v3225 = vpack.c.b16 %v3222, %v3221
      %v3229 = vsel %vm1754, %v3208, 0
      %v3232 = vsel %vm1754, %v3209, 0
      %v3235 = vsel %vm1754, %v3210, 0
      %v3238 = vsel %vm1764, %v3225, 0
      %3240 = vmatpush.bf16.msra.mxu0 0
      %3241 = vmatpush.bf16.msra.mxu0 0
      %3242 = vmatpush.bf16.msra.mxu0 0
      %3243 = vmatpush.bf16.msra.mxu0 0
      %3244 = vmatpush.bf16.msra.mxu0 0
      %3245 = vmatpush.bf16.msra.mxu0 %v3238
      %3246 = vmatpush.bf16.msra.mxu0 %v3224
      %3247 = vmatpush.bf16.msra.mxu0 %v3223
      %3248 = vmatmul.bf16.gmra.mxu0 %v3229
      %v3249 = vpop.f32.mrf.mxu0
      %v3250 = vadd.f32 0.0, %v3249
      %v3251 = vpop.f32.mrf.mxu0
      %v3252 = vadd.f32 0.0, %v3251
      %3253 = vmatmul.bf16.gmra.mxu0 %v3232
      %v3254 = vpop.f32.mrf.mxu0
      %v3255 = vadd.f32 0.0, %v3254
      %v3256 = vpop.f32.mrf.mxu0
      %v3257 = vadd.f32 0.0, %v3256
      %3258 = vmatmul.bf16.gmra.mxu0 %v3235
      %v3259 = vpop.f32.mrf.mxu0
      %v3260 = vadd.f32 0.0, %v3259
      %v3261 = vpop.f32.mrf.mxu0
      %v3262 = vadd.f32 0.0, %v3261
      %3263 = vdwg.mxu0
      %v3264 = vadd.f32 %v3183, %v3250
      %v3265 = vadd.f32 %v3184, %v3252
      %v3266 = vadd.f32 %v3185, %v3255
      %v3267 = vadd.f32 %v3186, %v3257
      %v3268 = vadd.f32 %v3187, %v3260
      %v3269 = vadd.f32 %v3188, %v3262
      %s3270 = scalar_lea.vmem %s11, 120
      %v3271 = vld [vmem:[%s3270] sm:$0xf]
      %v3272 = vld [vmem:[%s3270 + $0x4] sm:$0xf]
      %v3273 = vld [vmem:[%s3270 + $0x8] sm:$0xf]
      %v3274 = vld [vmem:[%s3270 + $0xc] sm:$0xf]
      %v3275 = vld [vmem:[%s3270 + $0x10] sm:$0xf]
      %v3276 = vld [vmem:[%s3270 + $0x14] sm:$0x1]
      %v3283 = vunpack.c.l.b16 %v2866
      %v3284 = vunpack.c.l.b16 %v2867
      %v3285 = vunpack.c.l.b16 %v2868
      %v3286 = vunpack.c.l.b16 %v2869
      %v3287 = vunpack.c.l.b16 %v2870
      %v3288 = vunpack.c.l.b16 %v2871
      %v3289 = vpack.c.b16 %v3284, %v3283
      %v3290 = vpack.c.b16 %v3286, %v3285
      %v3291 = vpack.c.b16 %v3288, %v3287
      %v3298 = vunpack.c.l.b16 %v3271
      %v3299 = vunpack.c.l.b16 %v3272
      %v3300 = vunpack.c.l.b16 %v3273
      %v3301 = vunpack.c.l.b16 %v3274
      %v3302 = vunpack.c.l.b16 %v3275
      %v3303 = vunpack.c.l.b16 %v3276
      %v3304 = vpack.c.b16 %v3299, %v3298
      %v3305 = vpack.c.b16 %v3301, %v3300
      %v3306 = vpack.c.b16 %v3303, %v3302
      %v3310 = vsel %vm1754, %v3289, 0
      %v3313 = vsel %vm1754, %v3290, 0
      %v3316 = vsel %vm1754, %v3291, 0
      %v3319 = vsel %vm1764, %v3306, 0
      %3321 = vmatpush.bf16.msra.mxu0 0
      %3322 = vmatpush.bf16.msra.mxu0 0
      %3323 = vmatpush.bf16.msra.mxu0 0
      %3324 = vmatpush.bf16.msra.mxu0 0
      %3325 = vmatpush.bf16.msra.mxu0 0
      %3326 = vmatpush.bf16.msra.mxu0 %v3319
      %3327 = vmatpush.bf16.msra.mxu0 %v3305
      %3328 = vmatpush.bf16.msra.mxu0 %v3304
      %3329 = vmatmul.bf16.gmra.mxu0 %v3310
      %v3330 = vpop.f32.mrf.mxu0
      %v3331 = vadd.f32 0.0, %v3330
      %v3332 = vpop.f32.mrf.mxu0
      %v3333 = vadd.f32 0.0, %v3332
      %3334 = vmatmul.bf16.gmra.mxu0 %v3313
      %v3335 = vpop.f32.mrf.mxu0
      %v3336 = vadd.f32 0.0, %v3335
      %v3337 = vpop.f32.mrf.mxu0
      %v3338 = vadd.f32 0.0, %v3337
      %3339 = vmatmul.bf16.gmra.mxu0 %v3316
      %v3340 = vpop.f32.mrf.mxu0
      %v3341 = vadd.f32 0.0, %v3340
      %v3342 = vpop.f32.mrf.mxu0
      %v3343 = vadd.f32 0.0, %v3342
      %3344 = vdwg.mxu0
      %v3345 = vadd.f32 %v3264, %v3331
      %v3346 = vadd.f32 %v3265, %v3333
      %v3347 = vadd.f32 %v3266, %v3336
      %v3348 = vadd.f32 %v3267, %v3338
      %v3349 = vadd.f32 %v3268, %v3341
      %v3350 = vadd.f32 %v3269, %v3343
      %s3351 = scalar_lea.vmem %s11, 144
      %v3352 = vld [vmem:[%s3351] sm:$0xf]
      %v3353 = vld [vmem:[%s3351 + $0x4] sm:$0xf]
      %v3354 = vld [vmem:[%s3351 + $0x8] sm:$0xf]
      %v3355 = vld [vmem:[%s3351 + $0xc] sm:$0xf]
      %v3356 = vld [vmem:[%s3351 + $0x10] sm:$0xf]
      %v3357 = vld [vmem:[%s3351 + $0x14] sm:$0x1]
      %v3364 = vunpack.c.l.b16 %v2872
      %v3365 = vunpack.c.l.b16 %v2873
      %v3366 = vunpack.c.l.b16 %v2874
      %v3367 = vunpack.c.l.b16 %v2875
      %v3368 = vunpack.c.l.b16 %v2876
      %v3369 = vunpack.c.l.b16 %v2877
      %v3370 = vpack.c.b16 %v3365, %v3364
      %v3371 = vpack.c.b16 %v3367, %v3366
      %v3372 = vpack.c.b16 %v3369, %v3368
      %v3379 = vunpack.c.l.b16 %v3352
      %v3380 = vunpack.c.l.b16 %v3353
      %v3381 = vunpack.c.l.b16 %v3354
      %v3382 = vunpack.c.l.b16 %v3355
      %v3383 = vunpack.c.l.b16 %v3356
      %v3384 = vunpack.c.l.b16 %v3357
      %v3385 = vpack.c.b16 %v3380, %v3379
      %v3386 = vpack.c.b16 %v3382, %v3381
      %v3387 = vpack.c.b16 %v3384, %v3383
      %v3391 = vsel %vm1754, %v3370, 0
      %v3394 = vsel %vm1754, %v3371, 0
      %v3397 = vsel %vm1754, %v3372, 0
      %v3400 = vsel %vm1764, %v3387, 0
      %3402 = vmatpush.bf16.msra.mxu0 0
      %3403 = vmatpush.bf16.msra.mxu0 0
      %3404 = vmatpush.bf16.msra.mxu0 0
      %3405 = vmatpush.bf16.msra.mxu0 0
      %3406 = vmatpush.bf16.msra.mxu0 0
      %3407 = vmatpush.bf16.msra.mxu0 %v3400
      %3408 = vmatpush.bf16.msra.mxu0 %v3386
      %3409 = vmatpush.bf16.msra.mxu0 %v3385
      %3410 = vmatmul.bf16.gmra.mxu0 %v3391
      %v3411 = vpop.f32.mrf.mxu0
      %v3412 = vadd.f32 0.0, %v3411
      %v3413 = vpop.f32.mrf.mxu0
      %v3414 = vadd.f32 0.0, %v3413
      %3415 = vmatmul.bf16.gmra.mxu0 %v3394
      %v3416 = vpop.f32.mrf.mxu0
      %v3417 = vadd.f32 0.0, %v3416
      %v3418 = vpop.f32.mrf.mxu0
      %v3419 = vadd.f32 0.0, %v3418
      %3420 = vmatmul.bf16.gmra.mxu0 %v3397
      %v3421 = vpop.f32.mrf.mxu0
      %v3422 = vadd.f32 0.0, %v3421
      %v3423 = vpop.f32.mrf.mxu0
      %v3424 = vadd.f32 0.0, %v3423
      %3425 = vdwg.mxu0
      %v3426 = vadd.f32 %v3345, %v3412
      %v3427 = vadd.f32 %v3346, %v3414
      %v3428 = vadd.f32 %v3347, %v3417
      %v3429 = vadd.f32 %v3348, %v3419
      %v3430 = vadd.f32 %v3349, %v3422
      %v3431 = vadd.f32 %v3350, %v3424
      %v3432 = vld [vmem:[%s12] sm:$0x1]
      %v3434 = vperm.slane %v3432, 0
      %v3436 = vadd.f32 %v3426, %v3434
      %v3437 = vadd.f32 %v3427, %v3434
      %v3438 = vadd.f32 %v3428, %v3434
      %v3439 = vadd.f32 %v3429, %v3434
      %v3440 = vadd.f32 %v3430, %v3434
      %v3441 = vadd.f32 %v3431, %v3434
      %v3442 = vmul.f32 %v3436, 0.01
      %v3443 = vmul.f32 %v3437, 0.01
      %v3444 = vmul.f32 %v3438, 0.01
      %v3445 = vmul.f32 %v3439, 0.01
      %v3446 = vmul.f32 %v3440, 0.01
      %v3447 = vmul.f32 %v3441, 0.01
      %v3448 = vmax.f32 %v3436, %v3442
      %v3449 = vmax.f32 %v3437, %v3443
      %v3450 = vmax.f32 %v3438, %v3444
      %v3451 = vmax.f32 %v3439, %v3445
      %v3452 = vmax.f32 %v3440, %v3446
      %v3453 = vmax.f32 %v3441, %v3447
      %v3454 = vmax.f32 %v3448, %v3449
      %v3455 = vmax.f32 %v3454, %v3450
      %v3456 = vmax.f32 %v3455, %v3451
      %v3457 = vmax.f32 %v3456, %v3452
      %v3458 = vmax.f32 %v3457, %v3453
      %v3459 = vpack.c.bf16 %v3458, %v3458
      %v3460 = vld [vmem:[%s13] sm:$0xf]
      %v3461 = vld [vmem:[%s13 + $0x4] sm:$0x7]
      %s3462 = scalar_lea.vmem %s13, 8
      %v3463 = vld [vmem:[%s3462] sm:$0xf]
      %v3464 = vld [vmem:[%s3462 + $0x4] sm:$0x7]
      %v3467 = vunpack.c.l.b16 %v3463
      %v3468 = vunpack.c.l.b16 %v3464
      %v3469 = vpack.c.b16 %v3468, %v3467
      %v3471 = vsel %vm1188, %v2553, 0
      %v3474 = vsel %vm1213, %v3469, 0
      %3476 = vmatpush.bf16.msra.mxu0 0
      %3477 = vmatpush.bf16.msra.mxu0 0
      %3478 = vmatpush.bf16.msra.mxu0 0
      %3479 = vmatpush.bf16.msra.mxu0 0
      %3480 = vmatpush.bf16.msra.mxu0 0
      %3481 = vmatpush.bf16.msra.mxu0 0
      %3482 = vmatpush.bf16.msra.mxu0 0
      %3483 = vmatpush.bf16.msra.mxu0 %v3474
      %3484 = vmatmul.bf16.gmra.mxu0 %v3471
      %v3485 = vpop.f32.mrf.mxu0
      %v3486 = vadd.f32 0.0, %v3485
      %v3487 = vpop.f32.mrf.mxu0
      %3488 = vdwg.mxu0
      %v3491 = vunpack.c.l.b16 %v3460
      %v3492 = vunpack.c.l.b16 %v3461
      %v3493 = vpack.c.b16 %v3492, %v3491
      %v3495 = vsel %vm1188, %v1956, 0
      %v3498 = vsel %vm1213, %v3493, 0
      %3500 = vmatpush.bf16.msra.mxu0 0
      %3501 = vmatpush.bf16.msra.mxu0 0
      %3502 = vmatpush.bf16.msra.mxu0 0
      %3503 = vmatpush.bf16.msra.mxu0 0
      %3504 = vmatpush.bf16.msra.mxu0 0
      %3505 = vmatpush.bf16.msra.mxu0 0
      %3506 = vmatpush.bf16.msra.mxu0 0
      %3507 = vmatpush.bf16.msra.mxu0 %v3498
      %3508 = vmatmul.bf16.gmra.mxu0 %v3495
      %v3509 = vpop.f32.mrf.mxu0
      %v3510 = vadd.f32 %v3486, %v3509
      %v3511 = vpop.f32.mrf.mxu0
      %3512 = vdwg.mxu0
      %s3513 = scalar_lea.vmem %s13, 16
      %v3514 = vld [vmem:[%s3513] sm:$0xf]
      %v3515 = vld [vmem:[%s3513 + $0x4] sm:$0x7]
      %v3518 = vunpack.c.l.b16 %v3514
      %v3519 = vunpack.c.l.b16 %v3515
      %v3520 = vpack.c.b16 %v3519, %v3518
      %v3522 = vsel %vm1188, %v3459, 0
      %v3525 = vsel %vm1213, %v3520, 0
      %3527 = vmatpush.bf16.msra.mxu0 0
      %3528 = vmatpush.bf16.msra.mxu0 0
      %3529 = vmatpush.bf16.msra.mxu0 0
      %3530 = vmatpush.bf16.msra.mxu0 0
      %3531 = vmatpush.bf16.msra.mxu0 0
      %3532 = vmatpush.bf16.msra.mxu0 0
      %3533 = vmatpush.bf16.msra.mxu0 0
      %3534 = vmatpush.bf16.msra.mxu0 %v3525
      %3535 = vmatmul.bf16.gmra.mxu0 %v3522
      %v3536 = vpop.f32.mrf.mxu0
      %v3537 = vadd.f32 0.0, %v3536
      %v3538 = vpop.f32.mrf.mxu0
      %3539 = vdwg.mxu0
      %v3540 = vadd.f32 %v3510, %v3537
      %v3541 = vld [vmem:[%s14] sm:$0x1]
      %v3543 = vperm.slane %v3541, 0
      %v3545 = vadd.f32 %v3540, %v3543
      %3546 = vst [vmem:[%s494] sm:$0xff] %v3545
      %p3547 = scmp.lt.s32.totalorder %s26, 1
      %s3548 = scalar_select %p3547, %s26, 1
      %s3549 = smul.addr %s3548, 8
      %s3550 = scalar_lea.vmem %s15, %s3549
      // Predicated region
      $region81: #{generator_forward.1} parent=79 // pred_check
        %p3551 = pneg %p364
      $region82: #{generator_forward.1} parent=79 // pred_check_branch
        %3553 = sbr.rel (%p3551) target = $region84
      $region83: #{generator_forward.1} parent=79 // pred_region
        _
      $region84: #{generator_forward.1} parent=79 // pred_fallthru
        _
    $region80: #{generator_forward.1} parent=5 // pred_fallthru
      _
    %p3554 = scmp.le.s32.totalorder 2, %s21
    // Predicated region
    $region85: #{generator_forward.1} parent=5 // pred_check
      %p3555 = pneg %p3554
    $region86: #{generator_forward.1} parent=5 // pred_check_branch
      %3557 = sbr.rel (%p3555) target = $region88
    $region87: #{generator_forward.1} parent=5 // pred_region
      %s3558 = ssub.s32 %s21, 2
      // Predicated region
      $region89: #{generator_forward.1} parent=87 // pred_check
        %p3559 = pneg %p370
      $region90: #{generator_forward.1} parent=87 // pred_check_branch
        %3561 = sbr.rel (%p3559) target = $region92
      $region91: #{generator_forward.1} parent=87 // pred_region
        %p3562 = scmp.lt.s32.totalorder %s27, 1
        %s3563 = scalar_select %p3562, %s27, 1
        %s3564 = smul.addr %s3563, 8
        %s3565 = scalar_lea.vmem %s15, %s3564
      $region92: #{generator_forward.1} parent=87 // pred_fallthru
        _
    $region88: #{generator_forward.1} parent=5 // pred_fallthru
      _
  $region6: #{generator_forward.1} parent=0 // loop_footer
    %s25 = sadd.s32 1, %s21
  $region7: #{generator_forward.1} parent=0 // loop_footer_branch
    %20 = sbr.rel target = $region3
  $region8: #{generator_forward.1} parent=0 // loop_exit
    _

</llo_original>
